<compile_context>
chip_gen: v7x
topology: tpu7x:2x2x1
jax: 0.10.0
libtpu: 0.0.40
codegen_flags: <defaults>
</compile_context>

<pallas_src>
import jax
import jax.numpy as jnp
from jax.experimental import pallas as pl
from jax.experimental.pallas import tpu as pltpu

HIDDEN = 20          # nn.Linear(1, 20)
LANES = 128
WIDTH = 2 * LANES    # 256 lanes per row: interleaved [ch0, ch1, ch0, ch1, ...]


def _static_nonlin_kernel(x_ref, w1_ref, b1_ref, w2_ref, b2_ref, o_ref):
    # x_ref : (block_rows, 256)  interleaved input tile (VMEM); lane l -> channel l % 2
    # w1_ref: (HIDDEN, 256) VMEM per-lane first-layer weights  (lane l = w1[l % 2, h])
    # b1_ref: (HIDDEN, 256) VMEM per-lane first-layer biases
    # w2_ref: (HIDDEN, 256) VMEM per-lane second-layer weights
    # b2_ref: (1, 256)      VMEM per-lane second-layer bias
    # o_ref : (block_rows, 256) output tile, same interleaved layout
    x = x_ref[...]
    acc = jnp.zeros_like(x)
    # Unrolled accumulation over the 20 hidden units; each param row broadcasts
    # across sublanes (XLU slot — idle in this VALU-bound kernel).
    for h in range(HIDDEN):
        w1_h = w1_ref[h:h + 1, :]
        b1_h = b1_ref[h:h + 1, :]
        w2_h = w2_ref[h:h + 1, :]
        acc = acc + w2_h * jnp.maximum(x * w1_h + b1_h, 0.0)
    o_ref[...] = (acc + b2_ref[0:1, :]).astype(o_ref.dtype)


def static_nonlin(u_lin, w1, b1, w2, b2, *, block_rows=2048):
    """u_lin: (..., 2). Returns (..., 2), matching the PyTorch StaticNonLin forward.

    w1, b1, w2: (2, HIDDEN); b2: (2, 1) — row 0 = net_1 params, row 1 = net_2 params.
    block_rows: rows of 256 interleaved lanes per grid step (multiple of 8).
    """
    orig_shape = u_lin.shape
    orig_dtype = u_lin.dtype
    x_flat = u_lin.astype(jnp.float32).reshape(-1)   # interleaved ch0/ch1 (free reshape)
    n2 = x_flat.shape[0]                             # = N * 2

    n_rows = pl.cdiv(n2, WIDTH)
    pad = n_rows * WIDTH - n2
    if pad:
        # Only pad the ragged tail up to one 256-lane row (no block-level padding).
        x_flat = jnp.pad(x_flat, (0, pad))
    x2d = x_flat.reshape(n_rows, WIDTH)               # free reshape (contiguous)

    # Block sizing: multiple of 8 sublanes; ensure >=2 grid blocks on larger
    # inputs so the "parallel" axis feeds both TensorCores on v7x.
    block_rows = max(8, (int(block_rows) // 8) * 8)
    if n_rows >= 16:
        half = (((n_rows + 1) // 2) + 7) // 8 * 8
        block_rows = min(block_rows, half)
    block_rows = min(block_rows, ((n_rows + 7) // 8) * 8)

    grid = (pl.cdiv(n_rows, block_rows),)

    # Per-lane parameter vectors: lane l carries channel (l % 2)'s parameters.
    w1v = jnp.tile(w1.astype(jnp.float32).T, (1, LANES))   # (HIDDEN, 256)
    b1v = jnp.tile(b1.astype(jnp.float32).T, (1, LANES))   # (HIDDEN, 256)
    w2v = jnp.tile(w2.astype(jnp.float32).T, (1, LANES))   # (HIDDEN, 256)
    b2v = jnp.tile(b2.astype(jnp.float32).T, (1, LANES))   # (1, 256)

    data_spec = pl.BlockSpec((block_rows, WIDTH), lambda i: (i, 0))
    param_spec_h = pl.BlockSpec((HIDDEN, WIDTH), lambda i: (0, 0))   # resident in VMEM
    param_spec_1 = pl.BlockSpec((1, WIDTH), lambda i: (0, 0))

    out = pl.pallas_call(
        _static_nonlin_kernel,
        out_shape=jax.ShapeDtypeStruct((n_rows, WIDTH), jnp.float32),
        grid=grid,
        in_specs=[data_spec, param_spec_h, param_spec_h, param_spec_h, param_spec_1],
        out_specs=data_spec,
        compiler_params=pltpu.CompilerParams(
            dimension_semantics=("parallel",)),
        cost_estimate=pl.CostEstimate(
            flops=100 * n_rows * WIDTH,          # ~5 VPU ops x 20 hidden units / element
            transcendentals=0,
            bytes_accessed=8 * n_rows * WIDTH),  # 4 B in + 4 B out per element (f32)
    )(x2d, w1v, b1v, w2v, b2v)

    y = out.reshape(-1)[:n2]
    return y.reshape(orig_shape).astype(orig_dtype)


def static_nonlin_ref(u_lin, w1, b1, w2, b2):
    """Pure-JAX reference matching the PyTorch forward semantics."""
    x = u_lin.astype(jnp.float32)
    h1 = jnp.maximum(x[..., 0:1] * w1[0][None, :] + b1[0], 0.0)
    y1 = jnp.sum(h1 * w2[0], axis=-1, keepdims=True) + b2[0]
    h2 = jnp.maximum(x[..., 1:2] * w1[1][None, :] + b1[1], 0.0)
    y2 = jnp.sum(h2 * w2[1], axis=-1, keepdims=True) + b2[1]
    return jnp.concatenate([y1, y2], axis=-1)


if __name__ == "__main__":
    key = jax.random.PRNGKey(0)
    k_x, k_x2, k_w1, k_b1, k_w2, k_b2 = jax.random.split(key, 6)

    # Deterministic synthetic parameters (PyTorch-style uniform(-1/sqrt(fan_in), +)):
    # net_i: Linear(1, 20) -> ReLU -> Linear(20, 1), stacked for i in {1, 2}.
    w1 = jax.random.uniform(k_w1, (2, HIDDEN), jnp.float32, -1.0, 1.0)        # fan_in=1
    b1 = jax.random.uniform(k_b1, (2, HIDDEN), jnp.float32, -1.0, 1.0)
    bound2 = 1.0 / jnp.sqrt(jnp.float32(HIDDEN))
    w2 = jax.random.uniform(k_w2, (2, HIDDEN), jnp.float32, -bound2, bound2)  # fan_in=20
    b2 = jax.random.uniform(k_b2, (2, 1), jnp.float32, -bound2, bound2)

    # Test 1: small shape consistent with the module: batch=2, seq=8, 2 channels.
    u_lin = jax.random.normal(k_x, (2, 8, 2), jnp.float32)
    y = jax.block_until_ready(static_nonlin(u_lin, w1, b1, w2, b2))
    y_ref = static_nonlin_ref(u_lin, w1, b1, w2, b2)
    assert y.shape == u_lin.shape, (y.shape, u_lin.shape)
    assert jnp.allclose(y, y_ref, atol=1e-5, rtol=1e-5), "mismatch vs reference (small)"

    # Test 2: non-aligned size with the default block: exercises the ragged
    # last block and the >=2-block (megacore) capping path.
    u_lin2 = jax.random.normal(k_x2, (3, 1500, 2), jnp.float32)
    y2 = jax.block_until_ready(static_nonlin(u_lin2, w1, b1, w2, b2))
    y2_ref = static_nonlin_ref(u_lin2, w1, b1, w2, b2)
    assert y2.shape == u_lin2.shape, (y2.shape, u_lin2.shape)
    assert jnp.allclose(y2, y2_ref, atol=1e-5, rtol=1e-5), "mismatch vs reference (default block)"

    # Test 3: user-supplied non-multiple-of-8 block (rounded down to 8) with a
    # multi-step grid and a ragged final block.
    y3 = jax.block_until_ready(static_nonlin(u_lin2, w1, b1, w2, b2, block_rows=12))
    assert jnp.allclose(y3, y2_ref, atol=1e-5, rtol=1e-5), "mismatch vs reference (tiled)"

    print("KERNEL_OK")
</pallas_src>

<mosaic_0001>
module attributes {stable_mosaic.version = 11 : i64} {
  func.func @_static_nonlin_kernel(%arg0: i32, %arg1: memref<8x256xf32, #tpu.memory_space<vmem>>, %arg2: memref<20x256xf32, #tpu.memory_space<vmem>>, %arg3: memref<20x256xf32, #tpu.memory_space<vmem>>, %arg4: memref<20x256xf32, #tpu.memory_space<vmem>>, %arg5: memref<1x256xf32, #tpu.memory_space<vmem>>, %arg6: memref<8x256xf32, #tpu.memory_space<vmem>>) attributes {dimension_semantics = [#tpu.dimension_semantics<parallel>], iteration_bounds = array<i64: 1>, scalar_prefetch = 0 : i64, scratch_operands = 0 : i64, tpu.core_type = #tpu.core_type<tc>, window_params = [{transform_indices = @transform_0, window_bounds = array<i64: 8, 256>}, {pipeline_mode = #tpu.pipeline_mode<synchronous>, transform_indices = @transform_1, window_bounds = array<i64: 20, 256>}, {pipeline_mode = #tpu.pipeline_mode<synchronous>, transform_indices = @transform_2, window_bounds = array<i64: 20, 256>}, {pipeline_mode = #tpu.pipeline_mode<synchronous>, transform_indices = @transform_3, window_bounds = array<i64: 20, 256>}, {pipeline_mode = #tpu.pipeline_mode<synchronous>, transform_indices = @transform_4, window_bounds = array<i64: 1, 256>}, {transform_indices = @transform_5, window_bounds = array<i64: 8, 256>}]} {
    %c0 = arith.constant 0 : index
    %c0_0 = arith.constant 0 : index
    %0 = vector.load %arg1[%c0, %c0_0] : memref<8x256xf32, #tpu.memory_space<vmem>>, vector<8x256xf32>
    %cst = arith.constant 0.000000e+00 : f32
    %1 = vector.broadcast %cst : f32 to vector<8x256xf32>
    %c0_1 = arith.constant 0 : index
    %c0_2 = arith.constant 0 : index
    %2 = vector.load %arg2[%c0_1, %c0_2] : memref<20x256xf32, #tpu.memory_space<vmem>>, vector<1x256xf32>
    %c0_3 = arith.constant 0 : index
    %c0_4 = arith.constant 0 : index
    %3 = vector.load %arg3[%c0_3, %c0_4] : memref<20x256xf32, #tpu.memory_space<vmem>>, vector<1x256xf32>
    %c0_5 = arith.constant 0 : index
    %c0_6 = arith.constant 0 : index
    %4 = vector.load %arg4[%c0_5, %c0_6] : memref<20x256xf32, #tpu.memory_space<vmem>>, vector<1x256xf32>
    %5 = vector.broadcast %2 : vector<1x256xf32> to vector<8x256xf32>
    %6 = arith.mulf %0, %5 : vector<8x256xf32>
    %7 = vector.broadcast %3 : vector<1x256xf32> to vector<8x256xf32>
    %8 = arith.addf %6, %7 : vector<8x256xf32>
    %cst_7 = arith.constant 0.000000e+00 : f32
    %9 = vector.broadcast %cst_7 : f32 to vector<8x256xf32>
    %10 = arith.maximumf %8, %9 : vector<8x256xf32>
    %11 = vector.broadcast %4 : vector<1x256xf32> to vector<8x256xf32>
    %12 = arith.mulf %11, %10 : vector<8x256xf32>
    %13 = arith.addf %1, %12 : vector<8x256xf32>
    %c1 = arith.constant 1 : index
    %c0_8 = arith.constant 0 : index
    %14 = vector.load %arg2[%c1, %c0_8] : memref<20x256xf32, #tpu.memory_space<vmem>>, vector<1x256xf32>
    %c1_9 = arith.constant 1 : index
    %c0_10 = arith.constant 0 : index
    %15 = vector.load %arg3[%c1_9, %c0_10] : memref<20x256xf32, #tpu.memory_space<vmem>>, vector<1x256xf32>
    %c1_11 = arith.constant 1 : index
    %c0_12 = arith.constant 0 : index
    %16 = vector.load %arg4[%c1_11, %c0_12] : memref<20x256xf32, #tpu.memory_space<vmem>>, vector<1x256xf32>
    %17 = vector.broadcast %14 : vector<1x256xf32> to vector<8x256xf32>
    %18 = arith.mulf %0, %17 : vector<8x256xf32>
    %19 = vector.broadcast %15 : vector<1x256xf32> to vector<8x256xf32>
    %20 = arith.addf %18, %19 : vector<8x256xf32>
    %cst_13 = arith.constant 0.000000e+00 : f32
    %21 = vector.broadcast %cst_13 : f32 to vector<8x256xf32>
    %22 = arith.maximumf %20, %21 : vector<8x256xf32>
    %23 = vector.broadcast %16 : vector<1x256xf32> to vector<8x256xf32>
    %24 = arith.mulf %23, %22 : vector<8x256xf32>
    %25 = arith.addf %13, %24 : vector<8x256xf32>
    %c2 = arith.constant 2 : index
    %c0_14 = arith.constant 0 : index
    %26 = vector.load %arg2[%c2, %c0_14] : memref<20x256xf32, #tpu.memory_space<vmem>>, vector<1x256xf32>
    %c2_15 = arith.constant 2 : index
    %c0_16 = arith.constant 0 : index
    %27 = vector.load %arg3[%c2_15, %c0_16] : memref<20x256xf32, #tpu.memory_space<vmem>>, vector<1x256xf32>
    %c2_17 = arith.constant 2 : index
    %c0_18 = arith.constant 0 : index
    %28 = vector.load %arg4[%c2_17, %c0_18] : memref<20x256xf32, #tpu.memory_space<vmem>>, vector<1x256xf32>
    %29 = vector.broadcast %26 : vector<1x256xf32> to vector<8x256xf32>
    %30 = arith.mulf %0, %29 : vector<8x256xf32>
    %31 = vector.broadcast %27 : vector<1x256xf32> to vector<8x256xf32>
    %32 = arith.addf %30, %31 : vector<8x256xf32>
    %cst_19 = arith.constant 0.000000e+00 : f32
    %33 = vector.broadcast %cst_19 : f32 to vector<8x256xf32>
    %34 = arith.maximumf %32, %33 : vector<8x256xf32>
    %35 = vector.broadcast %28 : vector<1x256xf32> to vector<8x256xf32>
    %36 = arith.mulf %35, %34 : vector<8x256xf32>
    %37 = arith.addf %25, %36 : vector<8x256xf32>
    %c3 = arith.constant 3 : index
    %c0_20 = arith.constant 0 : index
    %38 = vector.load %arg2[%c3, %c0_20] : memref<20x256xf32, #tpu.memory_space<vmem>>, vector<1x256xf32>
    %c3_21 = arith.constant 3 : index
    %c0_22 = arith.constant 0 : index
    %39 = vector.load %arg3[%c3_21, %c0_22] : memref<20x256xf32, #tpu.memory_space<vmem>>, vector<1x256xf32>
    %c3_23 = arith.constant 3 : index
    %c0_24 = arith.constant 0 : index
    %40 = vector.load %arg4[%c3_23, %c0_24] : memref<20x256xf32, #tpu.memory_space<vmem>>, vector<1x256xf32>
    %41 = vector.broadcast %38 : vector<1x256xf32> to vector<8x256xf32>
    %42 = arith.mulf %0, %41 : vector<8x256xf32>
    %43 = vector.broadcast %39 : vector<1x256xf32> to vector<8x256xf32>
    %44 = arith.addf %42, %43 : vector<8x256xf32>
    %cst_25 = arith.constant 0.000000e+00 : f32
    %45 = vector.broadcast %cst_25 : f32 to vector<8x256xf32>
    %46 = arith.maximumf %44, %45 : vector<8x256xf32>
    %47 = vector.broadcast %40 : vector<1x256xf32> to vector<8x256xf32>
    %48 = arith.mulf %47, %46 : vector<8x256xf32>
    %49 = arith.addf %37, %48 : vector<8x256xf32>
    %c4 = arith.constant 4 : index
    %c0_26 = arith.constant 0 : index
    %50 = vector.load %arg2[%c4, %c0_26] : memref<20x256xf32, #tpu.memory_space<vmem>>, vector<1x256xf32>
    %c4_27 = arith.constant 4 : index
    %c0_28 = arith.constant 0 : index
    %51 = vector.load %arg3[%c4_27, %c0_28] : memref<20x256xf32, #tpu.memory_space<vmem>>, vector<1x256xf32>
    %c4_29 = arith.constant 4 : index
    %c0_30 = arith.constant 0 : index
    %52 = vector.load %arg4[%c4_29, %c0_30] : memref<20x256xf32, #tpu.memory_space<vmem>>, vector<1x256xf32>
    %53 = vector.broadcast %50 : vector<1x256xf32> to vector<8x256xf32>
    %54 = arith.mulf %0, %53 : vector<8x256xf32>
    %55 = vector.broadcast %51 : vector<1x256xf32> to vector<8x256xf32>
    %56 = arith.addf %54, %55 : vector<8x256xf32>
    %cst_31 = arith.constant 0.000000e+00 : f32
    %57 = vector.broadcast %cst_31 : f32 to vector<8x256xf32>
    %58 = arith.maximumf %56, %57 : vector<8x256xf32>
    %59 = vector.broadcast %52 : vector<1x256xf32> to vector<8x256xf32>
    %60 = arith.mulf %59, %58 : vector<8x256xf32>
    %61 = arith.addf %49, %60 : vector<8x256xf32>
    %c5 = arith.constant 5 : index
    %c0_32 = arith.constant 0 : index
    %62 = vector.load %arg2[%c5, %c0_32] : memref<20x256xf32, #tpu.memory_space<vmem>>, vector<1x256xf32>
    %c5_33 = arith.constant 5 : index
    %c0_34 = arith.constant 0 : index
    %63 = vector.load %arg3[%c5_33, %c0_34] : memref<20x256xf32, #tpu.memory_space<vmem>>, vector<1x256xf32>
    %c5_35 = arith.constant 5 : index
    %c0_36 = arith.constant 0 : index
    %64 = vector.load %arg4[%c5_35, %c0_36] : memref<20x256xf32, #tpu.memory_space<vmem>>, vector<1x256xf32>
    %65 = vector.broadcast %62 : vector<1x256xf32> to vector<8x256xf32>
    %66 = arith.mulf %0, %65 : vector<8x256xf32>
    %67 = vector.broadcast %63 : vector<1x256xf32> to vector<8x256xf32>
    %68 = arith.addf %66, %67 : vector<8x256xf32>
    %cst_37 = arith.constant 0.000000e+00 : f32
    %69 = vector.broadcast %cst_37 : f32 to vector<8x256xf32>
    %70 = arith.maximumf %68, %69 : vector<8x256xf32>
    %71 = vector.broadcast %64 : vector<1x256xf32> to vector<8x256xf32>
    %72 = arith.mulf %71, %70 : vector<8x256xf32>
    %73 = arith.addf %61, %72 : vector<8x256xf32>
    %c6 = arith.constant 6 : index
    %c0_38 = arith.constant 0 : index
    %74 = vector.load %arg2[%c6, %c0_38] : memref<20x256xf32, #tpu.memory_space<vmem>>, vector<1x256xf32>
    %c6_39 = arith.constant 6 : index
    %c0_40 = arith.constant 0 : index
    %75 = vector.load %arg3[%c6_39, %c0_40] : memref<20x256xf32, #tpu.memory_space<vmem>>, vector<1x256xf32>
    %c6_41 = arith.constant 6 : index
    %c0_42 = arith.constant 0 : index
    %76 = vector.load %arg4[%c6_41, %c0_42] : memref<20x256xf32, #tpu.memory_space<vmem>>, vector<1x256xf32>
    %77 = vector.broadcast %74 : vector<1x256xf32> to vector<8x256xf32>
    %78 = arith.mulf %0, %77 : vector<8x256xf32>
    %79 = vector.broadcast %75 : vector<1x256xf32> to vector<8x256xf32>
    %80 = arith.addf %78, %79 : vector<8x256xf32>
    %cst_43 = arith.constant 0.000000e+00 : f32
    %81 = vector.broadcast %cst_43 : f32 to vector<8x256xf32>
    %82 = arith.maximumf %80, %81 : vector<8x256xf32>
    %83 = vector.broadcast %76 : vector<1x256xf32> to vector<8x256xf32>
    %84 = arith.mulf %83, %82 : vector<8x256xf32>
    %85 = arith.addf %73, %84 : vector<8x256xf32>
    %c7 = arith.constant 7 : index
    %c0_44 = arith.constant 0 : index
    %86 = vector.load %arg2[%c7, %c0_44] : memref<20x256xf32, #tpu.memory_space<vmem>>, vector<1x256xf32>
    %c7_45 = arith.constant 7 : index
    %c0_46 = arith.constant 0 : index
    %87 = vector.load %arg3[%c7_45, %c0_46] : memref<20x256xf32, #tpu.memory_space<vmem>>, vector<1x256xf32>
    %c7_47 = arith.constant 7 : index
    %c0_48 = arith.constant 0 : index
    %88 = vector.load %arg4[%c7_47, %c0_48] : memref<20x256xf32, #tpu.memory_space<vmem>>, vector<1x256xf32>
    %89 = vector.broadcast %86 : vector<1x256xf32> to vector<8x256xf32>
    %90 = arith.mulf %0, %89 : vector<8x256xf32>
    %91 = vector.broadcast %87 : vector<1x256xf32> to vector<8x256xf32>
    %92 = arith.addf %90, %91 : vector<8x256xf32>
    %cst_49 = arith.constant 0.000000e+00 : f32
    %93 = vector.broadcast %cst_49 : f32 to vector<8x256xf32>
    %94 = arith.maximumf %92, %93 : vector<8x256xf32>
    %95 = vector.broadcast %88 : vector<1x256xf32> to vector<8x256xf32>
    %96 = arith.mulf %95, %94 : vector<8x256xf32>
    %97 = arith.addf %85, %96 : vector<8x256xf32>
    %c8 = arith.constant 8 : index
    %c0_50 = arith.constant 0 : index
    %98 = vector.load %arg2[%c8, %c0_50] : memref<20x256xf32, #tpu.memory_space<vmem>>, vector<1x256xf32>
    %c8_51 = arith.constant 8 : index
    %c0_52 = arith.constant 0 : index
    %99 = vector.load %arg3[%c8_51, %c0_52] : memref<20x256xf32, #tpu.memory_space<vmem>>, vector<1x256xf32>
    %c8_53 = arith.constant 8 : index
    %c0_54 = arith.constant 0 : index
    %100 = vector.load %arg4[%c8_53, %c0_54] : memref<20x256xf32, #tpu.memory_space<vmem>>, vector<1x256xf32>
    %101 = vector.broadcast %98 : vector<1x256xf32> to vector<8x256xf32>
    %102 = arith.mulf %0, %101 : vector<8x256xf32>
    %103 = vector.broadcast %99 : vector<1x256xf32> to vector<8x256xf32>
    %104 = arith.addf %102, %103 : vector<8x256xf32>
    %cst_55 = arith.constant 0.000000e+00 : f32
    %105 = vector.broadcast %cst_55 : f32 to vector<8x256xf32>
    %106 = arith.maximumf %104, %105 : vector<8x256xf32>
    %107 = vector.broadcast %100 : vector<1x256xf32> to vector<8x256xf32>
    %108 = arith.mulf %107, %106 : vector<8x256xf32>
    %109 = arith.addf %97, %108 : vector<8x256xf32>
    %c9 = arith.constant 9 : index
    %c0_56 = arith.constant 0 : index
    %110 = vector.load %arg2[%c9, %c0_56] : memref<20x256xf32, #tpu.memory_space<vmem>>, vector<1x256xf32>
    %c9_57 = arith.constant 9 : index
    %c0_58 = arith.constant 0 : index
    %111 = vector.load %arg3[%c9_57, %c0_58] : memref<20x256xf32, #tpu.memory_space<vmem>>, vector<1x256xf32>
    %c9_59 = arith.constant 9 : index
    %c0_60 = arith.constant 0 : index
    %112 = vector.load %arg4[%c9_59, %c0_60] : memref<20x256xf32, #tpu.memory_space<vmem>>, vector<1x256xf32>
    %113 = vector.broadcast %110 : vector<1x256xf32> to vector<8x256xf32>
    %114 = arith.mulf %0, %113 : vector<8x256xf32>
    %115 = vector.broadcast %111 : vector<1x256xf32> to vector<8x256xf32>
    %116 = arith.addf %114, %115 : vector<8x256xf32>
    %cst_61 = arith.constant 0.000000e+00 : f32
    %117 = vector.broadcast %cst_61 : f32 to vector<8x256xf32>
    %118 = arith.maximumf %116, %117 : vector<8x256xf32>
    %119 = vector.broadcast %112 : vector<1x256xf32> to vector<8x256xf32>
    %120 = arith.mulf %119, %118 : vector<8x256xf32>
    %121 = arith.addf %109, %120 : vector<8x256xf32>
    %c10 = arith.constant 10 : index
    %c0_62 = arith.constant 0 : index
    %122 = vector.load %arg2[%c10, %c0_62] : memref<20x256xf32, #tpu.memory_space<vmem>>, vector<1x256xf32>
    %c10_63 = arith.constant 10 : index
    %c0_64 = arith.constant 0 : index
    %123 = vector.load %arg3[%c10_63, %c0_64] : memref<20x256xf32, #tpu.memory_space<vmem>>, vector<1x256xf32>
    %c10_65 = arith.constant 10 : index
    %c0_66 = arith.constant 0 : index
    %124 = vector.load %arg4[%c10_65, %c0_66] : memref<20x256xf32, #tpu.memory_space<vmem>>, vector<1x256xf32>
    %125 = vector.broadcast %122 : vector<1x256xf32> to vector<8x256xf32>
    %126 = arith.mulf %0, %125 : vector<8x256xf32>
    %127 = vector.broadcast %123 : vector<1x256xf32> to vector<8x256xf32>
    %128 = arith.addf %126, %127 : vector<8x256xf32>
    %cst_67 = arith.constant 0.000000e+00 : f32
    %129 = vector.broadcast %cst_67 : f32 to vector<8x256xf32>
    %130 = arith.maximumf %128, %129 : vector<8x256xf32>
    %131 = vector.broadcast %124 : vector<1x256xf32> to vector<8x256xf32>
    %132 = arith.mulf %131, %130 : vector<8x256xf32>
    %133 = arith.addf %121, %132 : vector<8x256xf32>
    %c11 = arith.constant 11 : index
    %c0_68 = arith.constant 0 : index
    %134 = vector.load %arg2[%c11, %c0_68] : memref<20x256xf32, #tpu.memory_space<vmem>>, vector<1x256xf32>
    %c11_69 = arith.constant 11 : index
    %c0_70 = arith.constant 0 : index
    %135 = vector.load %arg3[%c11_69, %c0_70] : memref<20x256xf32, #tpu.memory_space<vmem>>, vector<1x256xf32>
    %c11_71 = arith.constant 11 : index
    %c0_72 = arith.constant 0 : index
    %136 = vector.load %arg4[%c11_71, %c0_72] : memref<20x256xf32, #tpu.memory_space<vmem>>, vector<1x256xf32>
    %137 = vector.broadcast %134 : vector<1x256xf32> to vector<8x256xf32>
    %138 = arith.mulf %0, %137 : vector<8x256xf32>
    %139 = vector.broadcast %135 : vector<1x256xf32> to vector<8x256xf32>
    %140 = arith.addf %138, %139 : vector<8x256xf32>
    %cst_73 = arith.constant 0.000000e+00 : f32
    %141 = vector.broadcast %cst_73 : f32 to vector<8x256xf32>
    %142 = arith.maximumf %140, %141 : vector<8x256xf32>
    %143 = vector.broadcast %136 : vector<1x256xf32> to vector<8x256xf32>
    %144 = arith.mulf %143, %142 : vector<8x256xf32>
    %145 = arith.addf %133, %144 : vector<8x256xf32>
    %c12 = arith.constant 12 : index
    %c0_74 = arith.constant 0 : index
    %146 = vector.load %arg2[%c12, %c0_74] : memref<20x256xf32, #tpu.memory_space<vmem>>, vector<1x256xf32>
    %c12_75 = arith.constant 12 : index
    %c0_76 = arith.constant 0 : index
    %147 = vector.load %arg3[%c12_75, %c0_76] : memref<20x256xf32, #tpu.memory_space<vmem>>, vector<1x256xf32>
    %c12_77 = arith.constant 12 : index
    %c0_78 = arith.constant 0 : index
    %148 = vector.load %arg4[%c12_77, %c0_78] : memref<20x256xf32, #tpu.memory_space<vmem>>, vector<1x256xf32>
    %149 = vector.broadcast %146 : vector<1x256xf32> to vector<8x256xf32>
    %150 = arith.mulf %0, %149 : vector<8x256xf32>
    %151 = vector.broadcast %147 : vector<1x256xf32> to vector<8x256xf32>
    %152 = arith.addf %150, %151 : vector<8x256xf32>
    %cst_79 = arith.constant 0.000000e+00 : f32
    %153 = vector.broadcast %cst_79 : f32 to vector<8x256xf32>
    %154 = arith.maximumf %152, %153 : vector<8x256xf32>
    %155 = vector.broadcast %148 : vector<1x256xf32> to vector<8x256xf32>
    %156 = arith.mulf %155, %154 : vector<8x256xf32>
    %157 = arith.addf %145, %156 : vector<8x256xf32>
    %c13 = arith.constant 13 : index
    %c0_80 = arith.constant 0 : index
    %158 = vector.load %arg2[%c13, %c0_80] : memref<20x256xf32, #tpu.memory_space<vmem>>, vector<1x256xf32>
    %c13_81 = arith.constant 13 : index
    %c0_82 = arith.constant 0 : index
    %159 = vector.load %arg3[%c13_81, %c0_82] : memref<20x256xf32, #tpu.memory_space<vmem>>, vector<1x256xf32>
    %c13_83 = arith.constant 13 : index
    %c0_84 = arith.constant 0 : index
    %160 = vector.load %arg4[%c13_83, %c0_84] : memref<20x256xf32, #tpu.memory_space<vmem>>, vector<1x256xf32>
    %161 = vector.broadcast %158 : vector<1x256xf32> to vector<8x256xf32>
    %162 = arith.mulf %0, %161 : vector<8x256xf32>
    %163 = vector.broadcast %159 : vector<1x256xf32> to vector<8x256xf32>
    %164 = arith.addf %162, %163 : vector<8x256xf32>
    %cst_85 = arith.constant 0.000000e+00 : f32
    %165 = vector.broadcast %cst_85 : f32 to vector<8x256xf32>
    %166 = arith.maximumf %164, %165 : vector<8x256xf32>
    %167 = vector.broadcast %160 : vector<1x256xf32> to vector<8x256xf32>
    %168 = arith.mulf %167, %166 : vector<8x256xf32>
    %169 = arith.addf %157, %168 : vector<8x256xf32>
    %c14 = arith.constant 14 : index
    %c0_86 = arith.constant 0 : index
    %170 = vector.load %arg2[%c14, %c0_86] : memref<20x256xf32, #tpu.memory_space<vmem>>, vector<1x256xf32>
    %c14_87 = arith.constant 14 : index
    %c0_88 = arith.constant 0 : index
    %171 = vector.load %arg3[%c14_87, %c0_88] : memref<20x256xf32, #tpu.memory_space<vmem>>, vector<1x256xf32>
    %c14_89 = arith.constant 14 : index
    %c0_90 = arith.constant 0 : index
    %172 = vector.load %arg4[%c14_89, %c0_90] : memref<20x256xf32, #tpu.memory_space<vmem>>, vector<1x256xf32>
    %173 = vector.broadcast %170 : vector<1x256xf32> to vector<8x256xf32>
    %174 = arith.mulf %0, %173 : vector<8x256xf32>
    %175 = vector.broadcast %171 : vector<1x256xf32> to vector<8x256xf32>
    %176 = arith.addf %174, %175 : vector<8x256xf32>
    %cst_91 = arith.constant 0.000000e+00 : f32
    %177 = vector.broadcast %cst_91 : f32 to vector<8x256xf32>
    %178 = arith.maximumf %176, %177 : vector<8x256xf32>
    %179 = vector.broadcast %172 : vector<1x256xf32> to vector<8x256xf32>
    %180 = arith.mulf %179, %178 : vector<8x256xf32>
    %181 = arith.addf %169, %180 : vector<8x256xf32>
    %c15 = arith.constant 15 : index
    %c0_92 = arith.constant 0 : index
    %182 = vector.load %arg2[%c15, %c0_92] : memref<20x256xf32, #tpu.memory_space<vmem>>, vector<1x256xf32>
    %c15_93 = arith.constant 15 : index
    %c0_94 = arith.constant 0 : index
    %183 = vector.load %arg3[%c15_93, %c0_94] : memref<20x256xf32, #tpu.memory_space<vmem>>, vector<1x256xf32>
    %c15_95 = arith.constant 15 : index
    %c0_96 = arith.constant 0 : index
    %184 = vector.load %arg4[%c15_95, %c0_96] : memref<20x256xf32, #tpu.memory_space<vmem>>, vector<1x256xf32>
    %185 = vector.broadcast %182 : vector<1x256xf32> to vector<8x256xf32>
    %186 = arith.mulf %0, %185 : vector<8x256xf32>
    %187 = vector.broadcast %183 : vector<1x256xf32> to vector<8x256xf32>
    %188 = arith.addf %186, %187 : vector<8x256xf32>
    %cst_97 = arith.constant 0.000000e+00 : f32
    %189 = vector.broadcast %cst_97 : f32 to vector<8x256xf32>
    %190 = arith.maximumf %188, %189 : vector<8x256xf32>
    %191 = vector.broadcast %184 : vector<1x256xf32> to vector<8x256xf32>
    %192 = arith.mulf %191, %190 : vector<8x256xf32>
    %193 = arith.addf %181, %192 : vector<8x256xf32>
    %c16 = arith.constant 16 : index
    %c0_98 = arith.constant 0 : index
    %194 = vector.load %arg2[%c16, %c0_98] : memref<20x256xf32, #tpu.memory_space<vmem>>, vector<1x256xf32>
    %c16_99 = arith.constant 16 : index
    %c0_100 = arith.constant 0 : index
    %195 = vector.load %arg3[%c16_99, %c0_100] : memref<20x256xf32, #tpu.memory_space<vmem>>, vector<1x256xf32>
    %c16_101 = arith.constant 16 : index
    %c0_102 = arith.constant 0 : index
    %196 = vector.load %arg4[%c16_101, %c0_102] : memref<20x256xf32, #tpu.memory_space<vmem>>, vector<1x256xf32>
    %197 = vector.broadcast %194 : vector<1x256xf32> to vector<8x256xf32>
    %198 = arith.mulf %0, %197 : vector<8x256xf32>
    %199 = vector.broadcast %195 : vector<1x256xf32> to vector<8x256xf32>
    %200 = arith.addf %198, %199 : vector<8x256xf32>
    %cst_103 = arith.constant 0.000000e+00 : f32
    %201 = vector.broadcast %cst_103 : f32 to vector<8x256xf32>
    %202 = arith.maximumf %200, %201 : vector<8x256xf32>
    %203 = vector.broadcast %196 : vector<1x256xf32> to vector<8x256xf32>
    %204 = arith.mulf %203, %202 : vector<8x256xf32>
    %205 = arith.addf %193, %204 : vector<8x256xf32>
    %c17 = arith.constant 17 : index
    %c0_104 = arith.constant 0 : index
    %206 = vector.load %arg2[%c17, %c0_104] : memref<20x256xf32, #tpu.memory_space<vmem>>, vector<1x256xf32>
    %c17_105 = arith.constant 17 : index
    %c0_106 = arith.constant 0 : index
    %207 = vector.load %arg3[%c17_105, %c0_106] : memref<20x256xf32, #tpu.memory_space<vmem>>, vector<1x256xf32>
    %c17_107 = arith.constant 17 : index
    %c0_108 = arith.constant 0 : index
    %208 = vector.load %arg4[%c17_107, %c0_108] : memref<20x256xf32, #tpu.memory_space<vmem>>, vector<1x256xf32>
    %209 = vector.broadcast %206 : vector<1x256xf32> to vector<8x256xf32>
    %210 = arith.mulf %0, %209 : vector<8x256xf32>
    %211 = vector.broadcast %207 : vector<1x256xf32> to vector<8x256xf32>
    %212 = arith.addf %210, %211 : vector<8x256xf32>
    %cst_109 = arith.constant 0.000000e+00 : f32
    %213 = vector.broadcast %cst_109 : f32 to vector<8x256xf32>
    %214 = arith.maximumf %212, %213 : vector<8x256xf32>
    %215 = vector.broadcast %208 : vector<1x256xf32> to vector<8x256xf32>
    %216 = arith.mulf %215, %214 : vector<8x256xf32>
    %217 = arith.addf %205, %216 : vector<8x256xf32>
    %c18 = arith.constant 18 : index
    %c0_110 = arith.constant 0 : index
    %218 = vector.load %arg2[%c18, %c0_110] : memref<20x256xf32, #tpu.memory_space<vmem>>, vector<1x256xf32>
    %c18_111 = arith.constant 18 : index
    %c0_112 = arith.constant 0 : index
    %219 = vector.load %arg3[%c18_111, %c0_112] : memref<20x256xf32, #tpu.memory_space<vmem>>, vector<1x256xf32>
    %c18_113 = arith.constant 18 : index
    %c0_114 = arith.constant 0 : index
    %220 = vector.load %arg4[%c18_113, %c0_114] : memref<20x256xf32, #tpu.memory_space<vmem>>, vector<1x256xf32>
    %221 = vector.broadcast %218 : vector<1x256xf32> to vector<8x256xf32>
    %222 = arith.mulf %0, %221 : vector<8x256xf32>
    %223 = vector.broadcast %219 : vector<1x256xf32> to vector<8x256xf32>
    %224 = arith.addf %222, %223 : vector<8x256xf32>
    %cst_115 = arith.constant 0.000000e+00 : f32
    %225 = vector.broadcast %cst_115 : f32 to vector<8x256xf32>
    %226 = arith.maximumf %224, %225 : vector<8x256xf32>
    %227 = vector.broadcast %220 : vector<1x256xf32> to vector<8x256xf32>
    %228 = arith.mulf %227, %226 : vector<8x256xf32>
    %229 = arith.addf %217, %228 : vector<8x256xf32>
    %c19 = arith.constant 19 : index
    %c0_116 = arith.constant 0 : index
    %230 = vector.load %arg2[%c19, %c0_116] : memref<20x256xf32, #tpu.memory_space<vmem>>, vector<1x256xf32>
    %c19_117 = arith.constant 19 : index
    %c0_118 = arith.constant 0 : index
    %231 = vector.load %arg3[%c19_117, %c0_118] : memref<20x256xf32, #tpu.memory_space<vmem>>, vector<1x256xf32>
    %c19_119 = arith.constant 19 : index
    %c0_120 = arith.constant 0 : index
    %232 = vector.load %arg4[%c19_119, %c0_120] : memref<20x256xf32, #tpu.memory_space<vmem>>, vector<1x256xf32>
    %233 = vector.broadcast %230 : vector<1x256xf32> to vector<8x256xf32>
    %234 = arith.mulf %0, %233 : vector<8x256xf32>
    %235 = vector.broadcast %231 : vector<1x256xf32> to vector<8x256xf32>
    %236 = arith.addf %234, %235 : vector<8x256xf32>
    %cst_121 = arith.constant 0.000000e+00 : f32
    %237 = vector.broadcast %cst_121 : f32 to vector<8x256xf32>
    %238 = arith.maximumf %236, %237 : vector<8x256xf32>
    %239 = vector.broadcast %232 : vector<1x256xf32> to vector<8x256xf32>
    %240 = arith.mulf %239, %238 : vector<8x256xf32>
    %241 = arith.addf %229, %240 : vector<8x256xf32>
    %c0_122 = arith.constant 0 : index
    %c0_123 = arith.constant 0 : index
    %242 = vector.load %arg5[%c0_122, %c0_123] : memref<1x256xf32, #tpu.memory_space<vmem>>, vector<1x256xf32>
    %243 = vector.broadcast %242 : vector<1x256xf32> to vector<8x256xf32>
    %244 = arith.addf %241, %243 : vector<8x256xf32>
    %c0_124 = arith.constant 0 : index
    %c0_125 = arith.constant 0 : index
    %245 = vector.load %arg6[%c0_124, %c0_125] : memref<8x256xf32, #tpu.memory_space<vmem>>, vector<8x256xf32>
    tpu.vector_store %arg6[%c0_124, %c0_125], %244 {strides = array<i32>} : memref<8x256xf32, #tpu.memory_space<vmem>>, vector<8x256xf32>,
    return
  }
  func.func @transform_0(%arg0: i32) -> (i32, i32) {
    %c0_i32 = arith.constant 0 : i32
    %c0_i32_0 = arith.constant 0 : i32
    return %arg0, %c0_i32 : i32, i32
  }
  func.func @transform_1(%arg0: i32) -> (i32, i32) {
    %c0_i32 = arith.constant 0 : i32
    %c0_i32_0 = arith.constant 0 : i32
    %c0_i32_1 = arith.constant 0 : i32
    return %c0_i32, %c0_i32_0 : i32, i32
  }
  func.func @transform_2(%arg0: i32) -> (i32, i32) {
    %c0_i32 = arith.constant 0 : i32
    %c0_i32_0 = arith.constant 0 : i32
    %c0_i32_1 = arith.constant 0 : i32
    return %c0_i32, %c0_i32_0 : i32, i32
  }
  func.func @transform_3(%arg0: i32) -> (i32, i32) {
    %c0_i32 = arith.constant 0 : i32
    %c0_i32_0 = arith.constant 0 : i32
    %c0_i32_1 = arith.constant 0 : i32
    return %c0_i32, %c0_i32_0 : i32, i32
  }
  func.func @transform_4(%arg0: i32) -> (i32, i32) {
    %c0_i32 = arith.constant 0 : i32
    %c0_i32_0 = arith.constant 0 : i32
    %c0_i32_1 = arith.constant 0 : i32
    return %c0_i32, %c0_i32_0 : i32, i32
  }
  func.func @transform_5(%arg0: i32) -> (i32, i32) {
    %c0_i32 = arith.constant 0 : i32
    %c0_i32_0 = arith.constant 0 : i32
    return %arg0, %c0_i32 : i32, i32
  }
}

</mosaic_0001>

<llo_original>
// kernel: tpu_custom_call.1
$region0: #{tpu_custom_call.1}
  #allocation0 [shape = 'u32[]', space=smem, size = 0x4, offset = 0x4, fixed_abs, tag = 'smem constant byte address 0x4 - core index']
  #allocation1 [shape = 'u32[144,128]{1,0:T(1,128)}', space=vmem, size = 0x12000, scoped, tag = 'internal scratch']
  %s0 = inlined_call_operand.hbm [shape: f32[1,256], index: 0, kind: input, shape index: {}]
  %s1 = inlined_call_operand.hbm [shape: f32[20,256], index: 1, kind: input, shape index: {}]
  %s2 = inlined_call_operand.hbm [shape: f32[20,256], index: 2, kind: input, shape index: {}]
  %s3 = inlined_call_operand.hbm [shape: f32[20,256], index: 3, kind: input, shape index: {}]
  %s4 = inlined_call_operand.vmem [shape: f32[1,256], index: 4, kind: input, shape index: {}]
  %s5 = inlined_call_operand.hbm [shape: f32[1,256], index: 5, kind: output, shape index: {}]
  %s6 = sld [smem:[#allocation0]]
  $region46: #{tpu_custom_call.1} parent=0
    _
  %s8 = ssub.s32 1, %s6
  %s9 = scalar_select 0, %s8, %s6
  $region1: #{tpu_custom_call.1} parent=0
    #allocation2 [shape = 'u8[8192]{0}', space=vmem, size = 0x2000, scoped, tag = 'input window, operand 0, single buffered']
    #allocation3 [shape = 's32[1]{0}', space=sflag, size = 0x4, scoped, tag = 'scoped memory for tpu_custom_call.1']
    #allocation4 [shape = 's32[1]{0}', space=sflag, size = 0x4, scoped, tag = 'scoped memory for tpu_custom_call.1']
    #allocation5 [shape = 'u8[24576]{0}', space=vmem, size = 0x6000, scoped, tag = 'input window, operand 1, single buffered']
    #allocation6 [shape = 's32[1]{0}', space=sflag, size = 0x4, scoped, tag = 'scoped memory for tpu_custom_call.1']
    #allocation7 [shape = 'u8[24576]{0}', space=vmem, size = 0x6000, scoped, tag = 'input window, operand 2, single buffered']
    #allocation8 [shape = 'u8[24576]{0}', space=vmem, size = 0x6000, scoped, tag = 'input window, operand 3, single buffered']
    #allocation9 [shape = 's32[1]{0}', space=sflag, size = 0x4, scoped, tag = 'scoped memory for tpu_custom_call.1']
    #allocation10 [shape = 'u8[8192]{0}', space=vmem, size = 0x2000, scoped, tag = 'output window, operand 0, single buffered']
    %10 = vsyncpa [#allocation3], 0
    %11 = vsyncpa [#allocation6], 0
    %12 = vsyncpa [#allocation9], 0
    %13 = vsyncpa [#allocation4], 0
    // Predicated region
    $region2: #{tpu_custom_call.1} parent=1 // pred_check
      _
    $region3: #{tpu_custom_call.1} parent=1 // pred_check_branch
      %15 = sbr.rel (0) target = $region5
    $region4: #{tpu_custom_call.1} parent=1 // pred_region
      %s17 = ssub.s32 256, 32
      %18 = vsyncadd [#allocation3], %s17
      %s19 = sshll.u32 [#allocation2], 4
      %s20 = int_to_ptr.vmem [resolvable:$true] %s19
      %25 = dma.hbm_to_vmem [thread:$0]  %s0, 32, %s20, [#allocation3], 32, 32, 2
    $region5: #{tpu_custom_call.1} parent=1 // pred_fallthru
      _
    // Predicated region
    $region6: #{tpu_custom_call.1} parent=1 // pred_check
      _
    $region7: #{tpu_custom_call.1} parent=1 // pred_check_branch
      %27 = sbr.rel (0) target = $region9
    $region8: #{tpu_custom_call.1} parent=1 // pred_region
      %s29 = ssub.s32 768, 768
      %30 = vsyncadd [#allocation6], %s29
      %s31 = sshll.u32 [#allocation5], 4
      %s32 = int_to_ptr.vmem [resolvable:$true] %s31
      %37 = dma.hbm_to_vmem [thread:$0]  %s1, 768, %s32, [#allocation6], 256, 256, 16
    $region9: #{tpu_custom_call.1} parent=1 // pred_fallthru
      _
    // Predicated region
    $region10: #{tpu_custom_call.1} parent=1 // pred_check
      _
    $region11: #{tpu_custom_call.1} parent=1 // pred_check_branch
      %39 = sbr.rel (0) target = $region13
    $region12: #{tpu_custom_call.1} parent=1 // pred_region
      %s41 = ssub.s32 768, 768
      %42 = vsyncadd [#allocation6], %s41
      %s43 = sshll.u32 [#allocation7], 4
      %s44 = int_to_ptr.vmem [resolvable:$true] %s43
      %49 = dma.hbm_to_vmem [thread:$0]  %s2, 768, %s44, [#allocation6], 256, 256, 16
    $region13: #{tpu_custom_call.1} parent=1 // pred_fallthru
      _
    // Predicated region
    $region14: #{tpu_custom_call.1} parent=1 // pred_check
      _
    $region15: #{tpu_custom_call.1} parent=1 // pred_check_branch
      %51 = sbr.rel (0) target = $region17
    $region16: #{tpu_custom_call.1} parent=1 // pred_region
      %s53 = ssub.s32 768, 768
      %54 = vsyncadd [#allocation9], %s53
      %s55 = sshll.u32 [#allocation8], 4
      %s56 = int_to_ptr.vmem [resolvable:$true] %s55
      %61 = dma.hbm_to_vmem [thread:$0]  %s3, 768, %s56, [#allocation9], 256, 256, 16
    $region17: #{tpu_custom_call.1} parent=1 // pred_fallthru
      _
    // Predicated region
    $region18: #{tpu_custom_call.1} parent=1 // pred_check
      _
    $region19: #{tpu_custom_call.1} parent=1 // pred_check_branch
      %63 = sbr.rel (0) target = $region21
    $region20: #{tpu_custom_call.1} parent=1 // pred_region
      _
    $region21: #{tpu_custom_call.1} parent=1 // pred_fallthru
      _
    // Predicated region
    $region22: #{tpu_custom_call.1} parent=1 // pred_check
      _
    $region23: #{tpu_custom_call.1} parent=1 // pred_check_branch
      %65 = sbr.rel (0) target = $region25
    $region24: #{tpu_custom_call.1} parent=1 // pred_region
      %66 = dma.done [#allocation3], 256
    $region25: #{tpu_custom_call.1} parent=1 // pred_fallthru
      _
    // Predicated region
    $region26: #{tpu_custom_call.1} parent=1 // pred_check
      _
    $region27: #{tpu_custom_call.1} parent=1 // pred_check_branch
      %68 = sbr.rel (0) target = $region29
    $region28: #{tpu_custom_call.1} parent=1 // pred_region
      %69 = dma.done [#allocation6], 768
    $region29: #{tpu_custom_call.1} parent=1 // pred_fallthru
      _
    // Predicated region
    $region30: #{tpu_custom_call.1} parent=1 // pred_check
      _
    $region31: #{tpu_custom_call.1} parent=1 // pred_check_branch
      %71 = sbr.rel (0) target = $region33
    $region32: #{tpu_custom_call.1} parent=1 // pred_region
      %72 = dma.done [#allocation6], 768
    $region33: #{tpu_custom_call.1} parent=1 // pred_fallthru
      _
    // Predicated region
    $region34: #{tpu_custom_call.1} parent=1 // pred_check
      _
    $region35: #{tpu_custom_call.1} parent=1 // pred_check_branch
      %74 = sbr.rel (0) target = $region37
    $region36: #{tpu_custom_call.1} parent=1 // pred_region
      %75 = dma.done [#allocation9], 768
    $region37: #{tpu_custom_call.1} parent=1 // pred_fallthru
      _
    %v76 = vld [vmem:[#allocation2] sm:$0x3]
    %v77 = vld [vmem:[#allocation2 + $0x2] sm:$0x3]
    %v78 = vld [vmem:[#allocation2 + $0x4] sm:$0x3]
    %v79 = vld [vmem:[#allocation2 + $0x6] sm:$0x3]
    %v80 = vld [vmem:[#allocation2 + $0x8] sm:$0x3]
    %v81 = vld [vmem:[#allocation2 + $0xa] sm:$0x3]
    %v82 = vld [vmem:[#allocation2 + $0xc] sm:$0x3]
    %v83 = vld [vmem:[#allocation2 + $0xe] sm:$0x3]
    %v84 = vld [vmem:[#allocation5] ss:$8 sm:$0x3]
    %v85 = vld [vmem:[#allocation7] ss:$8 sm:$0x3]
    %v86 = vld [vmem:[#allocation8] ss:$8 sm:$0x3]
    %v88 = vlaneseq
    %v89 = vshrl.u32 %v88, 7
    %v90 = vsub.s32 0, %v89
    %v91 = vrot.slane %v84, %v90
    %v92 = vlaneseq
    %v93 = vshrl.u32 %v92, 7
    %v94 = vsub.s32 1, %v93
    %v95 = vrot.slane %v84, %v94
    %v96 = vcombine.low %v91, %v95
    %v97 = vcombine.high %v91, %v95
    %v99 = vunpack.c.l.s4 1966171168
    %v100 = vunpack.c.0.s8 %v99
    %v101 = vlaneseq
    %v102 = vshrl.u32 %v101, 7
    %v103 = vsub.s32 %v100, %v102
    %v104 = vrot.slane %v96, %v103
    %v106 = vunpack.c.l.s4 1966171168
    %v107 = vunpack.c.0.s8 %v106
    %v108 = vlaneseq
    %v109 = vshrl.u32 %v108, 7
    %v110 = vsub.s32 %v107, %v109
    %v111 = vrot.slane %v97, %v110
    %v112 = vcombine.high %v104, %v104
    %v113 = vcombine.high %v111, %v111
    %v115 = vunpack.c.l.s4 1966171168
    %v116 = vunpack.c.0.s8 %v115
    %v117 = vlaneseq
    %v118 = vshrl.u32 %v117, 7
    %v119 = vsub.s32 %v116, %v118
    %v120 = vrot.slane %v104, %v119
    %v122 = vunpack.c.l.s4 1966171168
    %v123 = vunpack.c.0.s8 %v122
    %v124 = vlaneseq
    %v125 = vshrl.u32 %v124, 7
    %v126 = vsub.s32 %v123, %v125
    %v127 = vrot.slane %v111, %v126
    %v129 = vunpack.c.l.s4 1966171168
    %v130 = vunpack.c.0.s8 %v129
    %v131 = vlaneseq
    %v132 = vshrl.u32 %v131, 7
    %v133 = vsub.s32 %v130, %v132
    %v134 = vrot.slane %v112, %v133
    %v136 = vunpack.c.l.s4 1966171168
    %v137 = vunpack.c.0.s8 %v136
    %v138 = vlaneseq
    %v139 = vshrl.u32 %v138, 7
    %v140 = vsub.s32 %v137, %v139
    %v141 = vrot.slane %v113, %v140
    %v142 = vcombine.high %v120, %v120
    %v143 = vcombine.high %v127, %v127
    %v144 = vcombine.high %v134, %v134
    %v145 = vcombine.high %v141, %v141
    %v154 = vmul.f32 %v76, %v120
    %v155 = vmul.f32 %v77, %v134
    %v156 = vmul.f32 %v78, %v142
    %v157 = vmul.f32 %v79, %v144
    %v158 = vmul.f32 %v80, %v127
    %v159 = vmul.f32 %v81, %v141
    %v160 = vmul.f32 %v82, %v143
    %v161 = vmul.f32 %v83, %v145
    %v163 = vlaneseq
    %v164 = vshrl.u32 %v163, 7
    %v165 = vsub.s32 0, %v164
    %v166 = vrot.slane %v85, %v165
    %v167 = vlaneseq
    %v168 = vshrl.u32 %v167, 7
    %v169 = vsub.s32 1, %v168
    %v170 = vrot.slane %v85, %v169
    %v171 = vcombine.low %v166, %v170
    %v172 = vcombine.high %v166, %v170
    %v174 = vunpack.c.l.s4 1966171168
    %v175 = vunpack.c.0.s8 %v174
    %v176 = vlaneseq
    %v177 = vshrl.u32 %v176, 7
    %v178 = vsub.s32 %v175, %v177
    %v179 = vrot.slane %v171, %v178
    %v181 = vunpack.c.l.s4 1966171168
    %v182 = vunpack.c.0.s8 %v181
    %v183 = vlaneseq
    %v184 = vshrl.u32 %v183, 7
    %v185 = vsub.s32 %v182, %v184
    %v186 = vrot.slane %v172, %v185
    %v187 = vcombine.high %v179, %v179
    %v188 = vcombine.high %v186, %v186
    %v190 = vunpack.c.l.s4 1966171168
    %v191 = vunpack.c.0.s8 %v190
    %v192 = vlaneseq
    %v193 = vshrl.u32 %v192, 7
    %v194 = vsub.s32 %v191, %v193
    %v195 = vrot.slane %v179, %v194
    %v197 = vunpack.c.l.s4 1966171168
    %v198 = vunpack.c.0.s8 %v197
    %v199 = vlaneseq
    %v200 = vshrl.u32 %v199, 7
    %v201 = vsub.s32 %v198, %v200
    %v202 = vrot.slane %v186, %v201
    %v204 = vunpack.c.l.s4 1966171168
    %v205 = vunpack.c.0.s8 %v204
    %v206 = vlaneseq
    %v207 = vshrl.u32 %v206, 7
    %v208 = vsub.s32 %v205, %v207
    %v209 = vrot.slane %v187, %v208
    %v211 = vunpack.c.l.s4 1966171168
    %v212 = vunpack.c.0.s8 %v211
    %v213 = vlaneseq
    %v214 = vshrl.u32 %v213, 7
    %v215 = vsub.s32 %v212, %v214
    %v216 = vrot.slane %v188, %v215
    %v217 = vcombine.high %v195, %v195
    %v218 = vcombine.high %v202, %v202
    %v219 = vcombine.high %v209, %v209
    %v220 = vcombine.high %v216, %v216
    %v229 = vadd.f32 %v154, %v195
    %v230 = vadd.f32 %v155, %v209
    %v231 = vadd.f32 %v156, %v217
    %v232 = vadd.f32 %v157, %v219
    %v233 = vadd.f32 %v158, %v202
    %v234 = vadd.f32 %v159, %v216
    %v235 = vadd.f32 %v160, %v218
    %v236 = vadd.f32 %v161, %v220
    %v237 = vmax.f32 %v229, 0.0
    %v238 = vmax.f32 %v230, 0.0
    %v239 = vmax.f32 %v231, 0.0
    %v240 = vmax.f32 %v232, 0.0
    %v241 = vmax.f32 %v233, 0.0
    %v242 = vmax.f32 %v234, 0.0
    %v243 = vmax.f32 %v235, 0.0
    %v244 = vmax.f32 %v236, 0.0
    %v246 = vlaneseq
    %v247 = vshrl.u32 %v246, 7
    %v248 = vsub.s32 0, %v247
    %v249 = vrot.slane %v86, %v248
    %v250 = vlaneseq
    %v251 = vshrl.u32 %v250, 7
    %v252 = vsub.s32 1, %v251
    %v253 = vrot.slane %v86, %v252
    %v264 = vcombine.low %v237, %v238
    %v265 = vcombine.low %v239, %v240
    %v266 = vcombine.low %v241, %v242
    %v267 = vcombine.low %v243, %v244
    %v269 = vunpack.c.l.s4 1966171168
    %v270 = vunpack.c.0.s8 %v269
    %v271 = vlaneseq
    %v272 = vshrl.u32 %v271, 7
    %v273 = vsub.s32 %v270, %v272
    %v274 = vrot.slane %v264, %v273
    %v276 = vunpack.c.l.s4 1966171168
    %v277 = vunpack.c.0.s8 %v276
    %v278 = vlaneseq
    %v279 = vshrl.u32 %v278, 7
    %v280 = vsub.s32 %v277, %v279
    %v281 = vrot.slane %v265, %v280
    %v283 = vunpack.c.l.s4 1966171168
    %v284 = vunpack.c.0.s8 %v283
    %v285 = vlaneseq
    %v286 = vshrl.u32 %v285, 7
    %v287 = vsub.s32 %v284, %v286
    %v288 = vrot.slane %v266, %v287
    %v290 = vunpack.c.l.s4 1966171168
    %v291 = vunpack.c.0.s8 %v290
    %v292 = vlaneseq
    %v293 = vshrl.u32 %v292, 7
    %v294 = vsub.s32 %v291, %v293
    %v295 = vrot.slane %v267, %v294
    %v296 = vcombine.low %v274, %v281
    %v297 = vcombine.high %v274, %v281
    %v298 = vcombine.low %v288, %v295
    %v299 = vcombine.high %v288, %v295
    %v301 = vunpack.c.l.s4 1966171168
    %v302 = vunpack.c.0.s8 %v301
    %v303 = vlaneseq
    %v304 = vshrl.u32 %v303, 7
    %v305 = vsub.s32 %v302, %v304
    %v306 = vrot.slane %v296, %v305
    %v308 = vunpack.c.l.s4 1966171168
    %v309 = vunpack.c.0.s8 %v308
    %v310 = vlaneseq
    %v311 = vshrl.u32 %v310, 7
    %v312 = vsub.s32 %v309, %v311
    %v313 = vrot.slane %v297, %v312
    %v315 = vunpack.c.l.s4 1966171168
    %v316 = vunpack.c.0.s8 %v315
    %v317 = vlaneseq
    %v318 = vshrl.u32 %v317, 7
    %v319 = vsub.s32 %v316, %v318
    %v320 = vrot.slane %v298, %v319
    %v322 = vunpack.c.l.s4 1966171168
    %v323 = vunpack.c.0.s8 %v322
    %v324 = vlaneseq
    %v325 = vshrl.u32 %v324, 7
    %v326 = vsub.s32 %v323, %v325
    %v327 = vrot.slane %v299, %v326
    %v328 = vcombine.low %v306, %v320
    %v329 = vcombine.low %v313, %v327
    %v332 = vmul.f32 %v249, %v328
    %v333 = vmul.f32 %v253, %v329
    %v334 = vadd.f32 %v332, 0.0
    %v335 = vadd.f32 %v333, 0.0
    %s336 = scalar_lea.vmem [#allocation5], 1
    %v337 = vld [vmem:[%s336] ss:$8 sm:$0x3]
    %s338 = scalar_lea.vmem [#allocation7], 1
    %v339 = vld [vmem:[%s338] ss:$8 sm:$0x3]
    %s340 = scalar_lea.vmem [#allocation8], 1
    %v341 = vld [vmem:[%s340] ss:$8 sm:$0x3]
    %v343 = vlaneseq
    %v344 = vshrl.u32 %v343, 7
    %v345 = vsub.s32 0, %v344
    %v346 = vrot.slane %v337, %v345
    %v347 = vlaneseq
    %v348 = vshrl.u32 %v347, 7
    %v349 = vsub.s32 1, %v348
    %v350 = vrot.slane %v337, %v349
    %v351 = vcombine.low %v346, %v350
    %v352 = vcombine.high %v346, %v350
    %v354 = vunpack.c.l.s4 1966171168
    %v355 = vunpack.c.0.s8 %v354
    %v356 = vlaneseq
    %v357 = vshrl.u32 %v356, 7
    %v358 = vsub.s32 %v355, %v357
    %v359 = vrot.slane %v351, %v358
    %v361 = vunpack.c.l.s4 1966171168
    %v362 = vunpack.c.0.s8 %v361
    %v363 = vlaneseq
    %v364 = vshrl.u32 %v363, 7
    %v365 = vsub.s32 %v362, %v364
    %v366 = vrot.slane %v352, %v365
    %v367 = vcombine.high %v359, %v359
    %v368 = vcombine.high %v366, %v366
    %v370 = vunpack.c.l.s4 1966171168
    %v371 = vunpack.c.0.s8 %v370
    %v372 = vlaneseq
    %v373 = vshrl.u32 %v372, 7
    %v374 = vsub.s32 %v371, %v373
    %v375 = vrot.slane %v359, %v374
    %v377 = vunpack.c.l.s4 1966171168
    %v378 = vunpack.c.0.s8 %v377
    %v379 = vlaneseq
    %v380 = vshrl.u32 %v379, 7
    %v381 = vsub.s32 %v378, %v380
    %v382 = vrot.slane %v366, %v381
    %v384 = vunpack.c.l.s4 1966171168
    %v385 = vunpack.c.0.s8 %v384
    %v386 = vlaneseq
    %v387 = vshrl.u32 %v386, 7
    %v388 = vsub.s32 %v385, %v387
    %v389 = vrot.slane %v367, %v388
    %v391 = vunpack.c.l.s4 1966171168
    %v392 = vunpack.c.0.s8 %v391
    %v393 = vlaneseq
    %v394 = vshrl.u32 %v393, 7
    %v395 = vsub.s32 %v392, %v394
    %v396 = vrot.slane %v368, %v395
    %v397 = vcombine.high %v375, %v375
    %v398 = vcombine.high %v382, %v382
    %v399 = vcombine.high %v389, %v389
    %v400 = vcombine.high %v396, %v396
    %v409 = vmul.f32 %v76, %v375
    %v410 = vmul.f32 %v77, %v389
    %v411 = vmul.f32 %v78, %v397
    %v412 = vmul.f32 %v79, %v399
    %v413 = vmul.f32 %v80, %v382
    %v414 = vmul.f32 %v81, %v396
    %v415 = vmul.f32 %v82, %v398
    %v416 = vmul.f32 %v83, %v400
    %v418 = vlaneseq
    %v419 = vshrl.u32 %v418, 7
    %v420 = vsub.s32 0, %v419
    %v421 = vrot.slane %v339, %v420
    %v422 = vlaneseq
    %v423 = vshrl.u32 %v422, 7
    %v424 = vsub.s32 1, %v423
    %v425 = vrot.slane %v339, %v424
    %v426 = vcombine.low %v421, %v425
    %v427 = vcombine.high %v421, %v425
    %v429 = vunpack.c.l.s4 1966171168
    %v430 = vunpack.c.0.s8 %v429
    %v431 = vlaneseq
    %v432 = vshrl.u32 %v431, 7
    %v433 = vsub.s32 %v430, %v432
    %v434 = vrot.slane %v426, %v433
    %v436 = vunpack.c.l.s4 1966171168
    %v437 = vunpack.c.0.s8 %v436
    %v438 = vlaneseq
    %v439 = vshrl.u32 %v438, 7
    %v440 = vsub.s32 %v437, %v439
    %v441 = vrot.slane %v427, %v440
    %v442 = vcombine.high %v434, %v434
    %v443 = vcombine.high %v441, %v441
    %v445 = vunpack.c.l.s4 1966171168
    %v446 = vunpack.c.0.s8 %v445
    %v447 = vlaneseq
    %v448 = vshrl.u32 %v447, 7
    %v449 = vsub.s32 %v446, %v448
    %v450 = vrot.slane %v434, %v449
    %v452 = vunpack.c.l.s4 1966171168
    %v453 = vunpack.c.0.s8 %v452
    %v454 = vlaneseq
    %v455 = vshrl.u32 %v454, 7
    %v456 = vsub.s32 %v453, %v455
    %v457 = vrot.slane %v441, %v456
    %v459 = vunpack.c.l.s4 1966171168
    %v460 = vunpack.c.0.s8 %v459
    %v461 = vlaneseq
    %v462 = vshrl.u32 %v461, 7
    %v463 = vsub.s32 %v460, %v462
    %v464 = vrot.slane %v442, %v463
    %v466 = vunpack.c.l.s4 1966171168
    %v467 = vunpack.c.0.s8 %v466
    %v468 = vlaneseq
    %v469 = vshrl.u32 %v468, 7
    %v470 = vsub.s32 %v467, %v469
    %v471 = vrot.slane %v443, %v470
    %v472 = vcombine.high %v450, %v450
    %v473 = vcombine.high %v457, %v457
    %v474 = vcombine.high %v464, %v464
    %v475 = vcombine.high %v471, %v471
    %v484 = vadd.f32 %v409, %v450
    %v485 = vadd.f32 %v410, %v464
    %v486 = vadd.f32 %v411, %v472
    %v487 = vadd.f32 %v412, %v474
    %v488 = vadd.f32 %v413, %v457
    %v489 = vadd.f32 %v414, %v471
    %v490 = vadd.f32 %v415, %v473
    %v491 = vadd.f32 %v416, %v475
    %v492 = vmax.f32 %v484, 0.0
    %v493 = vmax.f32 %v485, 0.0
    %v494 = vmax.f32 %v486, 0.0
    %v495 = vmax.f32 %v487, 0.0
    %v496 = vmax.f32 %v488, 0.0
    %v497 = vmax.f32 %v489, 0.0
    %v498 = vmax.f32 %v490, 0.0
    %v499 = vmax.f32 %v491, 0.0
    %v501 = vlaneseq
    %v502 = vshrl.u32 %v501, 7
    %v503 = vsub.s32 0, %v502
    %v504 = vrot.slane %v341, %v503
    %v505 = vlaneseq
    %v506 = vshrl.u32 %v505, 7
    %v507 = vsub.s32 1, %v506
    %v508 = vrot.slane %v341, %v507
    %v519 = vcombine.low %v492, %v493
    %v520 = vcombine.low %v494, %v495
    %v521 = vcombine.low %v496, %v497
    %v522 = vcombine.low %v498, %v499
    %v524 = vunpack.c.l.s4 1966171168
    %v525 = vunpack.c.0.s8 %v524
    %v526 = vlaneseq
    %v527 = vshrl.u32 %v526, 7
    %v528 = vsub.s32 %v525, %v527
    %v529 = vrot.slane %v519, %v528
    %v531 = vunpack.c.l.s4 1966171168
    %v532 = vunpack.c.0.s8 %v531
    %v533 = vlaneseq
    %v534 = vshrl.u32 %v533, 7
    %v535 = vsub.s32 %v532, %v534
    %v536 = vrot.slane %v520, %v535
    %v538 = vunpack.c.l.s4 1966171168
    %v539 = vunpack.c.0.s8 %v538
    %v540 = vlaneseq
    %v541 = vshrl.u32 %v540, 7
    %v542 = vsub.s32 %v539, %v541
    %v543 = vrot.slane %v521, %v542
    %v545 = vunpack.c.l.s4 1966171168
    %v546 = vunpack.c.0.s8 %v545
    %v547 = vlaneseq
    %v548 = vshrl.u32 %v547, 7
    %v549 = vsub.s32 %v546, %v548
    %v550 = vrot.slane %v522, %v549
    %v551 = vcombine.low %v529, %v536
    %v552 = vcombine.high %v529, %v536
    %v553 = vcombine.low %v543, %v550
    %v554 = vcombine.high %v543, %v550
    %v556 = vunpack.c.l.s4 1966171168
    %v557 = vunpack.c.0.s8 %v556
    %v558 = vlaneseq
    %v559 = vshrl.u32 %v558, 7
    %v560 = vsub.s32 %v557, %v559
    %v561 = vrot.slane %v551, %v560
    %v563 = vunpack.c.l.s4 1966171168
    %v564 = vunpack.c.0.s8 %v563
    %v565 = vlaneseq
    %v566 = vshrl.u32 %v565, 7
    %v567 = vsub.s32 %v564, %v566
    %v568 = vrot.slane %v552, %v567
    %v570 = vunpack.c.l.s4 1966171168
    %v571 = vunpack.c.0.s8 %v570
    %v572 = vlaneseq
    %v573 = vshrl.u32 %v572, 7
    %v574 = vsub.s32 %v571, %v573
    %v575 = vrot.slane %v553, %v574
    %v577 = vunpack.c.l.s4 1966171168
    %v578 = vunpack.c.0.s8 %v577
    %v579 = vlaneseq
    %v580 = vshrl.u32 %v579, 7
    %v581 = vsub.s32 %v578, %v580
    %v582 = vrot.slane %v554, %v581
    %v583 = vcombine.low %v561, %v575
    %v584 = vcombine.low %v568, %v582
    %v587 = vmul.f32 %v504, %v583
    %v588 = vmul.f32 %v508, %v584
    %v589 = vadd.f32 %v334, %v587
    %v590 = vadd.f32 %v335, %v588
    %s591 = scalar_lea.vmem [#allocation5], 2
    %v592 = vld [vmem:[%s591] ss:$8 sm:$0x3]
    %s593 = scalar_lea.vmem [#allocation7], 2
    %v594 = vld [vmem:[%s593] ss:$8 sm:$0x3]
    %s595 = scalar_lea.vmem [#allocation8], 2
    %v596 = vld [vmem:[%s595] ss:$8 sm:$0x3]
    %v598 = vlaneseq
    %v599 = vshrl.u32 %v598, 7
    %v600 = vsub.s32 0, %v599
    %v601 = vrot.slane %v592, %v600
    %v602 = vlaneseq
    %v603 = vshrl.u32 %v602, 7
    %v604 = vsub.s32 1, %v603
    %v605 = vrot.slane %v592, %v604
    %v606 = vcombine.low %v601, %v605
    %v607 = vcombine.high %v601, %v605
    %v609 = vunpack.c.l.s4 1966171168
    %v610 = vunpack.c.0.s8 %v609
    %v611 = vlaneseq
    %v612 = vshrl.u32 %v611, 7
    %v613 = vsub.s32 %v610, %v612
    %v614 = vrot.slane %v606, %v613
    %v616 = vunpack.c.l.s4 1966171168
    %v617 = vunpack.c.0.s8 %v616
    %v618 = vlaneseq
    %v619 = vshrl.u32 %v618, 7
    %v620 = vsub.s32 %v617, %v619
    %v621 = vrot.slane %v607, %v620
    %v622 = vcombine.high %v614, %v614
    %v623 = vcombine.high %v621, %v621
    %v625 = vunpack.c.l.s4 1966171168
    %v626 = vunpack.c.0.s8 %v625
    %v627 = vlaneseq
    %v628 = vshrl.u32 %v627, 7
    %v629 = vsub.s32 %v626, %v628
    %v630 = vrot.slane %v614, %v629
    %v632 = vunpack.c.l.s4 1966171168
    %v633 = vunpack.c.0.s8 %v632
    %v634 = vlaneseq
    %v635 = vshrl.u32 %v634, 7
    %v636 = vsub.s32 %v633, %v635
    %v637 = vrot.slane %v621, %v636
    %v639 = vunpack.c.l.s4 1966171168
    %v640 = vunpack.c.0.s8 %v639
    %v641 = vlaneseq
    %v642 = vshrl.u32 %v641, 7
    %v643 = vsub.s32 %v640, %v642
    %v644 = vrot.slane %v622, %v643
    %v646 = vunpack.c.l.s4 1966171168
    %v647 = vunpack.c.0.s8 %v646
    %v648 = vlaneseq
    %v649 = vshrl.u32 %v648, 7
    %v650 = vsub.s32 %v647, %v649
    %v651 = vrot.slane %v623, %v650
    %v652 = vcombine.high %v630, %v630
    %v653 = vcombine.high %v637, %v637
    %v654 = vcombine.high %v644, %v644
    %v655 = vcombine.high %v651, %v651
    %v664 = vmul.f32 %v76, %v630
    %v665 = vmul.f32 %v77, %v644
    %v666 = vmul.f32 %v78, %v652
    %v667 = vmul.f32 %v79, %v654
    %v668 = vmul.f32 %v80, %v637
    %v669 = vmul.f32 %v81, %v651
    %v670 = vmul.f32 %v82, %v653
    %v671 = vmul.f32 %v83, %v655
    %v673 = vlaneseq
    %v674 = vshrl.u32 %v673, 7
    %v675 = vsub.s32 0, %v674
    %v676 = vrot.slane %v594, %v675
    %v677 = vlaneseq
    %v678 = vshrl.u32 %v677, 7
    %v679 = vsub.s32 1, %v678
    %v680 = vrot.slane %v594, %v679
    %v681 = vcombine.low %v676, %v680
    %v682 = vcombine.high %v676, %v680
    %v684 = vunpack.c.l.s4 1966171168
    %v685 = vunpack.c.0.s8 %v684
    %v686 = vlaneseq
    %v687 = vshrl.u32 %v686, 7
    %v688 = vsub.s32 %v685, %v687
    %v689 = vrot.slane %v681, %v688
    %v691 = vunpack.c.l.s4 1966171168
    %v692 = vunpack.c.0.s8 %v691
    %v693 = vlaneseq
    %v694 = vshrl.u32 %v693, 7
    %v695 = vsub.s32 %v692, %v694
    %v696 = vrot.slane %v682, %v695
    %v697 = vcombine.high %v689, %v689
    %v698 = vcombine.high %v696, %v696
    %v700 = vunpack.c.l.s4 1966171168
    %v701 = vunpack.c.0.s8 %v700
    %v702 = vlaneseq
    %v703 = vshrl.u32 %v702, 7
    %v704 = vsub.s32 %v701, %v703
    %v705 = vrot.slane %v689, %v704
    %v707 = vunpack.c.l.s4 1966171168
    %v708 = vunpack.c.0.s8 %v707
    %v709 = vlaneseq
    %v710 = vshrl.u32 %v709, 7
    %v711 = vsub.s32 %v708, %v710
    %v712 = vrot.slane %v696, %v711
    %v714 = vunpack.c.l.s4 1966171168
    %v715 = vunpack.c.0.s8 %v714
    %v716 = vlaneseq
    %v717 = vshrl.u32 %v716, 7
    %v718 = vsub.s32 %v715, %v717
    %v719 = vrot.slane %v697, %v718
    %v721 = vunpack.c.l.s4 1966171168
    %v722 = vunpack.c.0.s8 %v721
    %v723 = vlaneseq
    %v724 = vshrl.u32 %v723, 7
    %v725 = vsub.s32 %v722, %v724
    %v726 = vrot.slane %v698, %v725
    %v727 = vcombine.high %v705, %v705
    %v728 = vcombine.high %v712, %v712
    %v729 = vcombine.high %v719, %v719
    %v730 = vcombine.high %v726, %v726
    %v739 = vadd.f32 %v664, %v705
    %v740 = vadd.f32 %v665, %v719
    %v741 = vadd.f32 %v666, %v727
    %v742 = vadd.f32 %v667, %v729
    %v743 = vadd.f32 %v668, %v712
    %v744 = vadd.f32 %v669, %v726
    %v745 = vadd.f32 %v670, %v728
    %v746 = vadd.f32 %v671, %v730
    %v747 = vmax.f32 %v739, 0.0
    %v748 = vmax.f32 %v740, 0.0
    %v749 = vmax.f32 %v741, 0.0
    %v750 = vmax.f32 %v742, 0.0
    %v751 = vmax.f32 %v743, 0.0
    %v752 = vmax.f32 %v744, 0.0
    %v753 = vmax.f32 %v745, 0.0
    %v754 = vmax.f32 %v746, 0.0
    %v756 = vlaneseq
    %v757 = vshrl.u32 %v756, 7
    %v758 = vsub.s32 0, %v757
    %v759 = vrot.slane %v596, %v758
    %v760 = vlaneseq
    %v761 = vshrl.u32 %v760, 7
    %v762 = vsub.s32 1, %v761
    %v763 = vrot.slane %v596, %v762
    %v774 = vcombine.low %v747, %v748
    %v775 = vcombine.low %v749, %v750
    %v776 = vcombine.low %v751, %v752
    %v777 = vcombine.low %v753, %v754
    %v779 = vunpack.c.l.s4 1966171168
    %v780 = vunpack.c.0.s8 %v779
    %v781 = vlaneseq
    %v782 = vshrl.u32 %v781, 7
    %v783 = vsub.s32 %v780, %v782
    %v784 = vrot.slane %v774, %v783
    %v786 = vunpack.c.l.s4 1966171168
    %v787 = vunpack.c.0.s8 %v786
    %v788 = vlaneseq
    %v789 = vshrl.u32 %v788, 7
    %v790 = vsub.s32 %v787, %v789
    %v791 = vrot.slane %v775, %v790
    %v793 = vunpack.c.l.s4 1966171168
    %v794 = vunpack.c.0.s8 %v793
    %v795 = vlaneseq
    %v796 = vshrl.u32 %v795, 7
    %v797 = vsub.s32 %v794, %v796
    %v798 = vrot.slane %v776, %v797
    %v800 = vunpack.c.l.s4 1966171168
    %v801 = vunpack.c.0.s8 %v800
    %v802 = vlaneseq
    %v803 = vshrl.u32 %v802, 7
    %v804 = vsub.s32 %v801, %v803
    %v805 = vrot.slane %v777, %v804
    %v806 = vcombine.low %v784, %v791
    %v807 = vcombine.high %v784, %v791
    %v808 = vcombine.low %v798, %v805
    %v809 = vcombine.high %v798, %v805
    %v811 = vunpack.c.l.s4 1966171168
    %v812 = vunpack.c.0.s8 %v811
    %v813 = vlaneseq
    %v814 = vshrl.u32 %v813, 7
    %v815 = vsub.s32 %v812, %v814
    %v816 = vrot.slane %v806, %v815
    %v818 = vunpack.c.l.s4 1966171168
    %v819 = vunpack.c.0.s8 %v818
    %v820 = vlaneseq
    %v821 = vshrl.u32 %v820, 7
    %v822 = vsub.s32 %v819, %v821
    %v823 = vrot.slane %v807, %v822
    %v825 = vunpack.c.l.s4 1966171168
    %v826 = vunpack.c.0.s8 %v825
    %v827 = vlaneseq
    %v828 = vshrl.u32 %v827, 7
    %v829 = vsub.s32 %v826, %v828
    %v830 = vrot.slane %v808, %v829
    %v832 = vunpack.c.l.s4 1966171168
    %v833 = vunpack.c.0.s8 %v832
    %v834 = vlaneseq
    %v835 = vshrl.u32 %v834, 7
    %v836 = vsub.s32 %v833, %v835
    %v837 = vrot.slane %v809, %v836
    %v838 = vcombine.low %v816, %v830
    %v839 = vcombine.low %v823, %v837
    %v842 = vmul.f32 %v759, %v838
    %v843 = vmul.f32 %v763, %v839
    %v844 = vadd.f32 %v589, %v842
    %v845 = vadd.f32 %v590, %v843
    %s846 = scalar_lea.vmem [#allocation5], 3
    %v847 = vld [vmem:[%s846] ss:$8 sm:$0x3]
    %s848 = scalar_lea.vmem [#allocation7], 3
    %v849 = vld [vmem:[%s848] ss:$8 sm:$0x3]
    %s850 = scalar_lea.vmem [#allocation8], 3
    %v851 = vld [vmem:[%s850] ss:$8 sm:$0x3]
    %v853 = vlaneseq
    %v854 = vshrl.u32 %v853, 7
    %v855 = vsub.s32 0, %v854
    %v856 = vrot.slane %v847, %v855
    %v857 = vlaneseq
    %v858 = vshrl.u32 %v857, 7
    %v859 = vsub.s32 1, %v858
    %v860 = vrot.slane %v847, %v859
    %v861 = vcombine.low %v856, %v860
    %v862 = vcombine.high %v856, %v860
    %v864 = vunpack.c.l.s4 1966171168
    %v865 = vunpack.c.0.s8 %v864
    %v866 = vlaneseq
    %v867 = vshrl.u32 %v866, 7
    %v868 = vsub.s32 %v865, %v867
    %v869 = vrot.slane %v861, %v868
    %v871 = vunpack.c.l.s4 1966171168
    %v872 = vunpack.c.0.s8 %v871
    %v873 = vlaneseq
    %v874 = vshrl.u32 %v873, 7
    %v875 = vsub.s32 %v872, %v874
    %v876 = vrot.slane %v862, %v875
    %v877 = vcombine.high %v869, %v869
    %v878 = vcombine.high %v876, %v876
    %v880 = vunpack.c.l.s4 1966171168
    %v881 = vunpack.c.0.s8 %v880
    %v882 = vlaneseq
    %v883 = vshrl.u32 %v882, 7
    %v884 = vsub.s32 %v881, %v883
    %v885 = vrot.slane %v869, %v884
    %v887 = vunpack.c.l.s4 1966171168
    %v888 = vunpack.c.0.s8 %v887
    %v889 = vlaneseq
    %v890 = vshrl.u32 %v889, 7
    %v891 = vsub.s32 %v888, %v890
    %v892 = vrot.slane %v876, %v891
    %v894 = vunpack.c.l.s4 1966171168
    %v895 = vunpack.c.0.s8 %v894
    %v896 = vlaneseq
    %v897 = vshrl.u32 %v896, 7
    %v898 = vsub.s32 %v895, %v897
    %v899 = vrot.slane %v877, %v898
    %v901 = vunpack.c.l.s4 1966171168
    %v902 = vunpack.c.0.s8 %v901
    %v903 = vlaneseq
    %v904 = vshrl.u32 %v903, 7
    %v905 = vsub.s32 %v902, %v904
    %v906 = vrot.slane %v878, %v905
    %v907 = vcombine.high %v885, %v885
    %v908 = vcombine.high %v892, %v892
    %v909 = vcombine.high %v899, %v899
    %v910 = vcombine.high %v906, %v906
    %v919 = vmul.f32 %v76, %v885
    %v920 = vmul.f32 %v77, %v899
    %v921 = vmul.f32 %v78, %v907
    %v922 = vmul.f32 %v79, %v909
    %v923 = vmul.f32 %v80, %v892
    %v924 = vmul.f32 %v81, %v906
    %v925 = vmul.f32 %v82, %v908
    %v926 = vmul.f32 %v83, %v910
    %v928 = vlaneseq
    %v929 = vshrl.u32 %v928, 7
    %v930 = vsub.s32 0, %v929
    %v931 = vrot.slane %v849, %v930
    %v932 = vlaneseq
    %v933 = vshrl.u32 %v932, 7
    %v934 = vsub.s32 1, %v933
    %v935 = vrot.slane %v849, %v934
    %v936 = vcombine.low %v931, %v935
    %v937 = vcombine.high %v931, %v935
    %v939 = vunpack.c.l.s4 1966171168
    %v940 = vunpack.c.0.s8 %v939
    %v941 = vlaneseq
    %v942 = vshrl.u32 %v941, 7
    %v943 = vsub.s32 %v940, %v942
    %v944 = vrot.slane %v936, %v943
    %v946 = vunpack.c.l.s4 1966171168
    %v947 = vunpack.c.0.s8 %v946
    %v948 = vlaneseq
    %v949 = vshrl.u32 %v948, 7
    %v950 = vsub.s32 %v947, %v949
    %v951 = vrot.slane %v937, %v950
    %v952 = vcombine.high %v944, %v944
    %v953 = vcombine.high %v951, %v951
    %v955 = vunpack.c.l.s4 1966171168
    %v956 = vunpack.c.0.s8 %v955
    %v957 = vlaneseq
    %v958 = vshrl.u32 %v957, 7
    %v959 = vsub.s32 %v956, %v958
    %v960 = vrot.slane %v944, %v959
    %v962 = vunpack.c.l.s4 1966171168
    %v963 = vunpack.c.0.s8 %v962
    %v964 = vlaneseq
    %v965 = vshrl.u32 %v964, 7
    %v966 = vsub.s32 %v963, %v965
    %v967 = vrot.slane %v951, %v966
    %v969 = vunpack.c.l.s4 1966171168
    %v970 = vunpack.c.0.s8 %v969
    %v971 = vlaneseq
    %v972 = vshrl.u32 %v971, 7
    %v973 = vsub.s32 %v970, %v972
    %v974 = vrot.slane %v952, %v973
    %v976 = vunpack.c.l.s4 1966171168
    %v977 = vunpack.c.0.s8 %v976
    %v978 = vlaneseq
    %v979 = vshrl.u32 %v978, 7
    %v980 = vsub.s32 %v977, %v979
    %v981 = vrot.slane %v953, %v980
    %v982 = vcombine.high %v960, %v960
    %v983 = vcombine.high %v967, %v967
    %v984 = vcombine.high %v974, %v974
    %v985 = vcombine.high %v981, %v981
    %v994 = vadd.f32 %v919, %v960
    %v995 = vadd.f32 %v920, %v974
    %v996 = vadd.f32 %v921, %v982
    %v997 = vadd.f32 %v922, %v984
    %v998 = vadd.f32 %v923, %v967
    %v999 = vadd.f32 %v924, %v981
    %v1000 = vadd.f32 %v925, %v983
    %v1001 = vadd.f32 %v926, %v985
    %v1002 = vmax.f32 %v994, 0.0
    %v1003 = vmax.f32 %v995, 0.0
    %v1004 = vmax.f32 %v996, 0.0
    %v1005 = vmax.f32 %v997, 0.0
    %v1006 = vmax.f32 %v998, 0.0
    %v1007 = vmax.f32 %v999, 0.0
    %v1008 = vmax.f32 %v1000, 0.0
    %v1009 = vmax.f32 %v1001, 0.0
    %v1011 = vlaneseq
    %v1012 = vshrl.u32 %v1011, 7
    %v1013 = vsub.s32 0, %v1012
    %v1014 = vrot.slane %v851, %v1013
    %v1015 = vlaneseq
    %v1016 = vshrl.u32 %v1015, 7
    %v1017 = vsub.s32 1, %v1016
    %v1018 = vrot.slane %v851, %v1017
    %v1029 = vcombine.low %v1002, %v1003
    %v1030 = vcombine.low %v1004, %v1005
    %v1031 = vcombine.low %v1006, %v1007
    %v1032 = vcombine.low %v1008, %v1009
    %v1034 = vunpack.c.l.s4 1966171168
    %v1035 = vunpack.c.0.s8 %v1034
    %v1036 = vlaneseq
    %v1037 = vshrl.u32 %v1036, 7
    %v1038 = vsub.s32 %v1035, %v1037
    %v1039 = vrot.slane %v1029, %v1038
    %v1041 = vunpack.c.l.s4 1966171168
    %v1042 = vunpack.c.0.s8 %v1041
    %v1043 = vlaneseq
    %v1044 = vshrl.u32 %v1043, 7
    %v1045 = vsub.s32 %v1042, %v1044
    %v1046 = vrot.slane %v1030, %v1045
    %v1048 = vunpack.c.l.s4 1966171168
    %v1049 = vunpack.c.0.s8 %v1048
    %v1050 = vlaneseq
    %v1051 = vshrl.u32 %v1050, 7
    %v1052 = vsub.s32 %v1049, %v1051
    %v1053 = vrot.slane %v1031, %v1052
    %v1055 = vunpack.c.l.s4 1966171168
    %v1056 = vunpack.c.0.s8 %v1055
    %v1057 = vlaneseq
    %v1058 = vshrl.u32 %v1057, 7
    %v1059 = vsub.s32 %v1056, %v1058
    %v1060 = vrot.slane %v1032, %v1059
    %v1061 = vcombine.low %v1039, %v1046
    %v1062 = vcombine.high %v1039, %v1046
    %v1063 = vcombine.low %v1053, %v1060
    %v1064 = vcombine.high %v1053, %v1060
    %v1066 = vunpack.c.l.s4 1966171168
    %v1067 = vunpack.c.0.s8 %v1066
    %v1068 = vlaneseq
    %v1069 = vshrl.u32 %v1068, 7
    %v1070 = vsub.s32 %v1067, %v1069
    %v1071 = vrot.slane %v1061, %v1070
    %v1073 = vunpack.c.l.s4 1966171168
    %v1074 = vunpack.c.0.s8 %v1073
    %v1075 = vlaneseq
    %v1076 = vshrl.u32 %v1075, 7
    %v1077 = vsub.s32 %v1074, %v1076
    %v1078 = vrot.slane %v1062, %v1077
    %v1080 = vunpack.c.l.s4 1966171168
    %v1081 = vunpack.c.0.s8 %v1080
    %v1082 = vlaneseq
    %v1083 = vshrl.u32 %v1082, 7
    %v1084 = vsub.s32 %v1081, %v1083
    %v1085 = vrot.slane %v1063, %v1084
    %v1087 = vunpack.c.l.s4 1966171168
    %v1088 = vunpack.c.0.s8 %v1087
    %v1089 = vlaneseq
    %v1090 = vshrl.u32 %v1089, 7
    %v1091 = vsub.s32 %v1088, %v1090
    %v1092 = vrot.slane %v1064, %v1091
    %v1093 = vcombine.low %v1071, %v1085
    %v1094 = vcombine.low %v1078, %v1092
    %v1097 = vmul.f32 %v1014, %v1093
    %v1098 = vmul.f32 %v1018, %v1094
    %v1099 = vadd.f32 %v844, %v1097
    %v1100 = vadd.f32 %v845, %v1098
    %s1101 = scalar_lea.vmem [#allocation5], 4
    %v1102 = vld [vmem:[%s1101] ss:$8 sm:$0x3]
    %s1103 = scalar_lea.vmem [#allocation7], 4
    %v1104 = vld [vmem:[%s1103] ss:$8 sm:$0x3]
    %s1105 = scalar_lea.vmem [#allocation8], 4
    %v1106 = vld [vmem:[%s1105] ss:$8 sm:$0x3]
    %v1108 = vlaneseq
    %v1109 = vshrl.u32 %v1108, 7
    %v1110 = vsub.s32 0, %v1109
    %v1111 = vrot.slane %v1102, %v1110
    %v1112 = vlaneseq
    %v1113 = vshrl.u32 %v1112, 7
    %v1114 = vsub.s32 1, %v1113
    %v1115 = vrot.slane %v1102, %v1114
    %v1116 = vcombine.low %v1111, %v1115
    %v1117 = vcombine.high %v1111, %v1115
    %v1119 = vunpack.c.l.s4 1966171168
    %v1120 = vunpack.c.0.s8 %v1119
    %v1121 = vlaneseq
    %v1122 = vshrl.u32 %v1121, 7
    %v1123 = vsub.s32 %v1120, %v1122
    %v1124 = vrot.slane %v1116, %v1123
    %v1126 = vunpack.c.l.s4 1966171168
    %v1127 = vunpack.c.0.s8 %v1126
    %v1128 = vlaneseq
    %v1129 = vshrl.u32 %v1128, 7
    %v1130 = vsub.s32 %v1127, %v1129
    %v1131 = vrot.slane %v1117, %v1130
    %v1132 = vcombine.high %v1124, %v1124
    %v1133 = vcombine.high %v1131, %v1131
    %v1135 = vunpack.c.l.s4 1966171168
    %v1136 = vunpack.c.0.s8 %v1135
    %v1137 = vlaneseq
    %v1138 = vshrl.u32 %v1137, 7
    %v1139 = vsub.s32 %v1136, %v1138
    %v1140 = vrot.slane %v1124, %v1139
    %v1142 = vunpack.c.l.s4 1966171168
    %v1143 = vunpack.c.0.s8 %v1142
    %v1144 = vlaneseq
    %v1145 = vshrl.u32 %v1144, 7
    %v1146 = vsub.s32 %v1143, %v1145
    %v1147 = vrot.slane %v1131, %v1146
    %v1149 = vunpack.c.l.s4 1966171168
    %v1150 = vunpack.c.0.s8 %v1149
    %v1151 = vlaneseq
    %v1152 = vshrl.u32 %v1151, 7
    %v1153 = vsub.s32 %v1150, %v1152
    %v1154 = vrot.slane %v1132, %v1153
    %v1156 = vunpack.c.l.s4 1966171168
    %v1157 = vunpack.c.0.s8 %v1156
    %v1158 = vlaneseq
    %v1159 = vshrl.u32 %v1158, 7
    %v1160 = vsub.s32 %v1157, %v1159
    %v1161 = vrot.slane %v1133, %v1160
    %v1162 = vcombine.high %v1140, %v1140
    %v1163 = vcombine.high %v1147, %v1147
    %v1164 = vcombine.high %v1154, %v1154
    %v1165 = vcombine.high %v1161, %v1161
    %v1174 = vmul.f32 %v76, %v1140
    %v1175 = vmul.f32 %v77, %v1154
    %v1176 = vmul.f32 %v78, %v1162
    %v1177 = vmul.f32 %v79, %v1164
    %v1178 = vmul.f32 %v80, %v1147
    %v1179 = vmul.f32 %v81, %v1161
    %v1180 = vmul.f32 %v82, %v1163
    %v1181 = vmul.f32 %v83, %v1165
    %v1183 = vlaneseq
    %v1184 = vshrl.u32 %v1183, 7
    %v1185 = vsub.s32 0, %v1184
    %v1186 = vrot.slane %v1104, %v1185
    %v1187 = vlaneseq
    %v1188 = vshrl.u32 %v1187, 7
    %v1189 = vsub.s32 1, %v1188
    %v1190 = vrot.slane %v1104, %v1189
    %v1191 = vcombine.low %v1186, %v1190
    %v1192 = vcombine.high %v1186, %v1190
    %v1194 = vunpack.c.l.s4 1966171168
    %v1195 = vunpack.c.0.s8 %v1194
    %v1196 = vlaneseq
    %v1197 = vshrl.u32 %v1196, 7
    %v1198 = vsub.s32 %v1195, %v1197
    %v1199 = vrot.slane %v1191, %v1198
    %v1201 = vunpack.c.l.s4 1966171168
    %v1202 = vunpack.c.0.s8 %v1201
    %v1203 = vlaneseq
    %v1204 = vshrl.u32 %v1203, 7
    %v1205 = vsub.s32 %v1202, %v1204
    %v1206 = vrot.slane %v1192, %v1205
    %v1207 = vcombine.high %v1199, %v1199
    %v1208 = vcombine.high %v1206, %v1206
    %v1210 = vunpack.c.l.s4 1966171168
    %v1211 = vunpack.c.0.s8 %v1210
    %v1212 = vlaneseq
    %v1213 = vshrl.u32 %v1212, 7
    %v1214 = vsub.s32 %v1211, %v1213
    %v1215 = vrot.slane %v1199, %v1214
    %v1217 = vunpack.c.l.s4 1966171168
    %v1218 = vunpack.c.0.s8 %v1217
    %v1219 = vlaneseq
    %v1220 = vshrl.u32 %v1219, 7
    %v1221 = vsub.s32 %v1218, %v1220
    %v1222 = vrot.slane %v1206, %v1221
    %v1224 = vunpack.c.l.s4 1966171168
    %v1225 = vunpack.c.0.s8 %v1224
    %v1226 = vlaneseq
    %v1227 = vshrl.u32 %v1226, 7
    %v1228 = vsub.s32 %v1225, %v1227
    %v1229 = vrot.slane %v1207, %v1228
    %v1231 = vunpack.c.l.s4 1966171168
    %v1232 = vunpack.c.0.s8 %v1231
    %v1233 = vlaneseq
    %v1234 = vshrl.u32 %v1233, 7
    %v1235 = vsub.s32 %v1232, %v1234
    %v1236 = vrot.slane %v1208, %v1235
    %v1237 = vcombine.high %v1215, %v1215
    %v1238 = vcombine.high %v1222, %v1222
    %v1239 = vcombine.high %v1229, %v1229
    %v1240 = vcombine.high %v1236, %v1236
    %v1249 = vadd.f32 %v1174, %v1215
    %v1250 = vadd.f32 %v1175, %v1229
    %v1251 = vadd.f32 %v1176, %v1237
    %v1252 = vadd.f32 %v1177, %v1239
    %v1253 = vadd.f32 %v1178, %v1222
    %v1254 = vadd.f32 %v1179, %v1236
    %v1255 = vadd.f32 %v1180, %v1238
    %v1256 = vadd.f32 %v1181, %v1240
    %v1257 = vmax.f32 %v1249, 0.0
    %v1258 = vmax.f32 %v1250, 0.0
    %v1259 = vmax.f32 %v1251, 0.0
    %v1260 = vmax.f32 %v1252, 0.0
    %v1261 = vmax.f32 %v1253, 0.0
    %v1262 = vmax.f32 %v1254, 0.0
    %v1263 = vmax.f32 %v1255, 0.0
    %v1264 = vmax.f32 %v1256, 0.0
    %v1266 = vlaneseq
    %v1267 = vshrl.u32 %v1266, 7
    %v1268 = vsub.s32 0, %v1267
    %v1269 = vrot.slane %v1106, %v1268
    %v1270 = vlaneseq
    %v1271 = vshrl.u32 %v1270, 7
    %v1272 = vsub.s32 1, %v1271
    %v1273 = vrot.slane %v1106, %v1272
    %v1284 = vcombine.low %v1257, %v1258
    %v1285 = vcombine.low %v1259, %v1260
    %v1286 = vcombine.low %v1261, %v1262
    %v1287 = vcombine.low %v1263, %v1264
    %v1289 = vunpack.c.l.s4 1966171168
    %v1290 = vunpack.c.0.s8 %v1289
    %v1291 = vlaneseq
    %v1292 = vshrl.u32 %v1291, 7
    %v1293 = vsub.s32 %v1290, %v1292
    %v1294 = vrot.slane %v1284, %v1293
    %v1296 = vunpack.c.l.s4 1966171168
    %v1297 = vunpack.c.0.s8 %v1296
    %v1298 = vlaneseq
    %v1299 = vshrl.u32 %v1298, 7
    %v1300 = vsub.s32 %v1297, %v1299
    %v1301 = vrot.slane %v1285, %v1300
    %v1303 = vunpack.c.l.s4 1966171168
    %v1304 = vunpack.c.0.s8 %v1303
    %v1305 = vlaneseq
    %v1306 = vshrl.u32 %v1305, 7
    %v1307 = vsub.s32 %v1304, %v1306
    %v1308 = vrot.slane %v1286, %v1307
    %v1310 = vunpack.c.l.s4 1966171168
    %v1311 = vunpack.c.0.s8 %v1310
    %v1312 = vlaneseq
    %v1313 = vshrl.u32 %v1312, 7
    %v1314 = vsub.s32 %v1311, %v1313
    %v1315 = vrot.slane %v1287, %v1314
    %v1316 = vcombine.low %v1294, %v1301
    %v1317 = vcombine.high %v1294, %v1301
    %v1318 = vcombine.low %v1308, %v1315
    %v1319 = vcombine.high %v1308, %v1315
    %v1321 = vunpack.c.l.s4 1966171168
    %v1322 = vunpack.c.0.s8 %v1321
    %v1323 = vlaneseq
    %v1324 = vshrl.u32 %v1323, 7
    %v1325 = vsub.s32 %v1322, %v1324
    %v1326 = vrot.slane %v1316, %v1325
    %v1328 = vunpack.c.l.s4 1966171168
    %v1329 = vunpack.c.0.s8 %v1328
    %v1330 = vlaneseq
    %v1331 = vshrl.u32 %v1330, 7
    %v1332 = vsub.s32 %v1329, %v1331
    %v1333 = vrot.slane %v1317, %v1332
    %v1335 = vunpack.c.l.s4 1966171168
    %v1336 = vunpack.c.0.s8 %v1335
    %v1337 = vlaneseq
    %v1338 = vshrl.u32 %v1337, 7
    %v1339 = vsub.s32 %v1336, %v1338
    %v1340 = vrot.slane %v1318, %v1339
    %v1342 = vunpack.c.l.s4 1966171168
    %v1343 = vunpack.c.0.s8 %v1342
    %v1344 = vlaneseq
    %v1345 = vshrl.u32 %v1344, 7
    %v1346 = vsub.s32 %v1343, %v1345
    %v1347 = vrot.slane %v1319, %v1346
    %v1348 = vcombine.low %v1326, %v1340
    %v1349 = vcombine.low %v1333, %v1347
    %v1352 = vmul.f32 %v1269, %v1348
    %v1353 = vmul.f32 %v1273, %v1349
    %v1354 = vadd.f32 %v1099, %v1352
    %v1355 = vadd.f32 %v1100, %v1353
    %s1356 = scalar_lea.vmem [#allocation5], 5
    %v1357 = vld [vmem:[%s1356] ss:$8 sm:$0x3]
    %s1358 = scalar_lea.vmem [#allocation7], 5
    %v1359 = vld [vmem:[%s1358] ss:$8 sm:$0x3]
    %s1360 = scalar_lea.vmem [#allocation8], 5
    %v1361 = vld [vmem:[%s1360] ss:$8 sm:$0x3]
    %v1363 = vlaneseq
    %v1364 = vshrl.u32 %v1363, 7
    %v1365 = vsub.s32 0, %v1364
    %v1366 = vrot.slane %v1357, %v1365
    %v1367 = vlaneseq
    %v1368 = vshrl.u32 %v1367, 7
    %v1369 = vsub.s32 1, %v1368
    %v1370 = vrot.slane %v1357, %v1369
    %v1371 = vcombine.low %v1366, %v1370
    %v1372 = vcombine.high %v1366, %v1370
    %v1374 = vunpack.c.l.s4 1966171168
    %v1375 = vunpack.c.0.s8 %v1374
    %v1376 = vlaneseq
    %v1377 = vshrl.u32 %v1376, 7
    %v1378 = vsub.s32 %v1375, %v1377
    %v1379 = vrot.slane %v1371, %v1378
    %v1381 = vunpack.c.l.s4 1966171168
    %v1382 = vunpack.c.0.s8 %v1381
    %v1383 = vlaneseq
    %v1384 = vshrl.u32 %v1383, 7
    %v1385 = vsub.s32 %v1382, %v1384
    %v1386 = vrot.slane %v1372, %v1385
    %v1387 = vcombine.high %v1379, %v1379
    %v1388 = vcombine.high %v1386, %v1386
    %v1390 = vunpack.c.l.s4 1966171168
    %v1391 = vunpack.c.0.s8 %v1390
    %v1392 = vlaneseq
    %v1393 = vshrl.u32 %v1392, 7
    %v1394 = vsub.s32 %v1391, %v1393
    %v1395 = vrot.slane %v1379, %v1394
    %v1397 = vunpack.c.l.s4 1966171168
    %v1398 = vunpack.c.0.s8 %v1397
    %v1399 = vlaneseq
    %v1400 = vshrl.u32 %v1399, 7
    %v1401 = vsub.s32 %v1398, %v1400
    %v1402 = vrot.slane %v1386, %v1401
    %v1404 = vunpack.c.l.s4 1966171168
    %v1405 = vunpack.c.0.s8 %v1404
    %v1406 = vlaneseq
    %v1407 = vshrl.u32 %v1406, 7
    %v1408 = vsub.s32 %v1405, %v1407
    %v1409 = vrot.slane %v1387, %v1408
    %v1411 = vunpack.c.l.s4 1966171168
    %v1412 = vunpack.c.0.s8 %v1411
    %v1413 = vlaneseq
    %v1414 = vshrl.u32 %v1413, 7
    %v1415 = vsub.s32 %v1412, %v1414
    %v1416 = vrot.slane %v1388, %v1415
    %v1417 = vcombine.high %v1395, %v1395
    %v1418 = vcombine.high %v1402, %v1402
    %v1419 = vcombine.high %v1409, %v1409
    %v1420 = vcombine.high %v1416, %v1416
    %v1429 = vmul.f32 %v76, %v1395
    %v1430 = vmul.f32 %v77, %v1409
    %v1431 = vmul.f32 %v78, %v1417
    %v1432 = vmul.f32 %v79, %v1419
    %v1433 = vmul.f32 %v80, %v1402
    %v1434 = vmul.f32 %v81, %v1416
    %v1435 = vmul.f32 %v82, %v1418
    %v1436 = vmul.f32 %v83, %v1420
    %v1438 = vlaneseq
    %v1439 = vshrl.u32 %v1438, 7
    %v1440 = vsub.s32 0, %v1439
    %v1441 = vrot.slane %v1359, %v1440
    %v1442 = vlaneseq
    %v1443 = vshrl.u32 %v1442, 7
    %v1444 = vsub.s32 1, %v1443
    %v1445 = vrot.slane %v1359, %v1444
    %v1446 = vcombine.low %v1441, %v1445
    %v1447 = vcombine.high %v1441, %v1445
    %v1449 = vunpack.c.l.s4 1966171168
    %v1450 = vunpack.c.0.s8 %v1449
    %v1451 = vlaneseq
    %v1452 = vshrl.u32 %v1451, 7
    %v1453 = vsub.s32 %v1450, %v1452
    %v1454 = vrot.slane %v1446, %v1453
    %v1456 = vunpack.c.l.s4 1966171168
    %v1457 = vunpack.c.0.s8 %v1456
    %v1458 = vlaneseq
    %v1459 = vshrl.u32 %v1458, 7
    %v1460 = vsub.s32 %v1457, %v1459
    %v1461 = vrot.slane %v1447, %v1460
    %v1462 = vcombine.high %v1454, %v1454
    %v1463 = vcombine.high %v1461, %v1461
    %v1465 = vunpack.c.l.s4 1966171168
    %v1466 = vunpack.c.0.s8 %v1465
    %v1467 = vlaneseq
    %v1468 = vshrl.u32 %v1467, 7
    %v1469 = vsub.s32 %v1466, %v1468
    %v1470 = vrot.slane %v1454, %v1469
    %v1472 = vunpack.c.l.s4 1966171168
    %v1473 = vunpack.c.0.s8 %v1472
    %v1474 = vlaneseq
    %v1475 = vshrl.u32 %v1474, 7
    %v1476 = vsub.s32 %v1473, %v1475
    %v1477 = vrot.slane %v1461, %v1476
    %v1479 = vunpack.c.l.s4 1966171168
    %v1480 = vunpack.c.0.s8 %v1479
    %v1481 = vlaneseq
    %v1482 = vshrl.u32 %v1481, 7
    %v1483 = vsub.s32 %v1480, %v1482
    %v1484 = vrot.slane %v1462, %v1483
    %v1486 = vunpack.c.l.s4 1966171168
    %v1487 = vunpack.c.0.s8 %v1486
    %v1488 = vlaneseq
    %v1489 = vshrl.u32 %v1488, 7
    %v1490 = vsub.s32 %v1487, %v1489
    %v1491 = vrot.slane %v1463, %v1490
    %v1492 = vcombine.high %v1470, %v1470
    %v1493 = vcombine.high %v1477, %v1477
    %v1494 = vcombine.high %v1484, %v1484
    %v1495 = vcombine.high %v1491, %v1491
    %v1504 = vadd.f32 %v1429, %v1470
    %v1505 = vadd.f32 %v1430, %v1484
    %v1506 = vadd.f32 %v1431, %v1492
    %v1507 = vadd.f32 %v1432, %v1494
    %v1508 = vadd.f32 %v1433, %v1477
    %v1509 = vadd.f32 %v1434, %v1491
    %v1510 = vadd.f32 %v1435, %v1493
    %v1511 = vadd.f32 %v1436, %v1495
    %v1512 = vmax.f32 %v1504, 0.0
    %v1513 = vmax.f32 %v1505, 0.0
    %v1514 = vmax.f32 %v1506, 0.0
    %v1515 = vmax.f32 %v1507, 0.0
    %v1516 = vmax.f32 %v1508, 0.0
    %v1517 = vmax.f32 %v1509, 0.0
    %v1518 = vmax.f32 %v1510, 0.0
    %v1519 = vmax.f32 %v1511, 0.0
    %v1521 = vlaneseq
    %v1522 = vshrl.u32 %v1521, 7
    %v1523 = vsub.s32 0, %v1522
    %v1524 = vrot.slane %v1361, %v1523
    %v1525 = vlaneseq
    %v1526 = vshrl.u32 %v1525, 7
    %v1527 = vsub.s32 1, %v1526
    %v1528 = vrot.slane %v1361, %v1527
    %v1539 = vcombine.low %v1512, %v1513
    %v1540 = vcombine.low %v1514, %v1515
    %v1541 = vcombine.low %v1516, %v1517
    %v1542 = vcombine.low %v1518, %v1519
    %v1544 = vunpack.c.l.s4 1966171168
    %v1545 = vunpack.c.0.s8 %v1544
    %v1546 = vlaneseq
    %v1547 = vshrl.u32 %v1546, 7
    %v1548 = vsub.s32 %v1545, %v1547
    %v1549 = vrot.slane %v1539, %v1548
    %v1551 = vunpack.c.l.s4 1966171168
    %v1552 = vunpack.c.0.s8 %v1551
    %v1553 = vlaneseq
    %v1554 = vshrl.u32 %v1553, 7
    %v1555 = vsub.s32 %v1552, %v1554
    %v1556 = vrot.slane %v1540, %v1555
    %v1558 = vunpack.c.l.s4 1966171168
    %v1559 = vunpack.c.0.s8 %v1558
    %v1560 = vlaneseq
    %v1561 = vshrl.u32 %v1560, 7
    %v1562 = vsub.s32 %v1559, %v1561
    %v1563 = vrot.slane %v1541, %v1562
    %v1565 = vunpack.c.l.s4 1966171168
    %v1566 = vunpack.c.0.s8 %v1565
    %v1567 = vlaneseq
    %v1568 = vshrl.u32 %v1567, 7
    %v1569 = vsub.s32 %v1566, %v1568
    %v1570 = vrot.slane %v1542, %v1569
    %v1571 = vcombine.low %v1549, %v1556
    %v1572 = vcombine.high %v1549, %v1556
    %v1573 = vcombine.low %v1563, %v1570
    %v1574 = vcombine.high %v1563, %v1570
    %v1576 = vunpack.c.l.s4 1966171168
    %v1577 = vunpack.c.0.s8 %v1576
    %v1578 = vlaneseq
    %v1579 = vshrl.u32 %v1578, 7
    %v1580 = vsub.s32 %v1577, %v1579
    %v1581 = vrot.slane %v1571, %v1580
    %v1583 = vunpack.c.l.s4 1966171168
    %v1584 = vunpack.c.0.s8 %v1583
    %v1585 = vlaneseq
    %v1586 = vshrl.u32 %v1585, 7
    %v1587 = vsub.s32 %v1584, %v1586
    %v1588 = vrot.slane %v1572, %v1587
    %v1590 = vunpack.c.l.s4 1966171168
    %v1591 = vunpack.c.0.s8 %v1590
    %v1592 = vlaneseq
    %v1593 = vshrl.u32 %v1592, 7
    %v1594 = vsub.s32 %v1591, %v1593
    %v1595 = vrot.slane %v1573, %v1594
    %v1597 = vunpack.c.l.s4 1966171168
    %v1598 = vunpack.c.0.s8 %v1597
    %v1599 = vlaneseq
    %v1600 = vshrl.u32 %v1599, 7
    %v1601 = vsub.s32 %v1598, %v1600
    %v1602 = vrot.slane %v1574, %v1601
    %v1603 = vcombine.low %v1581, %v1595
    %v1604 = vcombine.low %v1588, %v1602
    %v1607 = vmul.f32 %v1524, %v1603
    %v1608 = vmul.f32 %v1528, %v1604
    %v1609 = vadd.f32 %v1354, %v1607
    %v1610 = vadd.f32 %v1355, %v1608
    %s1611 = scalar_lea.vmem [#allocation5], 6
    %v1612 = vld [vmem:[%s1611] ss:$8 sm:$0x3]
    %s1613 = scalar_lea.vmem [#allocation7], 6
    %v1614 = vld [vmem:[%s1613] ss:$8 sm:$0x3]
    %s1615 = scalar_lea.vmem [#allocation8], 6
    %v1616 = vld [vmem:[%s1615] ss:$8 sm:$0x3]
    %v1618 = vlaneseq
    %v1619 = vshrl.u32 %v1618, 7
    %v1620 = vsub.s32 0, %v1619
    %v1621 = vrot.slane %v1612, %v1620
    %v1622 = vlaneseq
    %v1623 = vshrl.u32 %v1622, 7
    %v1624 = vsub.s32 1, %v1623
    %v1625 = vrot.slane %v1612, %v1624
    %v1626 = vcombine.low %v1621, %v1625
    %v1627 = vcombine.high %v1621, %v1625
    %v1629 = vunpack.c.l.s4 1966171168
    %v1630 = vunpack.c.0.s8 %v1629
    %v1631 = vlaneseq
    %v1632 = vshrl.u32 %v1631, 7
    %v1633 = vsub.s32 %v1630, %v1632
    %v1634 = vrot.slane %v1626, %v1633
    %v1636 = vunpack.c.l.s4 1966171168
    %v1637 = vunpack.c.0.s8 %v1636
    %v1638 = vlaneseq
    %v1639 = vshrl.u32 %v1638, 7
    %v1640 = vsub.s32 %v1637, %v1639
    %v1641 = vrot.slane %v1627, %v1640
    %v1642 = vcombine.high %v1634, %v1634
    %v1643 = vcombine.high %v1641, %v1641
    %v1645 = vunpack.c.l.s4 1966171168
    %v1646 = vunpack.c.0.s8 %v1645
    %v1647 = vlaneseq
    %v1648 = vshrl.u32 %v1647, 7
    %v1649 = vsub.s32 %v1646, %v1648
    %v1650 = vrot.slane %v1634, %v1649
    %v1652 = vunpack.c.l.s4 1966171168
    %v1653 = vunpack.c.0.s8 %v1652
    %v1654 = vlaneseq
    %v1655 = vshrl.u32 %v1654, 7
    %v1656 = vsub.s32 %v1653, %v1655
    %v1657 = vrot.slane %v1641, %v1656
    %v1659 = vunpack.c.l.s4 1966171168
    %v1660 = vunpack.c.0.s8 %v1659
    %v1661 = vlaneseq
    %v1662 = vshrl.u32 %v1661, 7
    %v1663 = vsub.s32 %v1660, %v1662
    %v1664 = vrot.slane %v1642, %v1663
    %v1666 = vunpack.c.l.s4 1966171168
    %v1667 = vunpack.c.0.s8 %v1666
    %v1668 = vlaneseq
    %v1669 = vshrl.u32 %v1668, 7
    %v1670 = vsub.s32 %v1667, %v1669
    %v1671 = vrot.slane %v1643, %v1670
    %v1672 = vcombine.high %v1650, %v1650
    %v1673 = vcombine.high %v1657, %v1657
    %v1674 = vcombine.high %v1664, %v1664
    %v1675 = vcombine.high %v1671, %v1671
    %v1684 = vmul.f32 %v76, %v1650
    %v1685 = vmul.f32 %v77, %v1664
    %v1686 = vmul.f32 %v78, %v1672
    %v1687 = vmul.f32 %v79, %v1674
    %v1688 = vmul.f32 %v80, %v1657
    %v1689 = vmul.f32 %v81, %v1671
    %v1690 = vmul.f32 %v82, %v1673
    %v1691 = vmul.f32 %v83, %v1675
    %v1693 = vlaneseq
    %v1694 = vshrl.u32 %v1693, 7
    %v1695 = vsub.s32 0, %v1694
    %v1696 = vrot.slane %v1614, %v1695
    %v1697 = vlaneseq
    %v1698 = vshrl.u32 %v1697, 7
    %v1699 = vsub.s32 1, %v1698
    %v1700 = vrot.slane %v1614, %v1699
    %v1701 = vcombine.low %v1696, %v1700
    %v1702 = vcombine.high %v1696, %v1700
    %v1704 = vunpack.c.l.s4 1966171168
    %v1705 = vunpack.c.0.s8 %v1704
    %v1706 = vlaneseq
    %v1707 = vshrl.u32 %v1706, 7
    %v1708 = vsub.s32 %v1705, %v1707
    %v1709 = vrot.slane %v1701, %v1708
    %v1711 = vunpack.c.l.s4 1966171168
    %v1712 = vunpack.c.0.s8 %v1711
    %v1713 = vlaneseq
    %v1714 = vshrl.u32 %v1713, 7
    %v1715 = vsub.s32 %v1712, %v1714
    %v1716 = vrot.slane %v1702, %v1715
    %v1717 = vcombine.high %v1709, %v1709
    %v1718 = vcombine.high %v1716, %v1716
    %v1720 = vunpack.c.l.s4 1966171168
    %v1721 = vunpack.c.0.s8 %v1720
    %v1722 = vlaneseq
    %v1723 = vshrl.u32 %v1722, 7
    %v1724 = vsub.s32 %v1721, %v1723
    %v1725 = vrot.slane %v1709, %v1724
    %v1727 = vunpack.c.l.s4 1966171168
    %v1728 = vunpack.c.0.s8 %v1727
    %v1729 = vlaneseq
    %v1730 = vshrl.u32 %v1729, 7
    %v1731 = vsub.s32 %v1728, %v1730
    %v1732 = vrot.slane %v1716, %v1731
    %v1734 = vunpack.c.l.s4 1966171168
    %v1735 = vunpack.c.0.s8 %v1734
    %v1736 = vlaneseq
    %v1737 = vshrl.u32 %v1736, 7
    %v1738 = vsub.s32 %v1735, %v1737
    %v1739 = vrot.slane %v1717, %v1738
    %v1741 = vunpack.c.l.s4 1966171168
    %v1742 = vunpack.c.0.s8 %v1741
    %v1743 = vlaneseq
    %v1744 = vshrl.u32 %v1743, 7
    %v1745 = vsub.s32 %v1742, %v1744
    %v1746 = vrot.slane %v1718, %v1745
    %v1747 = vcombine.high %v1725, %v1725
    %v1748 = vcombine.high %v1732, %v1732
    %v1749 = vcombine.high %v1739, %v1739
    %v1750 = vcombine.high %v1746, %v1746
    %v1759 = vadd.f32 %v1684, %v1725
    %v1760 = vadd.f32 %v1685, %v1739
    %v1761 = vadd.f32 %v1686, %v1747
    %v1762 = vadd.f32 %v1687, %v1749
    %v1763 = vadd.f32 %v1688, %v1732
    %v1764 = vadd.f32 %v1689, %v1746
    %v1765 = vadd.f32 %v1690, %v1748
    %v1766 = vadd.f32 %v1691, %v1750
    %v1767 = vmax.f32 %v1759, 0.0
    %v1768 = vmax.f32 %v1760, 0.0
    %v1769 = vmax.f32 %v1761, 0.0
    %v1770 = vmax.f32 %v1762, 0.0
    %v1771 = vmax.f32 %v1763, 0.0
    %v1772 = vmax.f32 %v1764, 0.0
    %v1773 = vmax.f32 %v1765, 0.0
    %v1774 = vmax.f32 %v1766, 0.0
    %v1776 = vlaneseq
    %v1777 = vshrl.u32 %v1776, 7
    %v1778 = vsub.s32 0, %v1777
    %v1779 = vrot.slane %v1616, %v1778
    %v1780 = vlaneseq
    %v1781 = vshrl.u32 %v1780, 7
    %v1782 = vsub.s32 1, %v1781
    %v1783 = vrot.slane %v1616, %v1782
    %v1794 = vcombine.low %v1767, %v1768
    %v1795 = vcombine.low %v1769, %v1770
    %v1796 = vcombine.low %v1771, %v1772
    %v1797 = vcombine.low %v1773, %v1774
    %v1799 = vunpack.c.l.s4 1966171168
    %v1800 = vunpack.c.0.s8 %v1799
    %v1801 = vlaneseq
    %v1802 = vshrl.u32 %v1801, 7
    %v1803 = vsub.s32 %v1800, %v1802
    %v1804 = vrot.slane %v1794, %v1803
    %v1806 = vunpack.c.l.s4 1966171168
    %v1807 = vunpack.c.0.s8 %v1806
    %v1808 = vlaneseq
    %v1809 = vshrl.u32 %v1808, 7
    %v1810 = vsub.s32 %v1807, %v1809
    %v1811 = vrot.slane %v1795, %v1810
    %v1813 = vunpack.c.l.s4 1966171168
    %v1814 = vunpack.c.0.s8 %v1813
    %v1815 = vlaneseq
    %v1816 = vshrl.u32 %v1815, 7
    %v1817 = vsub.s32 %v1814, %v1816
    %v1818 = vrot.slane %v1796, %v1817
    %v1820 = vunpack.c.l.s4 1966171168
    %v1821 = vunpack.c.0.s8 %v1820
    %v1822 = vlaneseq
    %v1823 = vshrl.u32 %v1822, 7
    %v1824 = vsub.s32 %v1821, %v1823
    %v1825 = vrot.slane %v1797, %v1824
    %v1826 = vcombine.low %v1804, %v1811
    %v1827 = vcombine.high %v1804, %v1811
    %v1828 = vcombine.low %v1818, %v1825
    %v1829 = vcombine.high %v1818, %v1825
    %v1831 = vunpack.c.l.s4 1966171168
    %v1832 = vunpack.c.0.s8 %v1831
    %v1833 = vlaneseq
    %v1834 = vshrl.u32 %v1833, 7
    %v1835 = vsub.s32 %v1832, %v1834
    %v1836 = vrot.slane %v1826, %v1835
    %v1838 = vunpack.c.l.s4 1966171168
    %v1839 = vunpack.c.0.s8 %v1838
    %v1840 = vlaneseq
    %v1841 = vshrl.u32 %v1840, 7
    %v1842 = vsub.s32 %v1839, %v1841
    %v1843 = vrot.slane %v1827, %v1842
    %v1845 = vunpack.c.l.s4 1966171168
    %v1846 = vunpack.c.0.s8 %v1845
    %v1847 = vlaneseq
    %v1848 = vshrl.u32 %v1847, 7
    %v1849 = vsub.s32 %v1846, %v1848
    %v1850 = vrot.slane %v1828, %v1849
    %v1852 = vunpack.c.l.s4 1966171168
    %v1853 = vunpack.c.0.s8 %v1852
    %v1854 = vlaneseq
    %v1855 = vshrl.u32 %v1854, 7
    %v1856 = vsub.s32 %v1853, %v1855
    %v1857 = vrot.slane %v1829, %v1856
    %v1858 = vcombine.low %v1836, %v1850
    %v1859 = vcombine.low %v1843, %v1857
    %v1862 = vmul.f32 %v1779, %v1858
    %v1863 = vmul.f32 %v1783, %v1859
    %v1864 = vadd.f32 %v1609, %v1862
    %v1865 = vadd.f32 %v1610, %v1863
    %s1866 = scalar_lea.vmem [#allocation5], 7
    %v1867 = vld [vmem:[%s1866] ss:$8 sm:$0x3]
    %s1868 = scalar_lea.vmem [#allocation7], 7
    %v1869 = vld [vmem:[%s1868] ss:$8 sm:$0x3]
    %s1870 = scalar_lea.vmem [#allocation8], 7
    %v1871 = vld [vmem:[%s1870] ss:$8 sm:$0x3]
    %v1873 = vlaneseq
    %v1874 = vshrl.u32 %v1873, 7
    %v1875 = vsub.s32 0, %v1874
    %v1876 = vrot.slane %v1867, %v1875
    %v1877 = vlaneseq
    %v1878 = vshrl.u32 %v1877, 7
    %v1879 = vsub.s32 1, %v1878
    %v1880 = vrot.slane %v1867, %v1879
    %v1881 = vcombine.low %v1876, %v1880
    %v1882 = vcombine.high %v1876, %v1880
    %v1884 = vunpack.c.l.s4 1966171168
    %v1885 = vunpack.c.0.s8 %v1884
    %v1886 = vlaneseq
    %v1887 = vshrl.u32 %v1886, 7
    %v1888 = vsub.s32 %v1885, %v1887
    %v1889 = vrot.slane %v1881, %v1888
    %v1891 = vunpack.c.l.s4 1966171168
    %v1892 = vunpack.c.0.s8 %v1891
    %v1893 = vlaneseq
    %v1894 = vshrl.u32 %v1893, 7
    %v1895 = vsub.s32 %v1892, %v1894
    %v1896 = vrot.slane %v1882, %v1895
    %v1897 = vcombine.high %v1889, %v1889
    %v1898 = vcombine.high %v1896, %v1896
    %v1900 = vunpack.c.l.s4 1966171168
    %v1901 = vunpack.c.0.s8 %v1900
    %v1902 = vlaneseq
    %v1903 = vshrl.u32 %v1902, 7
    %v1904 = vsub.s32 %v1901, %v1903
    %v1905 = vrot.slane %v1889, %v1904
    %v1907 = vunpack.c.l.s4 1966171168
    %v1908 = vunpack.c.0.s8 %v1907
    %v1909 = vlaneseq
    %v1910 = vshrl.u32 %v1909, 7
    %v1911 = vsub.s32 %v1908, %v1910
    %v1912 = vrot.slane %v1896, %v1911
    %v1914 = vunpack.c.l.s4 1966171168
    %v1915 = vunpack.c.0.s8 %v1914
    %v1916 = vlaneseq
    %v1917 = vshrl.u32 %v1916, 7
    %v1918 = vsub.s32 %v1915, %v1917
    %v1919 = vrot.slane %v1897, %v1918
    %v1921 = vunpack.c.l.s4 1966171168
    %v1922 = vunpack.c.0.s8 %v1921
    %v1923 = vlaneseq
    %v1924 = vshrl.u32 %v1923, 7
    %v1925 = vsub.s32 %v1922, %v1924
    %v1926 = vrot.slane %v1898, %v1925
    %v1927 = vcombine.high %v1905, %v1905
    %v1928 = vcombine.high %v1912, %v1912
    %v1929 = vcombine.high %v1919, %v1919
    %v1930 = vcombine.high %v1926, %v1926
    %v1939 = vmul.f32 %v76, %v1905
    %v1940 = vmul.f32 %v77, %v1919
    %v1941 = vmul.f32 %v78, %v1927
    %v1942 = vmul.f32 %v79, %v1929
    %v1943 = vmul.f32 %v80, %v1912
    %v1944 = vmul.f32 %v81, %v1926
    %v1945 = vmul.f32 %v82, %v1928
    %v1946 = vmul.f32 %v83, %v1930
    %v1948 = vlaneseq
    %v1949 = vshrl.u32 %v1948, 7
    %v1950 = vsub.s32 0, %v1949
    %v1951 = vrot.slane %v1869, %v1950
    %v1952 = vlaneseq
    %v1953 = vshrl.u32 %v1952, 7
    %v1954 = vsub.s32 1, %v1953
    %v1955 = vrot.slane %v1869, %v1954
    %v1956 = vcombine.low %v1951, %v1955
    %v1957 = vcombine.high %v1951, %v1955
    %v1959 = vunpack.c.l.s4 1966171168
    %v1960 = vunpack.c.0.s8 %v1959
    %v1961 = vlaneseq
    %v1962 = vshrl.u32 %v1961, 7
    %v1963 = vsub.s32 %v1960, %v1962
    %v1964 = vrot.slane %v1956, %v1963
    %v1966 = vunpack.c.l.s4 1966171168
    %v1967 = vunpack.c.0.s8 %v1966
    %v1968 = vlaneseq
    %v1969 = vshrl.u32 %v1968, 7
    %v1970 = vsub.s32 %v1967, %v1969
    %v1971 = vrot.slane %v1957, %v1970
    %v1972 = vcombine.high %v1964, %v1964
    %v1973 = vcombine.high %v1971, %v1971
    %v1975 = vunpack.c.l.s4 1966171168
    %v1976 = vunpack.c.0.s8 %v1975
    %v1977 = vlaneseq
    %v1978 = vshrl.u32 %v1977, 7
    %v1979 = vsub.s32 %v1976, %v1978
    %v1980 = vrot.slane %v1964, %v1979
    %v1982 = vunpack.c.l.s4 1966171168
    %v1983 = vunpack.c.0.s8 %v1982
    %v1984 = vlaneseq
    %v1985 = vshrl.u32 %v1984, 7
    %v1986 = vsub.s32 %v1983, %v1985
    %v1987 = vrot.slane %v1971, %v1986
    %v1989 = vunpack.c.l.s4 1966171168
    %v1990 = vunpack.c.0.s8 %v1989
    %v1991 = vlaneseq
    %v1992 = vshrl.u32 %v1991, 7
    %v1993 = vsub.s32 %v1990, %v1992
    %v1994 = vrot.slane %v1972, %v1993
    %v1996 = vunpack.c.l.s4 1966171168
    %v1997 = vunpack.c.0.s8 %v1996
    %v1998 = vlaneseq
    %v1999 = vshrl.u32 %v1998, 7
    %v2000 = vsub.s32 %v1997, %v1999
    %v2001 = vrot.slane %v1973, %v2000
    %v2002 = vcombine.high %v1980, %v1980
    %v2003 = vcombine.high %v1987, %v1987
    %v2004 = vcombine.high %v1994, %v1994
    %v2005 = vcombine.high %v2001, %v2001
    %v2014 = vadd.f32 %v1939, %v1980
    %v2015 = vadd.f32 %v1940, %v1994
    %v2016 = vadd.f32 %v1941, %v2002
    %v2017 = vadd.f32 %v1942, %v2004
    %v2018 = vadd.f32 %v1943, %v1987
    %v2019 = vadd.f32 %v1944, %v2001
    %v2020 = vadd.f32 %v1945, %v2003
    %v2021 = vadd.f32 %v1946, %v2005
    %v2022 = vmax.f32 %v2014, 0.0
    %v2023 = vmax.f32 %v2015, 0.0
    %v2024 = vmax.f32 %v2016, 0.0
    %v2025 = vmax.f32 %v2017, 0.0
    %v2026 = vmax.f32 %v2018, 0.0
    %v2027 = vmax.f32 %v2019, 0.0
    %v2028 = vmax.f32 %v2020, 0.0
    %v2029 = vmax.f32 %v2021, 0.0
    %v2031 = vlaneseq
    %v2032 = vshrl.u32 %v2031, 7
    %v2033 = vsub.s32 0, %v2032
    %v2034 = vrot.slane %v1871, %v2033
    %v2035 = vlaneseq
    %v2036 = vshrl.u32 %v2035, 7
    %v2037 = vsub.s32 1, %v2036
    %v2038 = vrot.slane %v1871, %v2037
    %v2049 = vcombine.low %v2022, %v2023
    %v2050 = vcombine.low %v2024, %v2025
    %v2051 = vcombine.low %v2026, %v2027
    %v2052 = vcombine.low %v2028, %v2029
    %v2054 = vunpack.c.l.s4 1966171168
    %v2055 = vunpack.c.0.s8 %v2054
    %v2056 = vlaneseq
    %v2057 = vshrl.u32 %v2056, 7
    %v2058 = vsub.s32 %v2055, %v2057
    %v2059 = vrot.slane %v2049, %v2058
    %v2061 = vunpack.c.l.s4 1966171168
    %v2062 = vunpack.c.0.s8 %v2061
    %v2063 = vlaneseq
    %v2064 = vshrl.u32 %v2063, 7
    %v2065 = vsub.s32 %v2062, %v2064
    %v2066 = vrot.slane %v2050, %v2065
    %v2068 = vunpack.c.l.s4 1966171168
    %v2069 = vunpack.c.0.s8 %v2068
    %v2070 = vlaneseq
    %v2071 = vshrl.u32 %v2070, 7
    %v2072 = vsub.s32 %v2069, %v2071
    %v2073 = vrot.slane %v2051, %v2072
    %v2075 = vunpack.c.l.s4 1966171168
    %v2076 = vunpack.c.0.s8 %v2075
    %v2077 = vlaneseq
    %v2078 = vshrl.u32 %v2077, 7
    %v2079 = vsub.s32 %v2076, %v2078
    %v2080 = vrot.slane %v2052, %v2079
    %v2081 = vcombine.low %v2059, %v2066
    %v2082 = vcombine.high %v2059, %v2066
    %v2083 = vcombine.low %v2073, %v2080
    %v2084 = vcombine.high %v2073, %v2080
    %v2086 = vunpack.c.l.s4 1966171168
    %v2087 = vunpack.c.0.s8 %v2086
    %v2088 = vlaneseq
    %v2089 = vshrl.u32 %v2088, 7
    %v2090 = vsub.s32 %v2087, %v2089
    %v2091 = vrot.slane %v2081, %v2090
    %v2093 = vunpack.c.l.s4 1966171168
    %v2094 = vunpack.c.0.s8 %v2093
    %v2095 = vlaneseq
    %v2096 = vshrl.u32 %v2095, 7
    %v2097 = vsub.s32 %v2094, %v2096
    %v2098 = vrot.slane %v2082, %v2097
    %v2100 = vunpack.c.l.s4 1966171168
    %v2101 = vunpack.c.0.s8 %v2100
    %v2102 = vlaneseq
    %v2103 = vshrl.u32 %v2102, 7
    %v2104 = vsub.s32 %v2101, %v2103
    %v2105 = vrot.slane %v2083, %v2104
    %v2107 = vunpack.c.l.s4 1966171168
    %v2108 = vunpack.c.0.s8 %v2107
    %v2109 = vlaneseq
    %v2110 = vshrl.u32 %v2109, 7
    %v2111 = vsub.s32 %v2108, %v2110
    %v2112 = vrot.slane %v2084, %v2111
    %v2113 = vcombine.low %v2091, %v2105
    %v2114 = vcombine.low %v2098, %v2112
    %v2117 = vmul.f32 %v2034, %v2113
    %v2118 = vmul.f32 %v2038, %v2114
    %v2119 = vadd.f32 %v1864, %v2117
    %v2120 = vadd.f32 %v1865, %v2118
    %s2121 = scalar_lea.vmem [#allocation5], 16
    %v2122 = vld [vmem:[%s2121] ss:$8 sm:$0x3]
    %s2123 = scalar_lea.vmem [#allocation7], 16
    %v2124 = vld [vmem:[%s2123] ss:$8 sm:$0x3]
    %s2125 = scalar_lea.vmem [#allocation8], 16
    %v2126 = vld [vmem:[%s2125] ss:$8 sm:$0x3]
    %v2128 = vlaneseq
    %v2129 = vshrl.u32 %v2128, 7
    %v2130 = vsub.s32 0, %v2129
    %v2131 = vrot.slane %v2122, %v2130
    %v2132 = vlaneseq
    %v2133 = vshrl.u32 %v2132, 7
    %v2134 = vsub.s32 1, %v2133
    %v2135 = vrot.slane %v2122, %v2134
    %v2136 = vcombine.low %v2131, %v2135
    %v2137 = vcombine.high %v2131, %v2135
    %v2139 = vunpack.c.l.s4 1966171168
    %v2140 = vunpack.c.0.s8 %v2139
    %v2141 = vlaneseq
    %v2142 = vshrl.u32 %v2141, 7
    %v2143 = vsub.s32 %v2140, %v2142
    %v2144 = vrot.slane %v2136, %v2143
    %v2146 = vunpack.c.l.s4 1966171168
    %v2147 = vunpack.c.0.s8 %v2146
    %v2148 = vlaneseq
    %v2149 = vshrl.u32 %v2148, 7
    %v2150 = vsub.s32 %v2147, %v2149
    %v2151 = vrot.slane %v2137, %v2150
    %v2152 = vcombine.high %v2144, %v2144
    %v2153 = vcombine.high %v2151, %v2151
    %v2155 = vunpack.c.l.s4 1966171168
    %v2156 = vunpack.c.0.s8 %v2155
    %v2157 = vlaneseq
    %v2158 = vshrl.u32 %v2157, 7
    %v2159 = vsub.s32 %v2156, %v2158
    %v2160 = vrot.slane %v2144, %v2159
    %v2162 = vunpack.c.l.s4 1966171168
    %v2163 = vunpack.c.0.s8 %v2162
    %v2164 = vlaneseq
    %v2165 = vshrl.u32 %v2164, 7
    %v2166 = vsub.s32 %v2163, %v2165
    %v2167 = vrot.slane %v2151, %v2166
    %v2169 = vunpack.c.l.s4 1966171168
    %v2170 = vunpack.c.0.s8 %v2169
    %v2171 = vlaneseq
    %v2172 = vshrl.u32 %v2171, 7
    %v2173 = vsub.s32 %v2170, %v2172
    %v2174 = vrot.slane %v2152, %v2173
    %v2176 = vunpack.c.l.s4 1966171168
    %v2177 = vunpack.c.0.s8 %v2176
    %v2178 = vlaneseq
    %v2179 = vshrl.u32 %v2178, 7
    %v2180 = vsub.s32 %v2177, %v2179
    %v2181 = vrot.slane %v2153, %v2180
    %v2182 = vcombine.high %v2160, %v2160
    %v2183 = vcombine.high %v2167, %v2167
    %v2184 = vcombine.high %v2174, %v2174
    %v2185 = vcombine.high %v2181, %v2181
    %v2194 = vmul.f32 %v76, %v2160
    %v2195 = vmul.f32 %v77, %v2174
    %v2196 = vmul.f32 %v78, %v2182
    %v2197 = vmul.f32 %v79, %v2184
    %v2198 = vmul.f32 %v80, %v2167
    %v2199 = vmul.f32 %v81, %v2181
    %v2200 = vmul.f32 %v82, %v2183
    %v2201 = vmul.f32 %v83, %v2185
    %v2203 = vlaneseq
    %v2204 = vshrl.u32 %v2203, 7
    %v2205 = vsub.s32 0, %v2204
    %v2206 = vrot.slane %v2124, %v2205
    %v2207 = vlaneseq
    %v2208 = vshrl.u32 %v2207, 7
    %v2209 = vsub.s32 1, %v2208
    %v2210 = vrot.slane %v2124, %v2209
    %v2211 = vcombine.low %v2206, %v2210
    %v2212 = vcombine.high %v2206, %v2210
    %v2214 = vunpack.c.l.s4 1966171168
    %v2215 = vunpack.c.0.s8 %v2214
    %v2216 = vlaneseq
    %v2217 = vshrl.u32 %v2216, 7
    %v2218 = vsub.s32 %v2215, %v2217
    %v2219 = vrot.slane %v2211, %v2218
    %v2221 = vunpack.c.l.s4 1966171168
    %v2222 = vunpack.c.0.s8 %v2221
    %v2223 = vlaneseq
    %v2224 = vshrl.u32 %v2223, 7
    %v2225 = vsub.s32 %v2222, %v2224
    %v2226 = vrot.slane %v2212, %v2225
    %v2227 = vcombine.high %v2219, %v2219
    %v2228 = vcombine.high %v2226, %v2226
    %v2230 = vunpack.c.l.s4 1966171168
    %v2231 = vunpack.c.0.s8 %v2230
    %v2232 = vlaneseq
    %v2233 = vshrl.u32 %v2232, 7
    %v2234 = vsub.s32 %v2231, %v2233
    %v2235 = vrot.slane %v2219, %v2234
    %v2237 = vunpack.c.l.s4 1966171168
    %v2238 = vunpack.c.0.s8 %v2237
    %v2239 = vlaneseq
    %v2240 = vshrl.u32 %v2239, 7
    %v2241 = vsub.s32 %v2238, %v2240
    %v2242 = vrot.slane %v2226, %v2241
    %v2244 = vunpack.c.l.s4 1966171168
    %v2245 = vunpack.c.0.s8 %v2244
    %v2246 = vlaneseq
    %v2247 = vshrl.u32 %v2246, 7
    %v2248 = vsub.s32 %v2245, %v2247
    %v2249 = vrot.slane %v2227, %v2248
    %v2251 = vunpack.c.l.s4 1966171168
    %v2252 = vunpack.c.0.s8 %v2251
    %v2253 = vlaneseq
    %v2254 = vshrl.u32 %v2253, 7
    %v2255 = vsub.s32 %v2252, %v2254
    %v2256 = vrot.slane %v2228, %v2255
    %v2257 = vcombine.high %v2235, %v2235
    %v2258 = vcombine.high %v2242, %v2242
    %v2259 = vcombine.high %v2249, %v2249
    %v2260 = vcombine.high %v2256, %v2256
    %v2269 = vadd.f32 %v2194, %v2235
    %v2270 = vadd.f32 %v2195, %v2249
    %v2271 = vadd.f32 %v2196, %v2257
    %v2272 = vadd.f32 %v2197, %v2259
    %v2273 = vadd.f32 %v2198, %v2242
    %v2274 = vadd.f32 %v2199, %v2256
    %v2275 = vadd.f32 %v2200, %v2258
    %v2276 = vadd.f32 %v2201, %v2260
    %v2277 = vmax.f32 %v2269, 0.0
    %v2278 = vmax.f32 %v2270, 0.0
    %v2279 = vmax.f32 %v2271, 0.0
    %v2280 = vmax.f32 %v2272, 0.0
    %v2281 = vmax.f32 %v2273, 0.0
    %v2282 = vmax.f32 %v2274, 0.0
    %v2283 = vmax.f32 %v2275, 0.0
    %v2284 = vmax.f32 %v2276, 0.0
    %v2286 = vlaneseq
    %v2287 = vshrl.u32 %v2286, 7
    %v2288 = vsub.s32 0, %v2287
    %v2289 = vrot.slane %v2126, %v2288
    %v2290 = vlaneseq
    %v2291 = vshrl.u32 %v2290, 7
    %v2292 = vsub.s32 1, %v2291
    %v2293 = vrot.slane %v2126, %v2292
    %v2304 = vcombine.low %v2277, %v2278
    %v2305 = vcombine.low %v2279, %v2280
    %v2306 = vcombine.low %v2281, %v2282
    %v2307 = vcombine.low %v2283, %v2284
    %v2309 = vunpack.c.l.s4 1966171168
    %v2310 = vunpack.c.0.s8 %v2309
    %v2311 = vlaneseq
    %v2312 = vshrl.u32 %v2311, 7
    %v2313 = vsub.s32 %v2310, %v2312
    %v2314 = vrot.slane %v2304, %v2313
    %v2316 = vunpack.c.l.s4 1966171168
    %v2317 = vunpack.c.0.s8 %v2316
    %v2318 = vlaneseq
    %v2319 = vshrl.u32 %v2318, 7
    %v2320 = vsub.s32 %v2317, %v2319
    %v2321 = vrot.slane %v2305, %v2320
    %v2323 = vunpack.c.l.s4 1966171168
    %v2324 = vunpack.c.0.s8 %v2323
    %v2325 = vlaneseq
    %v2326 = vshrl.u32 %v2325, 7
    %v2327 = vsub.s32 %v2324, %v2326
    %v2328 = vrot.slane %v2306, %v2327
    %v2330 = vunpack.c.l.s4 1966171168
    %v2331 = vunpack.c.0.s8 %v2330
    %v2332 = vlaneseq
    %v2333 = vshrl.u32 %v2332, 7
    %v2334 = vsub.s32 %v2331, %v2333
    %v2335 = vrot.slane %v2307, %v2334
    %v2336 = vcombine.low %v2314, %v2321
    %v2337 = vcombine.high %v2314, %v2321
    %v2338 = vcombine.low %v2328, %v2335
    %v2339 = vcombine.high %v2328, %v2335
    %v2341 = vunpack.c.l.s4 1966171168
    %v2342 = vunpack.c.0.s8 %v2341
    %v2343 = vlaneseq
    %v2344 = vshrl.u32 %v2343, 7
    %v2345 = vsub.s32 %v2342, %v2344
    %v2346 = vrot.slane %v2336, %v2345
    %v2348 = vunpack.c.l.s4 1966171168
    %v2349 = vunpack.c.0.s8 %v2348
    %v2350 = vlaneseq
    %v2351 = vshrl.u32 %v2350, 7
    %v2352 = vsub.s32 %v2349, %v2351
    %v2353 = vrot.slane %v2337, %v2352
    %v2355 = vunpack.c.l.s4 1966171168
    %v2356 = vunpack.c.0.s8 %v2355
    %v2357 = vlaneseq
    %v2358 = vshrl.u32 %v2357, 7
    %v2359 = vsub.s32 %v2356, %v2358
    %v2360 = vrot.slane %v2338, %v2359
    %v2362 = vunpack.c.l.s4 1966171168
    %v2363 = vunpack.c.0.s8 %v2362
    %v2364 = vlaneseq
    %v2365 = vshrl.u32 %v2364, 7
    %v2366 = vsub.s32 %v2363, %v2365
    %v2367 = vrot.slane %v2339, %v2366
    %v2368 = vcombine.low %v2346, %v2360
    %v2369 = vcombine.low %v2353, %v2367
    %v2372 = vmul.f32 %v2289, %v2368
    %v2373 = vmul.f32 %v2293, %v2369
    %v2374 = vadd.f32 %v2119, %v2372
    %v2375 = vadd.f32 %v2120, %v2373
    %s2376 = scalar_lea.vmem [#allocation5], 17
    %v2377 = vld [vmem:[%s2376] ss:$8 sm:$0x3]
    %s2378 = scalar_lea.vmem [#allocation7], 17
    %v2379 = vld [vmem:[%s2378] ss:$8 sm:$0x3]
    %s2380 = scalar_lea.vmem [#allocation8], 17
    %v2381 = vld [vmem:[%s2380] ss:$8 sm:$0x3]
    %v2383 = vlaneseq
    %v2384 = vshrl.u32 %v2383, 7
    %v2385 = vsub.s32 0, %v2384
    %v2386 = vrot.slane %v2377, %v2385
    %v2387 = vlaneseq
    %v2388 = vshrl.u32 %v2387, 7
    %v2389 = vsub.s32 1, %v2388
    %v2390 = vrot.slane %v2377, %v2389
    %v2391 = vcombine.low %v2386, %v2390
    %v2392 = vcombine.high %v2386, %v2390
    %v2394 = vunpack.c.l.s4 1966171168
    %v2395 = vunpack.c.0.s8 %v2394
    %v2396 = vlaneseq
    %v2397 = vshrl.u32 %v2396, 7
    %v2398 = vsub.s32 %v2395, %v2397
    %v2399 = vrot.slane %v2391, %v2398
    %v2401 = vunpack.c.l.s4 1966171168
    %v2402 = vunpack.c.0.s8 %v2401
    %v2403 = vlaneseq
    %v2404 = vshrl.u32 %v2403, 7
    %v2405 = vsub.s32 %v2402, %v2404
    %v2406 = vrot.slane %v2392, %v2405
    %v2407 = vcombine.high %v2399, %v2399
    %v2408 = vcombine.high %v2406, %v2406
    %v2410 = vunpack.c.l.s4 1966171168
    %v2411 = vunpack.c.0.s8 %v2410
    %v2412 = vlaneseq
    %v2413 = vshrl.u32 %v2412, 7
    %v2414 = vsub.s32 %v2411, %v2413
    %v2415 = vrot.slane %v2399, %v2414
    %v2417 = vunpack.c.l.s4 1966171168
    %v2418 = vunpack.c.0.s8 %v2417
    %v2419 = vlaneseq
    %v2420 = vshrl.u32 %v2419, 7
    %v2421 = vsub.s32 %v2418, %v2420
    %v2422 = vrot.slane %v2406, %v2421
    %v2424 = vunpack.c.l.s4 1966171168
    %v2425 = vunpack.c.0.s8 %v2424
    %v2426 = vlaneseq
    %v2427 = vshrl.u32 %v2426, 7
    %v2428 = vsub.s32 %v2425, %v2427
    %v2429 = vrot.slane %v2407, %v2428
    %v2431 = vunpack.c.l.s4 1966171168
    %v2432 = vunpack.c.0.s8 %v2431
    %v2433 = vlaneseq
    %v2434 = vshrl.u32 %v2433, 7
    %v2435 = vsub.s32 %v2432, %v2434
    %v2436 = vrot.slane %v2408, %v2435
    %v2437 = vcombine.high %v2415, %v2415
    %v2438 = vcombine.high %v2422, %v2422
    %v2439 = vcombine.high %v2429, %v2429
    %v2440 = vcombine.high %v2436, %v2436
    %v2449 = vmul.f32 %v76, %v2415
    %v2450 = vmul.f32 %v77, %v2429
    %v2451 = vmul.f32 %v78, %v2437
    %v2452 = vmul.f32 %v79, %v2439
    %v2453 = vmul.f32 %v80, %v2422
    %v2454 = vmul.f32 %v81, %v2436
    %v2455 = vmul.f32 %v82, %v2438
    %v2456 = vmul.f32 %v83, %v2440
    %v2458 = vlaneseq
    %v2459 = vshrl.u32 %v2458, 7
    %v2460 = vsub.s32 0, %v2459
    %v2461 = vrot.slane %v2379, %v2460
    %v2462 = vlaneseq
    %v2463 = vshrl.u32 %v2462, 7
    %v2464 = vsub.s32 1, %v2463
    %v2465 = vrot.slane %v2379, %v2464
    %v2466 = vcombine.low %v2461, %v2465
    %v2467 = vcombine.high %v2461, %v2465
    %v2469 = vunpack.c.l.s4 1966171168
    %v2470 = vunpack.c.0.s8 %v2469
    %v2471 = vlaneseq
    %v2472 = vshrl.u32 %v2471, 7
    %v2473 = vsub.s32 %v2470, %v2472
    %v2474 = vrot.slane %v2466, %v2473
    %v2476 = vunpack.c.l.s4 1966171168
    %v2477 = vunpack.c.0.s8 %v2476
    %v2478 = vlaneseq
    %v2479 = vshrl.u32 %v2478, 7
    %v2480 = vsub.s32 %v2477, %v2479
    %v2481 = vrot.slane %v2467, %v2480
    %v2482 = vcombine.high %v2474, %v2474
    %v2483 = vcombine.high %v2481, %v2481
    %v2485 = vunpack.c.l.s4 1966171168
    %v2486 = vunpack.c.0.s8 %v2485
    %v2487 = vlaneseq
    %v2488 = vshrl.u32 %v2487, 7
    %v2489 = vsub.s32 %v2486, %v2488
    %v2490 = vrot.slane %v2474, %v2489
    %v2492 = vunpack.c.l.s4 1966171168
    %v2493 = vunpack.c.0.s8 %v2492
    %v2494 = vlaneseq
    %v2495 = vshrl.u32 %v2494, 7
    %v2496 = vsub.s32 %v2493, %v2495
    %v2497 = vrot.slane %v2481, %v2496
    %v2499 = vunpack.c.l.s4 1966171168
    %v2500 = vunpack.c.0.s8 %v2499
    %v2501 = vlaneseq
    %v2502 = vshrl.u32 %v2501, 7
    %v2503 = vsub.s32 %v2500, %v2502
    %v2504 = vrot.slane %v2482, %v2503
    %v2506 = vunpack.c.l.s4 1966171168
    %v2507 = vunpack.c.0.s8 %v2506
    %v2508 = vlaneseq
    %v2509 = vshrl.u32 %v2508, 7
    %v2510 = vsub.s32 %v2507, %v2509
    %v2511 = vrot.slane %v2483, %v2510
    %v2512 = vcombine.high %v2490, %v2490
    %v2513 = vcombine.high %v2497, %v2497
    %v2514 = vcombine.high %v2504, %v2504
    %v2515 = vcombine.high %v2511, %v2511
    %v2524 = vadd.f32 %v2449, %v2490
    %v2525 = vadd.f32 %v2450, %v2504
    %v2526 = vadd.f32 %v2451, %v2512
    %v2527 = vadd.f32 %v2452, %v2514
    %v2528 = vadd.f32 %v2453, %v2497
    %v2529 = vadd.f32 %v2454, %v2511
    %v2530 = vadd.f32 %v2455, %v2513
    %v2531 = vadd.f32 %v2456, %v2515
    %v2532 = vmax.f32 %v2524, 0.0
    %v2533 = vmax.f32 %v2525, 0.0
    %v2534 = vmax.f32 %v2526, 0.0
    %v2535 = vmax.f32 %v2527, 0.0
    %v2536 = vmax.f32 %v2528, 0.0
    %v2537 = vmax.f32 %v2529, 0.0
    %v2538 = vmax.f32 %v2530, 0.0
    %v2539 = vmax.f32 %v2531, 0.0
    %v2541 = vlaneseq
    %v2542 = vshrl.u32 %v2541, 7
    %v2543 = vsub.s32 0, %v2542
    %v2544 = vrot.slane %v2381, %v2543
    %v2545 = vlaneseq
    %v2546 = vshrl.u32 %v2545, 7
    %v2547 = vsub.s32 1, %v2546
    %v2548 = vrot.slane %v2381, %v2547
    %v2559 = vcombine.low %v2532, %v2533
    %v2560 = vcombine.low %v2534, %v2535
    %v2561 = vcombine.low %v2536, %v2537
    %v2562 = vcombine.low %v2538, %v2539
    %v2564 = vunpack.c.l.s4 1966171168
    %v2565 = vunpack.c.0.s8 %v2564
    %v2566 = vlaneseq
    %v2567 = vshrl.u32 %v2566, 7
    %v2568 = vsub.s32 %v2565, %v2567
    %v2569 = vrot.slane %v2559, %v2568
    %v2571 = vunpack.c.l.s4 1966171168
    %v2572 = vunpack.c.0.s8 %v2571
    %v2573 = vlaneseq
    %v2574 = vshrl.u32 %v2573, 7
    %v2575 = vsub.s32 %v2572, %v2574
    %v2576 = vrot.slane %v2560, %v2575
    %v2578 = vunpack.c.l.s4 1966171168
    %v2579 = vunpack.c.0.s8 %v2578
    %v2580 = vlaneseq
    %v2581 = vshrl.u32 %v2580, 7
    %v2582 = vsub.s32 %v2579, %v2581
    %v2583 = vrot.slane %v2561, %v2582
    %v2585 = vunpack.c.l.s4 1966171168
    %v2586 = vunpack.c.0.s8 %v2585
    %v2587 = vlaneseq
    %v2588 = vshrl.u32 %v2587, 7
    %v2589 = vsub.s32 %v2586, %v2588
    %v2590 = vrot.slane %v2562, %v2589
    %v2591 = vcombine.low %v2569, %v2576
    %v2592 = vcombine.high %v2569, %v2576
    %v2593 = vcombine.low %v2583, %v2590
    %v2594 = vcombine.high %v2583, %v2590
    %v2596 = vunpack.c.l.s4 1966171168
    %v2597 = vunpack.c.0.s8 %v2596
    %v2598 = vlaneseq
    %v2599 = vshrl.u32 %v2598, 7
    %v2600 = vsub.s32 %v2597, %v2599
    %v2601 = vrot.slane %v2591, %v2600
    %v2603 = vunpack.c.l.s4 1966171168
    %v2604 = vunpack.c.0.s8 %v2603
    %v2605 = vlaneseq
    %v2606 = vshrl.u32 %v2605, 7
    %v2607 = vsub.s32 %v2604, %v2606
    %v2608 = vrot.slane %v2592, %v2607
    %v2610 = vunpack.c.l.s4 1966171168
    %v2611 = vunpack.c.0.s8 %v2610
    %v2612 = vlaneseq
    %v2613 = vshrl.u32 %v2612, 7
    %v2614 = vsub.s32 %v2611, %v2613
    %v2615 = vrot.slane %v2593, %v2614
    %v2617 = vunpack.c.l.s4 1966171168
    %v2618 = vunpack.c.0.s8 %v2617
    %v2619 = vlaneseq
    %v2620 = vshrl.u32 %v2619, 7
    %v2621 = vsub.s32 %v2618, %v2620
    %v2622 = vrot.slane %v2594, %v2621
    %v2623 = vcombine.low %v2601, %v2615
    %v2624 = vcombine.low %v2608, %v2622
    %v2627 = vmul.f32 %v2544, %v2623
    %v2628 = vmul.f32 %v2548, %v2624
    %v2629 = vadd.f32 %v2374, %v2627
    %v2630 = vadd.f32 %v2375, %v2628
    %s2631 = scalar_lea.vmem [#allocation5], 18
    %v2632 = vld [vmem:[%s2631] ss:$8 sm:$0x3]
    %s2633 = scalar_lea.vmem [#allocation7], 18
    %v2634 = vld [vmem:[%s2633] ss:$8 sm:$0x3]
    %s2635 = scalar_lea.vmem [#allocation8], 18
    %v2636 = vld [vmem:[%s2635] ss:$8 sm:$0x3]
    %v2638 = vlaneseq
    %v2639 = vshrl.u32 %v2638, 7
    %v2640 = vsub.s32 0, %v2639
    %v2641 = vrot.slane %v2632, %v2640
    %v2642 = vlaneseq
    %v2643 = vshrl.u32 %v2642, 7
    %v2644 = vsub.s32 1, %v2643
    %v2645 = vrot.slane %v2632, %v2644
    %v2646 = vcombine.low %v2641, %v2645
    %v2647 = vcombine.high %v2641, %v2645
    %v2649 = vunpack.c.l.s4 1966171168
    %v2650 = vunpack.c.0.s8 %v2649
    %v2651 = vlaneseq
    %v2652 = vshrl.u32 %v2651, 7
    %v2653 = vsub.s32 %v2650, %v2652
    %v2654 = vrot.slane %v2646, %v2653
    %v2656 = vunpack.c.l.s4 1966171168
    %v2657 = vunpack.c.0.s8 %v2656
    %v2658 = vlaneseq
    %v2659 = vshrl.u32 %v2658, 7
    %v2660 = vsub.s32 %v2657, %v2659
    %v2661 = vrot.slane %v2647, %v2660
    %v2662 = vcombine.high %v2654, %v2654
    %v2663 = vcombine.high %v2661, %v2661
    %v2665 = vunpack.c.l.s4 1966171168
    %v2666 = vunpack.c.0.s8 %v2665
    %v2667 = vlaneseq
    %v2668 = vshrl.u32 %v2667, 7
    %v2669 = vsub.s32 %v2666, %v2668
    %v2670 = vrot.slane %v2654, %v2669
    %v2672 = vunpack.c.l.s4 1966171168
    %v2673 = vunpack.c.0.s8 %v2672
    %v2674 = vlaneseq
    %v2675 = vshrl.u32 %v2674, 7
    %v2676 = vsub.s32 %v2673, %v2675
    %v2677 = vrot.slane %v2661, %v2676
    %v2679 = vunpack.c.l.s4 1966171168
    %v2680 = vunpack.c.0.s8 %v2679
    %v2681 = vlaneseq
    %v2682 = vshrl.u32 %v2681, 7
    %v2683 = vsub.s32 %v2680, %v2682
    %v2684 = vrot.slane %v2662, %v2683
    %v2686 = vunpack.c.l.s4 1966171168
    %v2687 = vunpack.c.0.s8 %v2686
    %v2688 = vlaneseq
    %v2689 = vshrl.u32 %v2688, 7
    %v2690 = vsub.s32 %v2687, %v2689
    %v2691 = vrot.slane %v2663, %v2690
    %v2692 = vcombine.high %v2670, %v2670
    %v2693 = vcombine.high %v2677, %v2677
    %v2694 = vcombine.high %v2684, %v2684
    %v2695 = vcombine.high %v2691, %v2691
    %v2704 = vmul.f32 %v76, %v2670
    %v2705 = vmul.f32 %v77, %v2684
    %v2706 = vmul.f32 %v78, %v2692
    %v2707 = vmul.f32 %v79, %v2694
    %v2708 = vmul.f32 %v80, %v2677
    %v2709 = vmul.f32 %v81, %v2691
    %v2710 = vmul.f32 %v82, %v2693
    %v2711 = vmul.f32 %v83, %v2695
    %v2713 = vlaneseq
    %v2714 = vshrl.u32 %v2713, 7
    %v2715 = vsub.s32 0, %v2714
    %v2716 = vrot.slane %v2634, %v2715
    %v2717 = vlaneseq
    %v2718 = vshrl.u32 %v2717, 7
    %v2719 = vsub.s32 1, %v2718
    %v2720 = vrot.slane %v2634, %v2719
    %v2721 = vcombine.low %v2716, %v2720
    %v2722 = vcombine.high %v2716, %v2720
    %v2724 = vunpack.c.l.s4 1966171168
    %v2725 = vunpack.c.0.s8 %v2724
    %v2726 = vlaneseq
    %v2727 = vshrl.u32 %v2726, 7
    %v2728 = vsub.s32 %v2725, %v2727
    %v2729 = vrot.slane %v2721, %v2728
    %v2731 = vunpack.c.l.s4 1966171168
    %v2732 = vunpack.c.0.s8 %v2731
    %v2733 = vlaneseq
    %v2734 = vshrl.u32 %v2733, 7
    %v2735 = vsub.s32 %v2732, %v2734
    %v2736 = vrot.slane %v2722, %v2735
    %v2737 = vcombine.high %v2729, %v2729
    %v2738 = vcombine.high %v2736, %v2736
    %v2740 = vunpack.c.l.s4 1966171168
    %v2741 = vunpack.c.0.s8 %v2740
    %v2742 = vlaneseq
    %v2743 = vshrl.u32 %v2742, 7
    %v2744 = vsub.s32 %v2741, %v2743
    %v2745 = vrot.slane %v2729, %v2744
    %v2747 = vunpack.c.l.s4 1966171168
    %v2748 = vunpack.c.0.s8 %v2747
    %v2749 = vlaneseq
    %v2750 = vshrl.u32 %v2749, 7
    %v2751 = vsub.s32 %v2748, %v2750
    %v2752 = vrot.slane %v2736, %v2751
    %v2754 = vunpack.c.l.s4 1966171168
    %v2755 = vunpack.c.0.s8 %v2754
    %v2756 = vlaneseq
    %v2757 = vshrl.u32 %v2756, 7
    %v2758 = vsub.s32 %v2755, %v2757
    %v2759 = vrot.slane %v2737, %v2758
    %v2761 = vunpack.c.l.s4 1966171168
    %v2762 = vunpack.c.0.s8 %v2761
    %v2763 = vlaneseq
    %v2764 = vshrl.u32 %v2763, 7
    %v2765 = vsub.s32 %v2762, %v2764
    %v2766 = vrot.slane %v2738, %v2765
    %v2767 = vcombine.high %v2745, %v2745
    %v2768 = vcombine.high %v2752, %v2752
    %v2769 = vcombine.high %v2759, %v2759
    %v2770 = vcombine.high %v2766, %v2766
    %v2779 = vadd.f32 %v2704, %v2745
    %v2780 = vadd.f32 %v2705, %v2759
    %v2781 = vadd.f32 %v2706, %v2767
    %v2782 = vadd.f32 %v2707, %v2769
    %v2783 = vadd.f32 %v2708, %v2752
    %v2784 = vadd.f32 %v2709, %v2766
    %v2785 = vadd.f32 %v2710, %v2768
    %v2786 = vadd.f32 %v2711, %v2770
    %v2787 = vmax.f32 %v2779, 0.0
    %v2788 = vmax.f32 %v2780, 0.0
    %v2789 = vmax.f32 %v2781, 0.0
    %v2790 = vmax.f32 %v2782, 0.0
    %v2791 = vmax.f32 %v2783, 0.0
    %v2792 = vmax.f32 %v2784, 0.0
    %v2793 = vmax.f32 %v2785, 0.0
    %v2794 = vmax.f32 %v2786, 0.0
    %v2796 = vlaneseq
    %v2797 = vshrl.u32 %v2796, 7
    %v2798 = vsub.s32 0, %v2797
    %v2799 = vrot.slane %v2636, %v2798
    %v2800 = vlaneseq
    %v2801 = vshrl.u32 %v2800, 7
    %v2802 = vsub.s32 1, %v2801
    %v2803 = vrot.slane %v2636, %v2802
    %v2814 = vcombine.low %v2787, %v2788
    %v2815 = vcombine.low %v2789, %v2790
    %v2816 = vcombine.low %v2791, %v2792
    %v2817 = vcombine.low %v2793, %v2794
    %v2819 = vunpack.c.l.s4 1966171168
    %v2820 = vunpack.c.0.s8 %v2819
    %v2821 = vlaneseq
    %v2822 = vshrl.u32 %v2821, 7
    %v2823 = vsub.s32 %v2820, %v2822
    %v2824 = vrot.slane %v2814, %v2823
    %v2826 = vunpack.c.l.s4 1966171168
    %v2827 = vunpack.c.0.s8 %v2826
    %v2828 = vlaneseq
    %v2829 = vshrl.u32 %v2828, 7
    %v2830 = vsub.s32 %v2827, %v2829
    %v2831 = vrot.slane %v2815, %v2830
    %v2833 = vunpack.c.l.s4 1966171168
    %v2834 = vunpack.c.0.s8 %v2833
    %v2835 = vlaneseq
    %v2836 = vshrl.u32 %v2835, 7
    %v2837 = vsub.s32 %v2834, %v2836
    %v2838 = vrot.slane %v2816, %v2837
    %v2840 = vunpack.c.l.s4 1966171168
    %v2841 = vunpack.c.0.s8 %v2840
    %v2842 = vlaneseq
    %v2843 = vshrl.u32 %v2842, 7
    %v2844 = vsub.s32 %v2841, %v2843
    %v2845 = vrot.slane %v2817, %v2844
    %v2846 = vcombine.low %v2824, %v2831
    %v2847 = vcombine.high %v2824, %v2831
    %v2848 = vcombine.low %v2838, %v2845
    %v2849 = vcombine.high %v2838, %v2845
    %v2851 = vunpack.c.l.s4 1966171168
    %v2852 = vunpack.c.0.s8 %v2851
    %v2853 = vlaneseq
    %v2854 = vshrl.u32 %v2853, 7
    %v2855 = vsub.s32 %v2852, %v2854
    %v2856 = vrot.slane %v2846, %v2855
    %v2858 = vunpack.c.l.s4 1966171168
    %v2859 = vunpack.c.0.s8 %v2858
    %v2860 = vlaneseq
    %v2861 = vshrl.u32 %v2860, 7
    %v2862 = vsub.s32 %v2859, %v2861
    %v2863 = vrot.slane %v2847, %v2862
    %v2865 = vunpack.c.l.s4 1966171168
    %v2866 = vunpack.c.0.s8 %v2865
    %v2867 = vlaneseq
    %v2868 = vshrl.u32 %v2867, 7
    %v2869 = vsub.s32 %v2866, %v2868
    %v2870 = vrot.slane %v2848, %v2869
    %v2872 = vunpack.c.l.s4 1966171168
    %v2873 = vunpack.c.0.s8 %v2872
    %v2874 = vlaneseq
    %v2875 = vshrl.u32 %v2874, 7
    %v2876 = vsub.s32 %v2873, %v2875
    %v2877 = vrot.slane %v2849, %v2876
    %v2878 = vcombine.low %v2856, %v2870
    %v2879 = vcombine.low %v2863, %v2877
    %v2882 = vmul.f32 %v2799, %v2878
    %v2883 = vmul.f32 %v2803, %v2879
    %v2884 = vadd.f32 %v2629, %v2882
    %v2885 = vadd.f32 %v2630, %v2883
    %s2886 = scalar_lea.vmem [#allocation5], 19
    %v2887 = vld [vmem:[%s2886] ss:$8 sm:$0x3]
    %s2888 = scalar_lea.vmem [#allocation7], 19
    %v2889 = vld [vmem:[%s2888] ss:$8 sm:$0x3]
    %s2890 = scalar_lea.vmem [#allocation8], 19
    %v2891 = vld [vmem:[%s2890] ss:$8 sm:$0x3]
    %v2893 = vlaneseq
    %v2894 = vshrl.u32 %v2893, 7
    %v2895 = vsub.s32 0, %v2894
    %v2896 = vrot.slane %v2887, %v2895
    %v2897 = vlaneseq
    %v2898 = vshrl.u32 %v2897, 7
    %v2899 = vsub.s32 1, %v2898
    %v2900 = vrot.slane %v2887, %v2899
    %v2901 = vcombine.low %v2896, %v2900
    %v2902 = vcombine.high %v2896, %v2900
    %v2904 = vunpack.c.l.s4 1966171168
    %v2905 = vunpack.c.0.s8 %v2904
    %v2906 = vlaneseq
    %v2907 = vshrl.u32 %v2906, 7
    %v2908 = vsub.s32 %v2905, %v2907
    %v2909 = vrot.slane %v2901, %v2908
    %v2911 = vunpack.c.l.s4 1966171168
    %v2912 = vunpack.c.0.s8 %v2911
    %v2913 = vlaneseq
    %v2914 = vshrl.u32 %v2913, 7
    %v2915 = vsub.s32 %v2912, %v2914
    %v2916 = vrot.slane %v2902, %v2915
    %v2917 = vcombine.high %v2909, %v2909
    %v2918 = vcombine.high %v2916, %v2916
    %v2920 = vunpack.c.l.s4 1966171168
    %v2921 = vunpack.c.0.s8 %v2920
    %v2922 = vlaneseq
    %v2923 = vshrl.u32 %v2922, 7
    %v2924 = vsub.s32 %v2921, %v2923
    %v2925 = vrot.slane %v2909, %v2924
    %v2927 = vunpack.c.l.s4 1966171168
    %v2928 = vunpack.c.0.s8 %v2927
    %v2929 = vlaneseq
    %v2930 = vshrl.u32 %v2929, 7
    %v2931 = vsub.s32 %v2928, %v2930
    %v2932 = vrot.slane %v2916, %v2931
    %v2934 = vunpack.c.l.s4 1966171168
    %v2935 = vunpack.c.0.s8 %v2934
    %v2936 = vlaneseq
    %v2937 = vshrl.u32 %v2936, 7
    %v2938 = vsub.s32 %v2935, %v2937
    %v2939 = vrot.slane %v2917, %v2938
    %v2941 = vunpack.c.l.s4 1966171168
    %v2942 = vunpack.c.0.s8 %v2941
    %v2943 = vlaneseq
    %v2944 = vshrl.u32 %v2943, 7
    %v2945 = vsub.s32 %v2942, %v2944
    %v2946 = vrot.slane %v2918, %v2945
    %v2947 = vcombine.high %v2925, %v2925
    %v2948 = vcombine.high %v2932, %v2932
    %v2949 = vcombine.high %v2939, %v2939
    %v2950 = vcombine.high %v2946, %v2946
    %v2959 = vmul.f32 %v76, %v2925
    %v2960 = vmul.f32 %v77, %v2939
    %v2961 = vmul.f32 %v78, %v2947
    %v2962 = vmul.f32 %v79, %v2949
    %v2963 = vmul.f32 %v80, %v2932
    %v2964 = vmul.f32 %v81, %v2946
    %v2965 = vmul.f32 %v82, %v2948
    %v2966 = vmul.f32 %v83, %v2950
    %v2968 = vlaneseq
    %v2969 = vshrl.u32 %v2968, 7
    %v2970 = vsub.s32 0, %v2969
    %v2971 = vrot.slane %v2889, %v2970
    %v2972 = vlaneseq
    %v2973 = vshrl.u32 %v2972, 7
    %v2974 = vsub.s32 1, %v2973
    %v2975 = vrot.slane %v2889, %v2974
    %v2976 = vcombine.low %v2971, %v2975
    %v2977 = vcombine.high %v2971, %v2975
    %v2979 = vunpack.c.l.s4 1966171168
    %v2980 = vunpack.c.0.s8 %v2979
    %v2981 = vlaneseq
    %v2982 = vshrl.u32 %v2981, 7
    %v2983 = vsub.s32 %v2980, %v2982
    %v2984 = vrot.slane %v2976, %v2983
    %v2986 = vunpack.c.l.s4 1966171168
    %v2987 = vunpack.c.0.s8 %v2986
    %v2988 = vlaneseq
    %v2989 = vshrl.u32 %v2988, 7
    %v2990 = vsub.s32 %v2987, %v2989
    %v2991 = vrot.slane %v2977, %v2990
    %v2992 = vcombine.high %v2984, %v2984
    %v2993 = vcombine.high %v2991, %v2991
    %v2995 = vunpack.c.l.s4 1966171168
    %v2996 = vunpack.c.0.s8 %v2995
    %v2997 = vlaneseq
    %v2998 = vshrl.u32 %v2997, 7
    %v2999 = vsub.s32 %v2996, %v2998
    %v3000 = vrot.slane %v2984, %v2999
    %v3002 = vunpack.c.l.s4 1966171168
    %v3003 = vunpack.c.0.s8 %v3002
    %v3004 = vlaneseq
    %v3005 = vshrl.u32 %v3004, 7
    %v3006 = vsub.s32 %v3003, %v3005
    %v3007 = vrot.slane %v2991, %v3006
    %v3009 = vunpack.c.l.s4 1966171168
    %v3010 = vunpack.c.0.s8 %v3009
    %v3011 = vlaneseq
    %v3012 = vshrl.u32 %v3011, 7
    %v3013 = vsub.s32 %v3010, %v3012
    %v3014 = vrot.slane %v2992, %v3013
    %v3016 = vunpack.c.l.s4 1966171168
    %v3017 = vunpack.c.0.s8 %v3016
    %v3018 = vlaneseq
    %v3019 = vshrl.u32 %v3018, 7
    %v3020 = vsub.s32 %v3017, %v3019
    %v3021 = vrot.slane %v2993, %v3020
    %v3022 = vcombine.high %v3000, %v3000
    %v3023 = vcombine.high %v3007, %v3007
    %v3024 = vcombine.high %v3014, %v3014
    %v3025 = vcombine.high %v3021, %v3021
    %v3034 = vadd.f32 %v2959, %v3000
    %v3035 = vadd.f32 %v2960, %v3014
    %v3036 = vadd.f32 %v2961, %v3022
    %v3037 = vadd.f32 %v2962, %v3024
    %v3038 = vadd.f32 %v2963, %v3007
    %v3039 = vadd.f32 %v2964, %v3021
    %v3040 = vadd.f32 %v2965, %v3023
    %v3041 = vadd.f32 %v2966, %v3025
    %v3042 = vmax.f32 %v3034, 0.0
    %v3043 = vmax.f32 %v3035, 0.0
    %v3044 = vmax.f32 %v3036, 0.0
    %v3045 = vmax.f32 %v3037, 0.0
    %v3046 = vmax.f32 %v3038, 0.0
    %v3047 = vmax.f32 %v3039, 0.0
    %v3048 = vmax.f32 %v3040, 0.0
    %v3049 = vmax.f32 %v3041, 0.0
    %v3051 = vlaneseq
    %v3052 = vshrl.u32 %v3051, 7
    %v3053 = vsub.s32 0, %v3052
    %v3054 = vrot.slane %v2891, %v3053
    %v3055 = vlaneseq
    %v3056 = vshrl.u32 %v3055, 7
    %v3057 = vsub.s32 1, %v3056
    %v3058 = vrot.slane %v2891, %v3057
    %v3069 = vcombine.low %v3042, %v3043
    %v3070 = vcombine.low %v3044, %v3045
    %v3071 = vcombine.low %v3046, %v3047
    %v3072 = vcombine.low %v3048, %v3049
    %v3074 = vunpack.c.l.s4 1966171168
    %v3075 = vunpack.c.0.s8 %v3074
    %v3076 = vlaneseq
    %v3077 = vshrl.u32 %v3076, 7
    %v3078 = vsub.s32 %v3075, %v3077
    %v3079 = vrot.slane %v3069, %v3078
    %v3081 = vunpack.c.l.s4 1966171168
    %v3082 = vunpack.c.0.s8 %v3081
    %v3083 = vlaneseq
    %v3084 = vshrl.u32 %v3083, 7
    %v3085 = vsub.s32 %v3082, %v3084
    %v3086 = vrot.slane %v3070, %v3085
    %v3088 = vunpack.c.l.s4 1966171168
    %v3089 = vunpack.c.0.s8 %v3088
    %v3090 = vlaneseq
    %v3091 = vshrl.u32 %v3090, 7
    %v3092 = vsub.s32 %v3089, %v3091
    %v3093 = vrot.slane %v3071, %v3092
    %v3095 = vunpack.c.l.s4 1966171168
    %v3096 = vunpack.c.0.s8 %v3095
    %v3097 = vlaneseq
    %v3098 = vshrl.u32 %v3097, 7
    %v3099 = vsub.s32 %v3096, %v3098
    %v3100 = vrot.slane %v3072, %v3099
    %v3101 = vcombine.low %v3079, %v3086
    %v3102 = vcombine.high %v3079, %v3086
    %v3103 = vcombine.low %v3093, %v3100
    %v3104 = vcombine.high %v3093, %v3100
    %v3106 = vunpack.c.l.s4 1966171168
    %v3107 = vunpack.c.0.s8 %v3106
    %v3108 = vlaneseq
    %v3109 = vshrl.u32 %v3108, 7
    %v3110 = vsub.s32 %v3107, %v3109
    %v3111 = vrot.slane %v3101, %v3110
    %v3113 = vunpack.c.l.s4 1966171168
    %v3114 = vunpack.c.0.s8 %v3113
    %v3115 = vlaneseq
    %v3116 = vshrl.u32 %v3115, 7
    %v3117 = vsub.s32 %v3114, %v3116
    %v3118 = vrot.slane %v3102, %v3117
    %v3120 = vunpack.c.l.s4 1966171168
    %v3121 = vunpack.c.0.s8 %v3120
    %v3122 = vlaneseq
    %v3123 = vshrl.u32 %v3122, 7
    %v3124 = vsub.s32 %v3121, %v3123
    %v3125 = vrot.slane %v3103, %v3124
    %v3127 = vunpack.c.l.s4 1966171168
    %v3128 = vunpack.c.0.s8 %v3127
    %v3129 = vlaneseq
    %v3130 = vshrl.u32 %v3129, 7
    %v3131 = vsub.s32 %v3128, %v3130
    %v3132 = vrot.slane %v3104, %v3131
    %v3133 = vcombine.low %v3111, %v3125
    %v3134 = vcombine.low %v3118, %v3132
    %v3137 = vmul.f32 %v3054, %v3133
    %v3138 = vmul.f32 %v3058, %v3134
    %v3139 = vadd.f32 %v2884, %v3137
    %v3140 = vadd.f32 %v2885, %v3138
    %s3141 = scalar_lea.vmem [#allocation5], 20
    %v3142 = vld [vmem:[%s3141] ss:$8 sm:$0x3]
    %s3143 = scalar_lea.vmem [#allocation7], 20
    %v3144 = vld [vmem:[%s3143] ss:$8 sm:$0x3]
    %s3145 = scalar_lea.vmem [#allocation8], 20
    %v3146 = vld [vmem:[%s3145] ss:$8 sm:$0x3]
    %v3148 = vlaneseq
    %v3149 = vshrl.u32 %v3148, 7
    %v3150 = vsub.s32 0, %v3149
    %v3151 = vrot.slane %v3142, %v3150
    %v3152 = vlaneseq
    %v3153 = vshrl.u32 %v3152, 7
    %v3154 = vsub.s32 1, %v3153
    %v3155 = vrot.slane %v3142, %v3154
    %v3156 = vcombine.low %v3151, %v3155
    %v3157 = vcombine.high %v3151, %v3155
    %v3159 = vunpack.c.l.s4 1966171168
    %v3160 = vunpack.c.0.s8 %v3159
    %v3161 = vlaneseq
    %v3162 = vshrl.u32 %v3161, 7
    %v3163 = vsub.s32 %v3160, %v3162
    %v3164 = vrot.slane %v3156, %v3163
    %v3166 = vunpack.c.l.s4 1966171168
    %v3167 = vunpack.c.0.s8 %v3166
    %v3168 = vlaneseq
    %v3169 = vshrl.u32 %v3168, 7
    %v3170 = vsub.s32 %v3167, %v3169
    %v3171 = vrot.slane %v3157, %v3170
    %v3172 = vcombine.high %v3164, %v3164
    %v3173 = vcombine.high %v3171, %v3171
    %v3175 = vunpack.c.l.s4 1966171168
    %v3176 = vunpack.c.0.s8 %v3175
    %v3177 = vlaneseq
    %v3178 = vshrl.u32 %v3177, 7
    %v3179 = vsub.s32 %v3176, %v3178
    %v3180 = vrot.slane %v3164, %v3179
    %v3182 = vunpack.c.l.s4 1966171168
    %v3183 = vunpack.c.0.s8 %v3182
    %v3184 = vlaneseq
    %v3185 = vshrl.u32 %v3184, 7
    %v3186 = vsub.s32 %v3183, %v3185
    %v3187 = vrot.slane %v3171, %v3186
    %v3189 = vunpack.c.l.s4 1966171168
    %v3190 = vunpack.c.0.s8 %v3189
    %v3191 = vlaneseq
    %v3192 = vshrl.u32 %v3191, 7
    %v3193 = vsub.s32 %v3190, %v3192
    %v3194 = vrot.slane %v3172, %v3193
    %v3196 = vunpack.c.l.s4 1966171168
    %v3197 = vunpack.c.0.s8 %v3196
    %v3198 = vlaneseq
    %v3199 = vshrl.u32 %v3198, 7
    %v3200 = vsub.s32 %v3197, %v3199
    %v3201 = vrot.slane %v3173, %v3200
    %v3202 = vcombine.high %v3180, %v3180
    %v3203 = vcombine.high %v3187, %v3187
    %v3204 = vcombine.high %v3194, %v3194
    %v3205 = vcombine.high %v3201, %v3201
    %v3214 = vmul.f32 %v76, %v3180
    %v3215 = vmul.f32 %v77, %v3194
    %v3216 = vmul.f32 %v78, %v3202
    %v3217 = vmul.f32 %v79, %v3204
    %v3218 = vmul.f32 %v80, %v3187
    %v3219 = vmul.f32 %v81, %v3201
    %v3220 = vmul.f32 %v82, %v3203
    %v3221 = vmul.f32 %v83, %v3205
    %v3223 = vlaneseq
    %v3224 = vshrl.u32 %v3223, 7
    %v3225 = vsub.s32 0, %v3224
    %v3226 = vrot.slane %v3144, %v3225
    %v3227 = vlaneseq
    %v3228 = vshrl.u32 %v3227, 7
    %v3229 = vsub.s32 1, %v3228
    %v3230 = vrot.slane %v3144, %v3229
    %v3231 = vcombine.low %v3226, %v3230
    %v3232 = vcombine.high %v3226, %v3230
    %v3234 = vunpack.c.l.s4 1966171168
    %v3235 = vunpack.c.0.s8 %v3234
    %v3236 = vlaneseq
    %v3237 = vshrl.u32 %v3236, 7
    %v3238 = vsub.s32 %v3235, %v3237
    %v3239 = vrot.slane %v3231, %v3238
    %v3241 = vunpack.c.l.s4 1966171168
    %v3242 = vunpack.c.0.s8 %v3241
    %v3243 = vlaneseq
    %v3244 = vshrl.u32 %v3243, 7
    %v3245 = vsub.s32 %v3242, %v3244
    %v3246 = vrot.slane %v3232, %v3245
    %v3247 = vcombine.high %v3239, %v3239
    %v3248 = vcombine.high %v3246, %v3246
    %v3250 = vunpack.c.l.s4 1966171168
    %v3251 = vunpack.c.0.s8 %v3250
    %v3252 = vlaneseq
    %v3253 = vshrl.u32 %v3252, 7
    %v3254 = vsub.s32 %v3251, %v3253
    %v3255 = vrot.slane %v3239, %v3254
    %v3257 = vunpack.c.l.s4 1966171168
    %v3258 = vunpack.c.0.s8 %v3257
    %v3259 = vlaneseq
    %v3260 = vshrl.u32 %v3259, 7
    %v3261 = vsub.s32 %v3258, %v3260
    %v3262 = vrot.slane %v3246, %v3261
    %v3264 = vunpack.c.l.s4 1966171168
    %v3265 = vunpack.c.0.s8 %v3264
    %v3266 = vlaneseq
    %v3267 = vshrl.u32 %v3266, 7
    %v3268 = vsub.s32 %v3265, %v3267
    %v3269 = vrot.slane %v3247, %v3268
    %v3271 = vunpack.c.l.s4 1966171168
    %v3272 = vunpack.c.0.s8 %v3271
    %v3273 = vlaneseq
    %v3274 = vshrl.u32 %v3273, 7
    %v3275 = vsub.s32 %v3272, %v3274
    %v3276 = vrot.slane %v3248, %v3275
    %v3277 = vcombine.high %v3255, %v3255
    %v3278 = vcombine.high %v3262, %v3262
    %v3279 = vcombine.high %v3269, %v3269
    %v3280 = vcombine.high %v3276, %v3276
    %v3289 = vadd.f32 %v3214, %v3255
    %v3290 = vadd.f32 %v3215, %v3269
    %v3291 = vadd.f32 %v3216, %v3277
    %v3292 = vadd.f32 %v3217, %v3279
    %v3293 = vadd.f32 %v3218, %v3262
    %v3294 = vadd.f32 %v3219, %v3276
    %v3295 = vadd.f32 %v3220, %v3278
    %v3296 = vadd.f32 %v3221, %v3280
    %v3297 = vmax.f32 %v3289, 0.0
    %v3298 = vmax.f32 %v3290, 0.0
    %v3299 = vmax.f32 %v3291, 0.0
    %v3300 = vmax.f32 %v3292, 0.0
    %v3301 = vmax.f32 %v3293, 0.0
    %v3302 = vmax.f32 %v3294, 0.0
    %v3303 = vmax.f32 %v3295, 0.0
    %v3304 = vmax.f32 %v3296, 0.0
    %v3306 = vlaneseq
    %v3307 = vshrl.u32 %v3306, 7
    %v3308 = vsub.s32 0, %v3307
    %v3309 = vrot.slane %v3146, %v3308
    %v3310 = vlaneseq
    %v3311 = vshrl.u32 %v3310, 7
    %v3312 = vsub.s32 1, %v3311
    %v3313 = vrot.slane %v3146, %v3312
    %v3324 = vcombine.low %v3297, %v3298
    %v3325 = vcombine.low %v3299, %v3300
    %v3326 = vcombine.low %v3301, %v3302
    %v3327 = vcombine.low %v3303, %v3304
    %v3329 = vunpack.c.l.s4 1966171168
    %v3330 = vunpack.c.0.s8 %v3329
    %v3331 = vlaneseq
    %v3332 = vshrl.u32 %v3331, 7
    %v3333 = vsub.s32 %v3330, %v3332
    %v3334 = vrot.slane %v3324, %v3333
    %v3336 = vunpack.c.l.s4 1966171168
    %v3337 = vunpack.c.0.s8 %v3336
    %v3338 = vlaneseq
    %v3339 = vshrl.u32 %v3338, 7
    %v3340 = vsub.s32 %v3337, %v3339
    %v3341 = vrot.slane %v3325, %v3340
    %v3343 = vunpack.c.l.s4 1966171168
    %v3344 = vunpack.c.0.s8 %v3343
    %v3345 = vlaneseq
    %v3346 = vshrl.u32 %v3345, 7
    %v3347 = vsub.s32 %v3344, %v3346
    %v3348 = vrot.slane %v3326, %v3347
    %v3350 = vunpack.c.l.s4 1966171168
    %v3351 = vunpack.c.0.s8 %v3350
    %v3352 = vlaneseq
    %v3353 = vshrl.u32 %v3352, 7
    %v3354 = vsub.s32 %v3351, %v3353
    %v3355 = vrot.slane %v3327, %v3354
    %v3356 = vcombine.low %v3334, %v3341
    %v3357 = vcombine.high %v3334, %v3341
    %v3358 = vcombine.low %v3348, %v3355
    %v3359 = vcombine.high %v3348, %v3355
    %v3361 = vunpack.c.l.s4 1966171168
    %v3362 = vunpack.c.0.s8 %v3361
    %v3363 = vlaneseq
    %v3364 = vshrl.u32 %v3363, 7
    %v3365 = vsub.s32 %v3362, %v3364
    %v3366 = vrot.slane %v3356, %v3365
    %v3368 = vunpack.c.l.s4 1966171168
    %v3369 = vunpack.c.0.s8 %v3368
    %v3370 = vlaneseq
    %v3371 = vshrl.u32 %v3370, 7
    %v3372 = vsub.s32 %v3369, %v3371
    %v3373 = vrot.slane %v3357, %v3372
    %v3375 = vunpack.c.l.s4 1966171168
    %v3376 = vunpack.c.0.s8 %v3375
    %v3377 = vlaneseq
    %v3378 = vshrl.u32 %v3377, 7
    %v3379 = vsub.s32 %v3376, %v3378
    %v3380 = vrot.slane %v3358, %v3379
    %v3382 = vunpack.c.l.s4 1966171168
    %v3383 = vunpack.c.0.s8 %v3382
    %v3384 = vlaneseq
    %v3385 = vshrl.u32 %v3384, 7
    %v3386 = vsub.s32 %v3383, %v3385
    %v3387 = vrot.slane %v3359, %v3386
    %v3388 = vcombine.low %v3366, %v3380
    %v3389 = vcombine.low %v3373, %v3387
    %v3392 = vmul.f32 %v3309, %v3388
    %v3393 = vmul.f32 %v3313, %v3389
    %v3394 = vadd.f32 %v3139, %v3392
    %v3395 = vadd.f32 %v3140, %v3393
    %s3396 = scalar_lea.vmem [#allocation5], 21
    %v3397 = vld [vmem:[%s3396] ss:$8 sm:$0x3]
    %s3398 = scalar_lea.vmem [#allocation7], 21
    %v3399 = vld [vmem:[%s3398] ss:$8 sm:$0x3]
    %s3400 = scalar_lea.vmem [#allocation8], 21
    %v3401 = vld [vmem:[%s3400] ss:$8 sm:$0x3]
    %v3403 = vlaneseq
    %v3404 = vshrl.u32 %v3403, 7
    %v3405 = vsub.s32 0, %v3404
    %v3406 = vrot.slane %v3397, %v3405
    %v3407 = vlaneseq
    %v3408 = vshrl.u32 %v3407, 7
    %v3409 = vsub.s32 1, %v3408
    %v3410 = vrot.slane %v3397, %v3409
    %v3411 = vcombine.low %v3406, %v3410
    %v3412 = vcombine.high %v3406, %v3410
    %v3414 = vunpack.c.l.s4 1966171168
    %v3415 = vunpack.c.0.s8 %v3414
    %v3416 = vlaneseq
    %v3417 = vshrl.u32 %v3416, 7
    %v3418 = vsub.s32 %v3415, %v3417
    %v3419 = vrot.slane %v3411, %v3418
    %v3421 = vunpack.c.l.s4 1966171168
    %v3422 = vunpack.c.0.s8 %v3421
    %v3423 = vlaneseq
    %v3424 = vshrl.u32 %v3423, 7
    %v3425 = vsub.s32 %v3422, %v3424
    %v3426 = vrot.slane %v3412, %v3425
    %v3427 = vcombine.high %v3419, %v3419
    %v3428 = vcombine.high %v3426, %v3426
    %v3430 = vunpack.c.l.s4 1966171168
    %v3431 = vunpack.c.0.s8 %v3430
    %v3432 = vlaneseq
    %v3433 = vshrl.u32 %v3432, 7
    %v3434 = vsub.s32 %v3431, %v3433
    %v3435 = vrot.slane %v3419, %v3434
    %v3437 = vunpack.c.l.s4 1966171168
    %v3438 = vunpack.c.0.s8 %v3437
    %v3439 = vlaneseq
    %v3440 = vshrl.u32 %v3439, 7
    %v3441 = vsub.s32 %v3438, %v3440
    %v3442 = vrot.slane %v3426, %v3441
    %v3444 = vunpack.c.l.s4 1966171168
    %v3445 = vunpack.c.0.s8 %v3444
    %v3446 = vlaneseq
    %v3447 = vshrl.u32 %v3446, 7
    %v3448 = vsub.s32 %v3445, %v3447
    %v3449 = vrot.slane %v3427, %v3448
    %v3451 = vunpack.c.l.s4 1966171168
    %v3452 = vunpack.c.0.s8 %v3451
    %v3453 = vlaneseq
    %v3454 = vshrl.u32 %v3453, 7
    %v3455 = vsub.s32 %v3452, %v3454
    %v3456 = vrot.slane %v3428, %v3455
    %v3457 = vcombine.high %v3435, %v3435
    %v3458 = vcombine.high %v3442, %v3442
    %v3459 = vcombine.high %v3449, %v3449
    %v3460 = vcombine.high %v3456, %v3456
    %v3469 = vmul.f32 %v76, %v3435
    %v3470 = vmul.f32 %v77, %v3449
    %v3471 = vmul.f32 %v78, %v3457
    %v3472 = vmul.f32 %v79, %v3459
    %v3473 = vmul.f32 %v80, %v3442
    %v3474 = vmul.f32 %v81, %v3456
    %v3475 = vmul.f32 %v82, %v3458
    %v3476 = vmul.f32 %v83, %v3460
    %v3478 = vlaneseq
    %v3479 = vshrl.u32 %v3478, 7
    %v3480 = vsub.s32 0, %v3479
    %v3481 = vrot.slane %v3399, %v3480
    %v3482 = vlaneseq
    %v3483 = vshrl.u32 %v3482, 7
    %v3484 = vsub.s32 1, %v3483
    %v3485 = vrot.slane %v3399, %v3484
    %v3486 = vcombine.low %v3481, %v3485
    %v3487 = vcombine.high %v3481, %v3485
    %v3489 = vunpack.c.l.s4 1966171168
    %v3490 = vunpack.c.0.s8 %v3489
    %v3491 = vlaneseq
    %v3492 = vshrl.u32 %v3491, 7
    %v3493 = vsub.s32 %v3490, %v3492
    %v3494 = vrot.slane %v3486, %v3493
    %v3496 = vunpack.c.l.s4 1966171168
    %v3497 = vunpack.c.0.s8 %v3496
    %v3498 = vlaneseq
    %v3499 = vshrl.u32 %v3498, 7
    %v3500 = vsub.s32 %v3497, %v3499
    %v3501 = vrot.slane %v3487, %v3500
    %v3502 = vcombine.high %v3494, %v3494
    %v3503 = vcombine.high %v3501, %v3501
    %v3505 = vunpack.c.l.s4 1966171168
    %v3506 = vunpack.c.0.s8 %v3505
    %v3507 = vlaneseq
    %v3508 = vshrl.u32 %v3507, 7
    %v3509 = vsub.s32 %v3506, %v3508
    %v3510 = vrot.slane %v3494, %v3509
    %v3512 = vunpack.c.l.s4 1966171168
    %v3513 = vunpack.c.0.s8 %v3512
    %v3514 = vlaneseq
    %v3515 = vshrl.u32 %v3514, 7
    %v3516 = vsub.s32 %v3513, %v3515
    %v3517 = vrot.slane %v3501, %v3516
    %v3519 = vunpack.c.l.s4 1966171168
    %v3520 = vunpack.c.0.s8 %v3519
    %v3521 = vlaneseq
    %v3522 = vshrl.u32 %v3521, 7
    %v3523 = vsub.s32 %v3520, %v3522
    %v3524 = vrot.slane %v3502, %v3523
    %v3526 = vunpack.c.l.s4 1966171168
    %v3527 = vunpack.c.0.s8 %v3526
    %v3528 = vlaneseq
    %v3529 = vshrl.u32 %v3528, 7
    %v3530 = vsub.s32 %v3527, %v3529
    %v3531 = vrot.slane %v3503, %v3530
    %v3532 = vcombine.high %v3510, %v3510
    %v3533 = vcombine.high %v3517, %v3517
    %v3534 = vcombine.high %v3524, %v3524
    %v3535 = vcombine.high %v3531, %v3531
    %v3544 = vadd.f32 %v3469, %v3510
    %v3545 = vadd.f32 %v3470, %v3524
    %v3546 = vadd.f32 %v3471, %v3532
    %v3547 = vadd.f32 %v3472, %v3534
    %v3548 = vadd.f32 %v3473, %v3517
    %v3549 = vadd.f32 %v3474, %v3531
    %v3550 = vadd.f32 %v3475, %v3533
    %v3551 = vadd.f32 %v3476, %v3535
    %v3552 = vmax.f32 %v3544, 0.0
    %v3553 = vmax.f32 %v3545, 0.0
    %v3554 = vmax.f32 %v3546, 0.0
    %v3555 = vmax.f32 %v3547, 0.0
    %v3556 = vmax.f32 %v3548, 0.0
    %v3557 = vmax.f32 %v3549, 0.0
    %v3558 = vmax.f32 %v3550, 0.0
    %v3559 = vmax.f32 %v3551, 0.0
    %v3561 = vlaneseq
    %v3562 = vshrl.u32 %v3561, 7
    %v3563 = vsub.s32 0, %v3562
    %v3564 = vrot.slane %v3401, %v3563
    %v3565 = vlaneseq
    %v3566 = vshrl.u32 %v3565, 7
    %v3567 = vsub.s32 1, %v3566
    %v3568 = vrot.slane %v3401, %v3567
    %v3579 = vcombine.low %v3552, %v3553
    %v3580 = vcombine.low %v3554, %v3555
    %v3581 = vcombine.low %v3556, %v3557
    %v3582 = vcombine.low %v3558, %v3559
    %v3584 = vunpack.c.l.s4 1966171168
    %v3585 = vunpack.c.0.s8 %v3584
    %v3586 = vlaneseq
    %v3587 = vshrl.u32 %v3586, 7
    %v3588 = vsub.s32 %v3585, %v3587
    %v3589 = vrot.slane %v3579, %v3588
    %v3591 = vunpack.c.l.s4 1966171168
    %v3592 = vunpack.c.0.s8 %v3591
    %v3593 = vlaneseq
    %v3594 = vshrl.u32 %v3593, 7
    %v3595 = vsub.s32 %v3592, %v3594
    %v3596 = vrot.slane %v3580, %v3595
    %v3598 = vunpack.c.l.s4 1966171168
    %v3599 = vunpack.c.0.s8 %v3598
    %v3600 = vlaneseq
    %v3601 = vshrl.u32 %v3600, 7
    %v3602 = vsub.s32 %v3599, %v3601
    %v3603 = vrot.slane %v3581, %v3602
    %v3605 = vunpack.c.l.s4 1966171168
    %v3606 = vunpack.c.0.s8 %v3605
    %v3607 = vlaneseq
    %v3608 = vshrl.u32 %v3607, 7
    %v3609 = vsub.s32 %v3606, %v3608
    %v3610 = vrot.slane %v3582, %v3609
    %v3611 = vcombine.low %v3589, %v3596
    %v3612 = vcombine.high %v3589, %v3596
    %v3613 = vcombine.low %v3603, %v3610
    %v3614 = vcombine.high %v3603, %v3610
    %v3616 = vunpack.c.l.s4 1966171168
    %v3617 = vunpack.c.0.s8 %v3616
    %v3618 = vlaneseq
    %v3619 = vshrl.u32 %v3618, 7
    %v3620 = vsub.s32 %v3617, %v3619
    %v3621 = vrot.slane %v3611, %v3620
    %v3623 = vunpack.c.l.s4 1966171168
    %v3624 = vunpack.c.0.s8 %v3623
    %v3625 = vlaneseq
    %v3626 = vshrl.u32 %v3625, 7
    %v3627 = vsub.s32 %v3624, %v3626
    %v3628 = vrot.slane %v3612, %v3627
    %v3630 = vunpack.c.l.s4 1966171168
    %v3631 = vunpack.c.0.s8 %v3630
    %v3632 = vlaneseq
    %v3633 = vshrl.u32 %v3632, 7
    %v3634 = vsub.s32 %v3631, %v3633
    %v3635 = vrot.slane %v3613, %v3634
    %v3637 = vunpack.c.l.s4 1966171168
    %v3638 = vunpack.c.0.s8 %v3637
    %v3639 = vlaneseq
    %v3640 = vshrl.u32 %v3639, 7
    %v3641 = vsub.s32 %v3638, %v3640
    %v3642 = vrot.slane %v3614, %v3641
    %v3643 = vcombine.low %v3621, %v3635
    %v3644 = vcombine.low %v3628, %v3642
    %v3647 = vmul.f32 %v3564, %v3643
    %v3648 = vmul.f32 %v3568, %v3644
    %v3649 = vadd.f32 %v3394, %v3647
    %v3650 = vadd.f32 %v3395, %v3648
    %s3651 = scalar_lea.vmem [#allocation5], 22
    %v3652 = vld [vmem:[%s3651] ss:$8 sm:$0x3]
    %s3653 = scalar_lea.vmem [#allocation7], 22
    %v3654 = vld [vmem:[%s3653] ss:$8 sm:$0x3]
    %s3655 = scalar_lea.vmem [#allocation8], 22
    %v3656 = vld [vmem:[%s3655] ss:$8 sm:$0x3]
    %v3658 = vlaneseq
    %v3659 = vshrl.u32 %v3658, 7
    %v3660 = vsub.s32 0, %v3659
    %v3661 = vrot.slane %v3652, %v3660
    %v3662 = vlaneseq
    %v3663 = vshrl.u32 %v3662, 7
    %v3664 = vsub.s32 1, %v3663
    %v3665 = vrot.slane %v3652, %v3664
    %v3666 = vcombine.low %v3661, %v3665
    %v3667 = vcombine.high %v3661, %v3665
    %v3669 = vunpack.c.l.s4 1966171168
    %v3670 = vunpack.c.0.s8 %v3669
    %v3671 = vlaneseq
    %v3672 = vshrl.u32 %v3671, 7
    %v3673 = vsub.s32 %v3670, %v3672
    %v3674 = vrot.slane %v3666, %v3673
    %v3676 = vunpack.c.l.s4 1966171168
    %v3677 = vunpack.c.0.s8 %v3676
    %v3678 = vlaneseq
    %v3679 = vshrl.u32 %v3678, 7
    %v3680 = vsub.s32 %v3677, %v3679
    %v3681 = vrot.slane %v3667, %v3680
    %v3682 = vcombine.high %v3674, %v3674
    %v3683 = vcombine.high %v3681, %v3681
    %v3685 = vunpack.c.l.s4 1966171168
    %v3686 = vunpack.c.0.s8 %v3685
    %v3687 = vlaneseq
    %v3688 = vshrl.u32 %v3687, 7
    %v3689 = vsub.s32 %v3686, %v3688
    %v3690 = vrot.slane %v3674, %v3689
    %v3692 = vunpack.c.l.s4 1966171168
    %v3693 = vunpack.c.0.s8 %v3692
    %v3694 = vlaneseq
    %v3695 = vshrl.u32 %v3694, 7
    %v3696 = vsub.s32 %v3693, %v3695
    %v3697 = vrot.slane %v3681, %v3696
    %v3699 = vunpack.c.l.s4 1966171168
    %v3700 = vunpack.c.0.s8 %v3699
    %v3701 = vlaneseq
    %v3702 = vshrl.u32 %v3701, 7
    %v3703 = vsub.s32 %v3700, %v3702
    %v3704 = vrot.slane %v3682, %v3703
    %v3706 = vunpack.c.l.s4 1966171168
    %v3707 = vunpack.c.0.s8 %v3706
    %v3708 = vlaneseq
    %v3709 = vshrl.u32 %v3708, 7
    %v3710 = vsub.s32 %v3707, %v3709
    %v3711 = vrot.slane %v3683, %v3710
    %v3712 = vcombine.high %v3690, %v3690
    %v3713 = vcombine.high %v3697, %v3697
    %v3714 = vcombine.high %v3704, %v3704
    %v3715 = vcombine.high %v3711, %v3711
    %v3724 = vmul.f32 %v76, %v3690
    %v3725 = vmul.f32 %v77, %v3704
    %v3726 = vmul.f32 %v78, %v3712
    %v3727 = vmul.f32 %v79, %v3714
    %v3728 = vmul.f32 %v80, %v3697
    %v3729 = vmul.f32 %v81, %v3711
    %v3730 = vmul.f32 %v82, %v3713
    %v3731 = vmul.f32 %v83, %v3715
    %v3733 = vlaneseq
    %v3734 = vshrl.u32 %v3733, 7
    %v3735 = vsub.s32 0, %v3734
    %v3736 = vrot.slane %v3654, %v3735
    %v3737 = vlaneseq
    %v3738 = vshrl.u32 %v3737, 7
    %v3739 = vsub.s32 1, %v3738
    %v3740 = vrot.slane %v3654, %v3739
    %v3741 = vcombine.low %v3736, %v3740
    %v3742 = vcombine.high %v3736, %v3740
    %v3744 = vunpack.c.l.s4 1966171168
    %v3745 = vunpack.c.0.s8 %v3744
    %v3746 = vlaneseq
    %v3747 = vshrl.u32 %v3746, 7
    %v3748 = vsub.s32 %v3745, %v3747
    %v3749 = vrot.slane %v3741, %v3748
    %v3751 = vunpack.c.l.s4 1966171168
    %v3752 = vunpack.c.0.s8 %v3751
    %v3753 = vlaneseq
    %v3754 = vshrl.u32 %v3753, 7
    %v3755 = vsub.s32 %v3752, %v3754
    %v3756 = vrot.slane %v3742, %v3755
    %v3757 = vcombine.high %v3749, %v3749
    %v3758 = vcombine.high %v3756, %v3756
    %v3760 = vunpack.c.l.s4 1966171168
    %v3761 = vunpack.c.0.s8 %v3760
    %v3762 = vlaneseq
    %v3763 = vshrl.u32 %v3762, 7
    %v3764 = vsub.s32 %v3761, %v3763
    %v3765 = vrot.slane %v3749, %v3764
    %v3767 = vunpack.c.l.s4 1966171168
    %v3768 = vunpack.c.0.s8 %v3767
    %v3769 = vlaneseq
    %v3770 = vshrl.u32 %v3769, 7
    %v3771 = vsub.s32 %v3768, %v3770
    %v3772 = vrot.slane %v3756, %v3771
    %v3774 = vunpack.c.l.s4 1966171168
    %v3775 = vunpack.c.0.s8 %v3774
    %v3776 = vlaneseq
    %v3777 = vshrl.u32 %v3776, 7
    %v3778 = vsub.s32 %v3775, %v3777
    %v3779 = vrot.slane %v3757, %v3778
    %v3781 = vunpack.c.l.s4 1966171168
    %v3782 = vunpack.c.0.s8 %v3781
    %v3783 = vlaneseq
    %v3784 = vshrl.u32 %v3783, 7
    %v3785 = vsub.s32 %v3782, %v3784
    %v3786 = vrot.slane %v3758, %v3785
    %v3787 = vcombine.high %v3765, %v3765
    %v3788 = vcombine.high %v3772, %v3772
    %v3789 = vcombine.high %v3779, %v3779
    %v3790 = vcombine.high %v3786, %v3786
    %v3799 = vadd.f32 %v3724, %v3765
    %v3800 = vadd.f32 %v3725, %v3779
    %v3801 = vadd.f32 %v3726, %v3787
    %v3802 = vadd.f32 %v3727, %v3789
    %v3803 = vadd.f32 %v3728, %v3772
    %v3804 = vadd.f32 %v3729, %v3786
    %v3805 = vadd.f32 %v3730, %v3788
    %v3806 = vadd.f32 %v3731, %v3790
    %v3807 = vmax.f32 %v3799, 0.0
    %v3808 = vmax.f32 %v3800, 0.0
    %v3809 = vmax.f32 %v3801, 0.0
    %v3810 = vmax.f32 %v3802, 0.0
    %v3811 = vmax.f32 %v3803, 0.0
    %v3812 = vmax.f32 %v3804, 0.0
    %v3813 = vmax.f32 %v3805, 0.0
    %v3814 = vmax.f32 %v3806, 0.0
    %v3816 = vlaneseq
    %v3817 = vshrl.u32 %v3816, 7
    %v3818 = vsub.s32 0, %v3817
    %v3819 = vrot.slane %v3656, %v3818
    %v3820 = vlaneseq
    %v3821 = vshrl.u32 %v3820, 7
    %v3822 = vsub.s32 1, %v3821
    %v3823 = vrot.slane %v3656, %v3822
    %v3834 = vcombine.low %v3807, %v3808
    %v3835 = vcombine.low %v3809, %v3810
    %v3836 = vcombine.low %v3811, %v3812
    %v3837 = vcombine.low %v3813, %v3814
    %v3839 = vunpack.c.l.s4 1966171168
    %v3840 = vunpack.c.0.s8 %v3839
    %v3841 = vlaneseq
    %v3842 = vshrl.u32 %v3841, 7
    %v3843 = vsub.s32 %v3840, %v3842
    %v3844 = vrot.slane %v3834, %v3843
    %v3846 = vunpack.c.l.s4 1966171168
    %v3847 = vunpack.c.0.s8 %v3846
    %v3848 = vlaneseq
    %v3849 = vshrl.u32 %v3848, 7
    %v3850 = vsub.s32 %v3847, %v3849
    %v3851 = vrot.slane %v3835, %v3850
    %v3853 = vunpack.c.l.s4 1966171168
    %v3854 = vunpack.c.0.s8 %v3853
    %v3855 = vlaneseq
    %v3856 = vshrl.u32 %v3855, 7
    %v3857 = vsub.s32 %v3854, %v3856
    %v3858 = vrot.slane %v3836, %v3857
    %v3860 = vunpack.c.l.s4 1966171168
    %v3861 = vunpack.c.0.s8 %v3860
    %v3862 = vlaneseq
    %v3863 = vshrl.u32 %v3862, 7
    %v3864 = vsub.s32 %v3861, %v3863
    %v3865 = vrot.slane %v3837, %v3864
    %v3866 = vcombine.low %v3844, %v3851
    %v3867 = vcombine.high %v3844, %v3851
    %v3868 = vcombine.low %v3858, %v3865
    %v3869 = vcombine.high %v3858, %v3865
    %v3871 = vunpack.c.l.s4 1966171168
    %v3872 = vunpack.c.0.s8 %v3871
    %v3873 = vlaneseq
    %v3874 = vshrl.u32 %v3873, 7
    %v3875 = vsub.s32 %v3872, %v3874
    %v3876 = vrot.slane %v3866, %v3875
    %v3878 = vunpack.c.l.s4 1966171168
    %v3879 = vunpack.c.0.s8 %v3878
    %v3880 = vlaneseq
    %v3881 = vshrl.u32 %v3880, 7
    %v3882 = vsub.s32 %v3879, %v3881
    %v3883 = vrot.slane %v3867, %v3882
    %v3885 = vunpack.c.l.s4 1966171168
    %v3886 = vunpack.c.0.s8 %v3885
    %v3887 = vlaneseq
    %v3888 = vshrl.u32 %v3887, 7
    %v3889 = vsub.s32 %v3886, %v3888
    %v3890 = vrot.slane %v3868, %v3889
    %v3892 = vunpack.c.l.s4 1966171168
    %v3893 = vunpack.c.0.s8 %v3892
    %v3894 = vlaneseq
    %v3895 = vshrl.u32 %v3894, 7
    %v3896 = vsub.s32 %v3893, %v3895
    %v3897 = vrot.slane %v3869, %v3896
    %v3898 = vcombine.low %v3876, %v3890
    %v3899 = vcombine.low %v3883, %v3897
    %v3902 = vmul.f32 %v3819, %v3898
    %v3903 = vmul.f32 %v3823, %v3899
    %v3904 = vadd.f32 %v3649, %v3902
    %v3905 = vadd.f32 %v3650, %v3903
    %s3906 = scalar_lea.vmem [#allocation5], 23
    %v3907 = vld [vmem:[%s3906] ss:$8 sm:$0x3]
    %s3908 = scalar_lea.vmem [#allocation7], 23
    %v3909 = vld [vmem:[%s3908] ss:$8 sm:$0x3]
    %s3910 = scalar_lea.vmem [#allocation8], 23
    %v3911 = vld [vmem:[%s3910] ss:$8 sm:$0x3]
    %v3913 = vlaneseq
    %v3914 = vshrl.u32 %v3913, 7
    %v3915 = vsub.s32 0, %v3914
    %v3916 = vrot.slane %v3907, %v3915
    %v3917 = vlaneseq
    %v3918 = vshrl.u32 %v3917, 7
    %v3919 = vsub.s32 1, %v3918
    %v3920 = vrot.slane %v3907, %v3919
    %v3921 = vcombine.low %v3916, %v3920
    %v3922 = vcombine.high %v3916, %v3920
    %v3924 = vunpack.c.l.s4 1966171168
    %v3925 = vunpack.c.0.s8 %v3924
    %v3926 = vlaneseq
    %v3927 = vshrl.u32 %v3926, 7
    %v3928 = vsub.s32 %v3925, %v3927
    %v3929 = vrot.slane %v3921, %v3928
    %v3931 = vunpack.c.l.s4 1966171168
    %v3932 = vunpack.c.0.s8 %v3931
    %v3933 = vlaneseq
    %v3934 = vshrl.u32 %v3933, 7
    %v3935 = vsub.s32 %v3932, %v3934
    %v3936 = vrot.slane %v3922, %v3935
    %v3937 = vcombine.high %v3929, %v3929
    %v3938 = vcombine.high %v3936, %v3936
    %v3940 = vunpack.c.l.s4 1966171168
    %v3941 = vunpack.c.0.s8 %v3940
    %v3942 = vlaneseq
    %v3943 = vshrl.u32 %v3942, 7
    %v3944 = vsub.s32 %v3941, %v3943
    %v3945 = vrot.slane %v3929, %v3944
    %v3947 = vunpack.c.l.s4 1966171168
    %v3948 = vunpack.c.0.s8 %v3947
    %v3949 = vlaneseq
    %v3950 = vshrl.u32 %v3949, 7
    %v3951 = vsub.s32 %v3948, %v3950
    %v3952 = vrot.slane %v3936, %v3951
    %v3954 = vunpack.c.l.s4 1966171168
    %v3955 = vunpack.c.0.s8 %v3954
    %v3956 = vlaneseq
    %v3957 = vshrl.u32 %v3956, 7
    %v3958 = vsub.s32 %v3955, %v3957
    %v3959 = vrot.slane %v3937, %v3958
    %v3961 = vunpack.c.l.s4 1966171168
    %v3962 = vunpack.c.0.s8 %v3961
    %v3963 = vlaneseq
    %v3964 = vshrl.u32 %v3963, 7
    %v3965 = vsub.s32 %v3962, %v3964
    %v3966 = vrot.slane %v3938, %v3965
    %v3967 = vcombine.high %v3945, %v3945
    %v3968 = vcombine.high %v3952, %v3952
    %v3969 = vcombine.high %v3959, %v3959
    %v3970 = vcombine.high %v3966, %v3966
    %v3979 = vmul.f32 %v76, %v3945
    %v3980 = vmul.f32 %v77, %v3959
    %v3981 = vmul.f32 %v78, %v3967
    %v3982 = vmul.f32 %v79, %v3969
    %v3983 = vmul.f32 %v80, %v3952
    %v3984 = vmul.f32 %v81, %v3966
    %v3985 = vmul.f32 %v82, %v3968
    %v3986 = vmul.f32 %v83, %v3970
    %v3988 = vlaneseq
    %v3989 = vshrl.u32 %v3988, 7
    %v3990 = vsub.s32 0, %v3989
    %v3991 = vrot.slane %v3909, %v3990
    %v3992 = vlaneseq
    %v3993 = vshrl.u32 %v3992, 7
    %v3994 = vsub.s32 1, %v3993
    %v3995 = vrot.slane %v3909, %v3994
    %v3996 = vcombine.low %v3991, %v3995
    %v3997 = vcombine.high %v3991, %v3995
    %v3999 = vunpack.c.l.s4 1966171168
    %v4000 = vunpack.c.0.s8 %v3999
    %v4001 = vlaneseq
    %v4002 = vshrl.u32 %v4001, 7
    %v4003 = vsub.s32 %v4000, %v4002
    %v4004 = vrot.slane %v3996, %v4003
    %v4006 = vunpack.c.l.s4 1966171168
    %v4007 = vunpack.c.0.s8 %v4006
    %v4008 = vlaneseq
    %v4009 = vshrl.u32 %v4008, 7
    %v4010 = vsub.s32 %v4007, %v4009
    %v4011 = vrot.slane %v3997, %v4010
    %v4012 = vcombine.high %v4004, %v4004
    %v4013 = vcombine.high %v4011, %v4011
    %v4015 = vunpack.c.l.s4 1966171168
    %v4016 = vunpack.c.0.s8 %v4015
    %v4017 = vlaneseq
    %v4018 = vshrl.u32 %v4017, 7
    %v4019 = vsub.s32 %v4016, %v4018
    %v4020 = vrot.slane %v4004, %v4019
    %v4022 = vunpack.c.l.s4 1966171168
    %v4023 = vunpack.c.0.s8 %v4022
    %v4024 = vlaneseq
    %v4025 = vshrl.u32 %v4024, 7
    %v4026 = vsub.s32 %v4023, %v4025
    %v4027 = vrot.slane %v4011, %v4026
    %v4029 = vunpack.c.l.s4 1966171168
    %v4030 = vunpack.c.0.s8 %v4029
    %v4031 = vlaneseq
    %v4032 = vshrl.u32 %v4031, 7
    %v4033 = vsub.s32 %v4030, %v4032
    %v4034 = vrot.slane %v4012, %v4033
    %v4036 = vunpack.c.l.s4 1966171168
    %v4037 = vunpack.c.0.s8 %v4036
    %v4038 = vlaneseq
    %v4039 = vshrl.u32 %v4038, 7
    %v4040 = vsub.s32 %v4037, %v4039
    %v4041 = vrot.slane %v4013, %v4040
    %v4042 = vcombine.high %v4020, %v4020
    %v4043 = vcombine.high %v4027, %v4027
    %v4044 = vcombine.high %v4034, %v4034
    %v4045 = vcombine.high %v4041, %v4041
    %v4054 = vadd.f32 %v3979, %v4020
    %v4055 = vadd.f32 %v3980, %v4034
    %v4056 = vadd.f32 %v3981, %v4042
    %v4057 = vadd.f32 %v3982, %v4044
    %v4058 = vadd.f32 %v3983, %v4027
    %v4059 = vadd.f32 %v3984, %v4041
    %v4060 = vadd.f32 %v3985, %v4043
    %v4061 = vadd.f32 %v3986, %v4045
    %v4062 = vmax.f32 %v4054, 0.0
    %v4063 = vmax.f32 %v4055, 0.0
    %v4064 = vmax.f32 %v4056, 0.0
    %v4065 = vmax.f32 %v4057, 0.0
    %v4066 = vmax.f32 %v4058, 0.0
    %v4067 = vmax.f32 %v4059, 0.0
    %v4068 = vmax.f32 %v4060, 0.0
    %v4069 = vmax.f32 %v4061, 0.0
    %v4071 = vlaneseq
    %v4072 = vshrl.u32 %v4071, 7
    %v4073 = vsub.s32 0, %v4072
    %v4074 = vrot.slane %v3911, %v4073
    %v4075 = vlaneseq
    %v4076 = vshrl.u32 %v4075, 7
    %v4077 = vsub.s32 1, %v4076
    %v4078 = vrot.slane %v3911, %v4077
    %v4089 = vcombine.low %v4062, %v4063
    %v4090 = vcombine.low %v4064, %v4065
    %v4091 = vcombine.low %v4066, %v4067
    %v4092 = vcombine.low %v4068, %v4069
    %v4094 = vunpack.c.l.s4 1966171168
    %v4095 = vunpack.c.0.s8 %v4094
    %v4096 = vlaneseq
    %v4097 = vshrl.u32 %v4096, 7
    %v4098 = vsub.s32 %v4095, %v4097
    %v4099 = vrot.slane %v4089, %v4098
    %v4101 = vunpack.c.l.s4 1966171168
    %v4102 = vunpack.c.0.s8 %v4101
    %v4103 = vlaneseq
    %v4104 = vshrl.u32 %v4103, 7
    %v4105 = vsub.s32 %v4102, %v4104
    %v4106 = vrot.slane %v4090, %v4105
    %v4108 = vunpack.c.l.s4 1966171168
    %v4109 = vunpack.c.0.s8 %v4108
    %v4110 = vlaneseq
    %v4111 = vshrl.u32 %v4110, 7
    %v4112 = vsub.s32 %v4109, %v4111
    %v4113 = vrot.slane %v4091, %v4112
    %v4115 = vunpack.c.l.s4 1966171168
    %v4116 = vunpack.c.0.s8 %v4115
    %v4117 = vlaneseq
    %v4118 = vshrl.u32 %v4117, 7
    %v4119 = vsub.s32 %v4116, %v4118
    %v4120 = vrot.slane %v4092, %v4119
    %v4121 = vcombine.low %v4099, %v4106
    %v4122 = vcombine.high %v4099, %v4106
    %v4123 = vcombine.low %v4113, %v4120
    %v4124 = vcombine.high %v4113, %v4120
    %v4126 = vunpack.c.l.s4 1966171168
    %v4127 = vunpack.c.0.s8 %v4126
    %v4128 = vlaneseq
    %v4129 = vshrl.u32 %v4128, 7
    %v4130 = vsub.s32 %v4127, %v4129
    %v4131 = vrot.slane %v4121, %v4130
    %v4133 = vunpack.c.l.s4 1966171168
    %v4134 = vunpack.c.0.s8 %v4133
    %v4135 = vlaneseq
    %v4136 = vshrl.u32 %v4135, 7
    %v4137 = vsub.s32 %v4134, %v4136
    %v4138 = vrot.slane %v4122, %v4137
    %v4140 = vunpack.c.l.s4 1966171168
    %v4141 = vunpack.c.0.s8 %v4140
    %v4142 = vlaneseq
    %v4143 = vshrl.u32 %v4142, 7
    %v4144 = vsub.s32 %v4141, %v4143
    %v4145 = vrot.slane %v4123, %v4144
    %v4147 = vunpack.c.l.s4 1966171168
    %v4148 = vunpack.c.0.s8 %v4147
    %v4149 = vlaneseq
    %v4150 = vshrl.u32 %v4149, 7
    %v4151 = vsub.s32 %v4148, %v4150
    %v4152 = vrot.slane %v4124, %v4151
    %v4153 = vcombine.low %v4131, %v4145
    %v4154 = vcombine.low %v4138, %v4152
    %v4157 = vmul.f32 %v4074, %v4153
    %v4158 = vmul.f32 %v4078, %v4154
    %v4159 = vadd.f32 %v3904, %v4157
    %v4160 = vadd.f32 %v3905, %v4158
    %s4161 = scalar_lea.vmem [#allocation5], 32
    %v4162 = vld [vmem:[%s4161] ss:$8 sm:$0x3]
    %s4163 = scalar_lea.vmem [#allocation7], 32
    %v4164 = vld [vmem:[%s4163] ss:$8 sm:$0x3]
    %s4165 = scalar_lea.vmem [#allocation8], 32
    %v4166 = vld [vmem:[%s4165] ss:$8 sm:$0x3]
    %v4168 = vlaneseq
    %v4169 = vshrl.u32 %v4168, 7
    %v4170 = vsub.s32 0, %v4169
    %v4171 = vrot.slane %v4162, %v4170
    %v4172 = vlaneseq
    %v4173 = vshrl.u32 %v4172, 7
    %v4174 = vsub.s32 1, %v4173
    %v4175 = vrot.slane %v4162, %v4174
    %v4176 = vcombine.low %v4171, %v4175
    %v4177 = vcombine.high %v4171, %v4175
    %v4179 = vunpack.c.l.s4 1966171168
    %v4180 = vunpack.c.0.s8 %v4179
    %v4181 = vlaneseq
    %v4182 = vshrl.u32 %v4181, 7
    %v4183 = vsub.s32 %v4180, %v4182
    %v4184 = vrot.slane %v4176, %v4183
    %v4186 = vunpack.c.l.s4 1966171168
    %v4187 = vunpack.c.0.s8 %v4186
    %v4188 = vlaneseq
    %v4189 = vshrl.u32 %v4188, 7
    %v4190 = vsub.s32 %v4187, %v4189
    %v4191 = vrot.slane %v4177, %v4190
    %v4192 = vcombine.high %v4184, %v4184
    %v4193 = vcombine.high %v4191, %v4191
    %v4195 = vunpack.c.l.s4 1966171168
    %v4196 = vunpack.c.0.s8 %v4195
    %v4197 = vlaneseq
    %v4198 = vshrl.u32 %v4197, 7
    %v4199 = vsub.s32 %v4196, %v4198
    %v4200 = vrot.slane %v4184, %v4199
    %v4202 = vunpack.c.l.s4 1966171168
    %v4203 = vunpack.c.0.s8 %v4202
    %v4204 = vlaneseq
    %v4205 = vshrl.u32 %v4204, 7
    %v4206 = vsub.s32 %v4203, %v4205
    %v4207 = vrot.slane %v4191, %v4206
    %v4209 = vunpack.c.l.s4 1966171168
    %v4210 = vunpack.c.0.s8 %v4209
    %v4211 = vlaneseq
    %v4212 = vshrl.u32 %v4211, 7
    %v4213 = vsub.s32 %v4210, %v4212
    %v4214 = vrot.slane %v4192, %v4213
    %v4216 = vunpack.c.l.s4 1966171168
    %v4217 = vunpack.c.0.s8 %v4216
    %v4218 = vlaneseq
    %v4219 = vshrl.u32 %v4218, 7
    %v4220 = vsub.s32 %v4217, %v4219
    %v4221 = vrot.slane %v4193, %v4220
    %v4222 = vcombine.high %v4200, %v4200
    %v4223 = vcombine.high %v4207, %v4207
    %v4224 = vcombine.high %v4214, %v4214
    %v4225 = vcombine.high %v4221, %v4221
    %v4234 = vmul.f32 %v76, %v4200
    %v4235 = vmul.f32 %v77, %v4214
    %v4236 = vmul.f32 %v78, %v4222
    %v4237 = vmul.f32 %v79, %v4224
    %v4238 = vmul.f32 %v80, %v4207
    %v4239 = vmul.f32 %v81, %v4221
    %v4240 = vmul.f32 %v82, %v4223
    %v4241 = vmul.f32 %v83, %v4225
    %v4243 = vlaneseq
    %v4244 = vshrl.u32 %v4243, 7
    %v4245 = vsub.s32 0, %v4244
    %v4246 = vrot.slane %v4164, %v4245
    %v4247 = vlaneseq
    %v4248 = vshrl.u32 %v4247, 7
    %v4249 = vsub.s32 1, %v4248
    %v4250 = vrot.slane %v4164, %v4249
    %v4251 = vcombine.low %v4246, %v4250
    %v4252 = vcombine.high %v4246, %v4250
    %v4254 = vunpack.c.l.s4 1966171168
    %v4255 = vunpack.c.0.s8 %v4254
    %v4256 = vlaneseq
    %v4257 = vshrl.u32 %v4256, 7
    %v4258 = vsub.s32 %v4255, %v4257
    %v4259 = vrot.slane %v4251, %v4258
    %v4261 = vunpack.c.l.s4 1966171168
    %v4262 = vunpack.c.0.s8 %v4261
    %v4263 = vlaneseq
    %v4264 = vshrl.u32 %v4263, 7
    %v4265 = vsub.s32 %v4262, %v4264
    %v4266 = vrot.slane %v4252, %v4265
    %v4267 = vcombine.high %v4259, %v4259
    %v4268 = vcombine.high %v4266, %v4266
    %v4270 = vunpack.c.l.s4 1966171168
    %v4271 = vunpack.c.0.s8 %v4270
    %v4272 = vlaneseq
    %v4273 = vshrl.u32 %v4272, 7
    %v4274 = vsub.s32 %v4271, %v4273
    %v4275 = vrot.slane %v4259, %v4274
    %v4277 = vunpack.c.l.s4 1966171168
    %v4278 = vunpack.c.0.s8 %v4277
    %v4279 = vlaneseq
    %v4280 = vshrl.u32 %v4279, 7
    %v4281 = vsub.s32 %v4278, %v4280
    %v4282 = vrot.slane %v4266, %v4281
    %v4284 = vunpack.c.l.s4 1966171168
    %v4285 = vunpack.c.0.s8 %v4284
    %v4286 = vlaneseq
    %v4287 = vshrl.u32 %v4286, 7
    %v4288 = vsub.s32 %v4285, %v4287
    %v4289 = vrot.slane %v4267, %v4288
    %v4291 = vunpack.c.l.s4 1966171168
    %v4292 = vunpack.c.0.s8 %v4291
    %v4293 = vlaneseq
    %v4294 = vshrl.u32 %v4293, 7
    %v4295 = vsub.s32 %v4292, %v4294
    %v4296 = vrot.slane %v4268, %v4295
    %v4297 = vcombine.high %v4275, %v4275
    %v4298 = vcombine.high %v4282, %v4282
    %v4299 = vcombine.high %v4289, %v4289
    %v4300 = vcombine.high %v4296, %v4296
    %v4309 = vadd.f32 %v4234, %v4275
    %v4310 = vadd.f32 %v4235, %v4289
    %v4311 = vadd.f32 %v4236, %v4297
    %v4312 = vadd.f32 %v4237, %v4299
    %v4313 = vadd.f32 %v4238, %v4282
    %v4314 = vadd.f32 %v4239, %v4296
    %v4315 = vadd.f32 %v4240, %v4298
    %v4316 = vadd.f32 %v4241, %v4300
    %v4317 = vmax.f32 %v4309, 0.0
    %v4318 = vmax.f32 %v4310, 0.0
    %v4319 = vmax.f32 %v4311, 0.0
    %v4320 = vmax.f32 %v4312, 0.0
    %v4321 = vmax.f32 %v4313, 0.0
    %v4322 = vmax.f32 %v4314, 0.0
    %v4323 = vmax.f32 %v4315, 0.0
    %v4324 = vmax.f32 %v4316, 0.0
    %v4326 = vlaneseq
    %v4327 = vshrl.u32 %v4326, 7
    %v4328 = vsub.s32 0, %v4327
    %v4329 = vrot.slane %v4166, %v4328
    %v4330 = vlaneseq
    %v4331 = vshrl.u32 %v4330, 7
    %v4332 = vsub.s32 1, %v4331
    %v4333 = vrot.slane %v4166, %v4332
    %v4344 = vcombine.low %v4317, %v4318
    %v4345 = vcombine.low %v4319, %v4320
    %v4346 = vcombine.low %v4321, %v4322
    %v4347 = vcombine.low %v4323, %v4324
    %v4349 = vunpack.c.l.s4 1966171168
    %v4350 = vunpack.c.0.s8 %v4349
    %v4351 = vlaneseq
    %v4352 = vshrl.u32 %v4351, 7
    %v4353 = vsub.s32 %v4350, %v4352
    %v4354 = vrot.slane %v4344, %v4353
    %v4356 = vunpack.c.l.s4 1966171168
    %v4357 = vunpack.c.0.s8 %v4356
    %v4358 = vlaneseq
    %v4359 = vshrl.u32 %v4358, 7
    %v4360 = vsub.s32 %v4357, %v4359
    %v4361 = vrot.slane %v4345, %v4360
    %v4363 = vunpack.c.l.s4 1966171168
    %v4364 = vunpack.c.0.s8 %v4363
    %v4365 = vlaneseq
    %v4366 = vshrl.u32 %v4365, 7
    %v4367 = vsub.s32 %v4364, %v4366
    %v4368 = vrot.slane %v4346, %v4367
    %v4370 = vunpack.c.l.s4 1966171168
    %v4371 = vunpack.c.0.s8 %v4370
    %v4372 = vlaneseq
    %v4373 = vshrl.u32 %v4372, 7
    %v4374 = vsub.s32 %v4371, %v4373
    %v4375 = vrot.slane %v4347, %v4374
    %v4376 = vcombine.low %v4354, %v4361
    %v4377 = vcombine.high %v4354, %v4361
    %v4378 = vcombine.low %v4368, %v4375
    %v4379 = vcombine.high %v4368, %v4375
    %v4381 = vunpack.c.l.s4 1966171168
    %v4382 = vunpack.c.0.s8 %v4381
    %v4383 = vlaneseq
    %v4384 = vshrl.u32 %v4383, 7
    %v4385 = vsub.s32 %v4382, %v4384
    %v4386 = vrot.slane %v4376, %v4385
    %v4388 = vunpack.c.l.s4 1966171168
    %v4389 = vunpack.c.0.s8 %v4388
    %v4390 = vlaneseq
    %v4391 = vshrl.u32 %v4390, 7
    %v4392 = vsub.s32 %v4389, %v4391
    %v4393 = vrot.slane %v4377, %v4392
    %v4395 = vunpack.c.l.s4 1966171168
    %v4396 = vunpack.c.0.s8 %v4395
    %v4397 = vlaneseq
    %v4398 = vshrl.u32 %v4397, 7
    %v4399 = vsub.s32 %v4396, %v4398
    %v4400 = vrot.slane %v4378, %v4399
    %v4402 = vunpack.c.l.s4 1966171168
    %v4403 = vunpack.c.0.s8 %v4402
    %v4404 = vlaneseq
    %v4405 = vshrl.u32 %v4404, 7
    %v4406 = vsub.s32 %v4403, %v4405
    %v4407 = vrot.slane %v4379, %v4406
    %v4408 = vcombine.low %v4386, %v4400
    %v4409 = vcombine.low %v4393, %v4407
    %v4412 = vmul.f32 %v4329, %v4408
    %v4413 = vmul.f32 %v4333, %v4409
    %v4414 = vadd.f32 %v4159, %v4412
    %v4415 = vadd.f32 %v4160, %v4413
    %s4416 = scalar_lea.vmem [#allocation5], 33
    %v4417 = vld [vmem:[%s4416] ss:$8 sm:$0x3]
    %s4418 = scalar_lea.vmem [#allocation7], 33
    %v4419 = vld [vmem:[%s4418] ss:$8 sm:$0x3]
    %s4420 = scalar_lea.vmem [#allocation8], 33
    %v4421 = vld [vmem:[%s4420] ss:$8 sm:$0x3]
    %v4423 = vlaneseq
    %v4424 = vshrl.u32 %v4423, 7
    %v4425 = vsub.s32 0, %v4424
    %v4426 = vrot.slane %v4417, %v4425
    %v4427 = vlaneseq
    %v4428 = vshrl.u32 %v4427, 7
    %v4429 = vsub.s32 1, %v4428
    %v4430 = vrot.slane %v4417, %v4429
    %v4431 = vcombine.low %v4426, %v4430
    %v4432 = vcombine.high %v4426, %v4430
    %v4434 = vunpack.c.l.s4 1966171168
    %v4435 = vunpack.c.0.s8 %v4434
    %v4436 = vlaneseq
    %v4437 = vshrl.u32 %v4436, 7
    %v4438 = vsub.s32 %v4435, %v4437
    %v4439 = vrot.slane %v4431, %v4438
    %v4441 = vunpack.c.l.s4 1966171168
    %v4442 = vunpack.c.0.s8 %v4441
    %v4443 = vlaneseq
    %v4444 = vshrl.u32 %v4443, 7
    %v4445 = vsub.s32 %v4442, %v4444
    %v4446 = vrot.slane %v4432, %v4445
    %v4447 = vcombine.high %v4439, %v4439
    %v4448 = vcombine.high %v4446, %v4446
    %v4450 = vunpack.c.l.s4 1966171168
    %v4451 = vunpack.c.0.s8 %v4450
    %v4452 = vlaneseq
    %v4453 = vshrl.u32 %v4452, 7
    %v4454 = vsub.s32 %v4451, %v4453
    %v4455 = vrot.slane %v4439, %v4454
    %v4457 = vunpack.c.l.s4 1966171168
    %v4458 = vunpack.c.0.s8 %v4457
    %v4459 = vlaneseq
    %v4460 = vshrl.u32 %v4459, 7
    %v4461 = vsub.s32 %v4458, %v4460
    %v4462 = vrot.slane %v4446, %v4461
    %v4464 = vunpack.c.l.s4 1966171168
    %v4465 = vunpack.c.0.s8 %v4464
    %v4466 = vlaneseq
    %v4467 = vshrl.u32 %v4466, 7
    %v4468 = vsub.s32 %v4465, %v4467
    %v4469 = vrot.slane %v4447, %v4468
    %v4471 = vunpack.c.l.s4 1966171168
    %v4472 = vunpack.c.0.s8 %v4471
    %v4473 = vlaneseq
    %v4474 = vshrl.u32 %v4473, 7
    %v4475 = vsub.s32 %v4472, %v4474
    %v4476 = vrot.slane %v4448, %v4475
    %v4477 = vcombine.high %v4455, %v4455
    %v4478 = vcombine.high %v4462, %v4462
    %v4479 = vcombine.high %v4469, %v4469
    %v4480 = vcombine.high %v4476, %v4476
    %v4489 = vmul.f32 %v76, %v4455
    %v4490 = vmul.f32 %v77, %v4469
    %v4491 = vmul.f32 %v78, %v4477
    %v4492 = vmul.f32 %v79, %v4479
    %v4493 = vmul.f32 %v80, %v4462
    %v4494 = vmul.f32 %v81, %v4476
    %v4495 = vmul.f32 %v82, %v4478
    %v4496 = vmul.f32 %v83, %v4480
    %v4498 = vlaneseq
    %v4499 = vshrl.u32 %v4498, 7
    %v4500 = vsub.s32 0, %v4499
    %v4501 = vrot.slane %v4419, %v4500
    %v4502 = vlaneseq
    %v4503 = vshrl.u32 %v4502, 7
    %v4504 = vsub.s32 1, %v4503
    %v4505 = vrot.slane %v4419, %v4504
    %v4506 = vcombine.low %v4501, %v4505
    %v4507 = vcombine.high %v4501, %v4505
    %v4509 = vunpack.c.l.s4 1966171168
    %v4510 = vunpack.c.0.s8 %v4509
    %v4511 = vlaneseq
    %v4512 = vshrl.u32 %v4511, 7
    %v4513 = vsub.s32 %v4510, %v4512
    %v4514 = vrot.slane %v4506, %v4513
    %v4516 = vunpack.c.l.s4 1966171168
    %v4517 = vunpack.c.0.s8 %v4516
    %v4518 = vlaneseq
    %v4519 = vshrl.u32 %v4518, 7
    %v4520 = vsub.s32 %v4517, %v4519
    %v4521 = vrot.slane %v4507, %v4520
    %v4522 = vcombine.high %v4514, %v4514
    %v4523 = vcombine.high %v4521, %v4521
    %v4525 = vunpack.c.l.s4 1966171168
    %v4526 = vunpack.c.0.s8 %v4525
    %v4527 = vlaneseq
    %v4528 = vshrl.u32 %v4527, 7
    %v4529 = vsub.s32 %v4526, %v4528
    %v4530 = vrot.slane %v4514, %v4529
    %v4532 = vunpack.c.l.s4 1966171168
    %v4533 = vunpack.c.0.s8 %v4532
    %v4534 = vlaneseq
    %v4535 = vshrl.u32 %v4534, 7
    %v4536 = vsub.s32 %v4533, %v4535
    %v4537 = vrot.slane %v4521, %v4536
    %v4539 = vunpack.c.l.s4 1966171168
    %v4540 = vunpack.c.0.s8 %v4539
    %v4541 = vlaneseq
    %v4542 = vshrl.u32 %v4541, 7
    %v4543 = vsub.s32 %v4540, %v4542
    %v4544 = vrot.slane %v4522, %v4543
    %v4546 = vunpack.c.l.s4 1966171168
    %v4547 = vunpack.c.0.s8 %v4546
    %v4548 = vlaneseq
    %v4549 = vshrl.u32 %v4548, 7
    %v4550 = vsub.s32 %v4547, %v4549
    %v4551 = vrot.slane %v4523, %v4550
    %v4552 = vcombine.high %v4530, %v4530
    %v4553 = vcombine.high %v4537, %v4537
    %v4554 = vcombine.high %v4544, %v4544
    %v4555 = vcombine.high %v4551, %v4551
    %v4564 = vadd.f32 %v4489, %v4530
    %v4565 = vadd.f32 %v4490, %v4544
    %v4566 = vadd.f32 %v4491, %v4552
    %v4567 = vadd.f32 %v4492, %v4554
    %v4568 = vadd.f32 %v4493, %v4537
    %v4569 = vadd.f32 %v4494, %v4551
    %v4570 = vadd.f32 %v4495, %v4553
    %v4571 = vadd.f32 %v4496, %v4555
    %v4572 = vmax.f32 %v4564, 0.0
    %v4573 = vmax.f32 %v4565, 0.0
    %v4574 = vmax.f32 %v4566, 0.0
    %v4575 = vmax.f32 %v4567, 0.0
    %v4576 = vmax.f32 %v4568, 0.0
    %v4577 = vmax.f32 %v4569, 0.0
    %v4578 = vmax.f32 %v4570, 0.0
    %v4579 = vmax.f32 %v4571, 0.0
    %v4581 = vlaneseq
    %v4582 = vshrl.u32 %v4581, 7
    %v4583 = vsub.s32 0, %v4582
    %v4584 = vrot.slane %v4421, %v4583
    %v4585 = vlaneseq
    %v4586 = vshrl.u32 %v4585, 7
    %v4587 = vsub.s32 1, %v4586
    %v4588 = vrot.slane %v4421, %v4587
    %v4599 = vcombine.low %v4572, %v4573
    %v4600 = vcombine.low %v4574, %v4575
    %v4601 = vcombine.low %v4576, %v4577
    %v4602 = vcombine.low %v4578, %v4579
    %v4604 = vunpack.c.l.s4 1966171168
    %v4605 = vunpack.c.0.s8 %v4604
    %v4606 = vlaneseq
    %v4607 = vshrl.u32 %v4606, 7
    %v4608 = vsub.s32 %v4605, %v4607
    %v4609 = vrot.slane %v4599, %v4608
    %v4611 = vunpack.c.l.s4 1966171168
    %v4612 = vunpack.c.0.s8 %v4611
    %v4613 = vlaneseq
    %v4614 = vshrl.u32 %v4613, 7
    %v4615 = vsub.s32 %v4612, %v4614
    %v4616 = vrot.slane %v4600, %v4615
    %v4618 = vunpack.c.l.s4 1966171168
    %v4619 = vunpack.c.0.s8 %v4618
    %v4620 = vlaneseq
    %v4621 = vshrl.u32 %v4620, 7
    %v4622 = vsub.s32 %v4619, %v4621
    %v4623 = vrot.slane %v4601, %v4622
    %v4625 = vunpack.c.l.s4 1966171168
    %v4626 = vunpack.c.0.s8 %v4625
    %v4627 = vlaneseq
    %v4628 = vshrl.u32 %v4627, 7
    %v4629 = vsub.s32 %v4626, %v4628
    %v4630 = vrot.slane %v4602, %v4629
    %v4631 = vcombine.low %v4609, %v4616
    %v4632 = vcombine.high %v4609, %v4616
    %v4633 = vcombine.low %v4623, %v4630
    %v4634 = vcombine.high %v4623, %v4630
    %v4636 = vunpack.c.l.s4 1966171168
    %v4637 = vunpack.c.0.s8 %v4636
    %v4638 = vlaneseq
    %v4639 = vshrl.u32 %v4638, 7
    %v4640 = vsub.s32 %v4637, %v4639
    %v4641 = vrot.slane %v4631, %v4640
    %v4643 = vunpack.c.l.s4 1966171168
    %v4644 = vunpack.c.0.s8 %v4643
    %v4645 = vlaneseq
    %v4646 = vshrl.u32 %v4645, 7
    %v4647 = vsub.s32 %v4644, %v4646
    %v4648 = vrot.slane %v4632, %v4647
    %v4650 = vunpack.c.l.s4 1966171168
    %v4651 = vunpack.c.0.s8 %v4650
    %v4652 = vlaneseq
    %v4653 = vshrl.u32 %v4652, 7
    %v4654 = vsub.s32 %v4651, %v4653
    %v4655 = vrot.slane %v4633, %v4654
    %v4657 = vunpack.c.l.s4 1966171168
    %v4658 = vunpack.c.0.s8 %v4657
    %v4659 = vlaneseq
    %v4660 = vshrl.u32 %v4659, 7
    %v4661 = vsub.s32 %v4658, %v4660
    %v4662 = vrot.slane %v4634, %v4661
    %v4663 = vcombine.low %v4641, %v4655
    %v4664 = vcombine.low %v4648, %v4662
    %v4667 = vmul.f32 %v4584, %v4663
    %v4668 = vmul.f32 %v4588, %v4664
    %v4669 = vadd.f32 %v4414, %v4667
    %v4670 = vadd.f32 %v4415, %v4668
    %s4671 = scalar_lea.vmem [#allocation5], 34
    %v4672 = vld [vmem:[%s4671] ss:$8 sm:$0x3]
    %s4673 = scalar_lea.vmem [#allocation7], 34
    %v4674 = vld [vmem:[%s4673] ss:$8 sm:$0x3]
    %s4675 = scalar_lea.vmem [#allocation8], 34
    %v4676 = vld [vmem:[%s4675] ss:$8 sm:$0x3]
    %v4678 = vlaneseq
    %v4679 = vshrl.u32 %v4678, 7
    %v4680 = vsub.s32 0, %v4679
    %v4681 = vrot.slane %v4672, %v4680
    %v4682 = vlaneseq
    %v4683 = vshrl.u32 %v4682, 7
    %v4684 = vsub.s32 1, %v4683
    %v4685 = vrot.slane %v4672, %v4684
    %v4686 = vcombine.low %v4681, %v4685
    %v4687 = vcombine.high %v4681, %v4685
    %v4689 = vunpack.c.l.s4 1966171168
    %v4690 = vunpack.c.0.s8 %v4689
    %v4691 = vlaneseq
    %v4692 = vshrl.u32 %v4691, 7
    %v4693 = vsub.s32 %v4690, %v4692
    %v4694 = vrot.slane %v4686, %v4693
    %v4696 = vunpack.c.l.s4 1966171168
    %v4697 = vunpack.c.0.s8 %v4696
    %v4698 = vlaneseq
    %v4699 = vshrl.u32 %v4698, 7
    %v4700 = vsub.s32 %v4697, %v4699
    %v4701 = vrot.slane %v4687, %v4700
    %v4702 = vcombine.high %v4694, %v4694
    %v4703 = vcombine.high %v4701, %v4701
    %v4705 = vunpack.c.l.s4 1966171168
    %v4706 = vunpack.c.0.s8 %v4705
    %v4707 = vlaneseq
    %v4708 = vshrl.u32 %v4707, 7
    %v4709 = vsub.s32 %v4706, %v4708
    %v4710 = vrot.slane %v4694, %v4709
    %v4712 = vunpack.c.l.s4 1966171168
    %v4713 = vunpack.c.0.s8 %v4712
    %v4714 = vlaneseq
    %v4715 = vshrl.u32 %v4714, 7
    %v4716 = vsub.s32 %v4713, %v4715
    %v4717 = vrot.slane %v4701, %v4716
    %v4719 = vunpack.c.l.s4 1966171168
    %v4720 = vunpack.c.0.s8 %v4719
    %v4721 = vlaneseq
    %v4722 = vshrl.u32 %v4721, 7
    %v4723 = vsub.s32 %v4720, %v4722
    %v4724 = vrot.slane %v4702, %v4723
    %v4726 = vunpack.c.l.s4 1966171168
    %v4727 = vunpack.c.0.s8 %v4726
    %v4728 = vlaneseq
    %v4729 = vshrl.u32 %v4728, 7
    %v4730 = vsub.s32 %v4727, %v4729
    %v4731 = vrot.slane %v4703, %v4730
    %v4732 = vcombine.high %v4710, %v4710
    %v4733 = vcombine.high %v4717, %v4717
    %v4734 = vcombine.high %v4724, %v4724
    %v4735 = vcombine.high %v4731, %v4731
    %v4744 = vmul.f32 %v76, %v4710
    %v4745 = vmul.f32 %v77, %v4724
    %v4746 = vmul.f32 %v78, %v4732
    %v4747 = vmul.f32 %v79, %v4734
    %v4748 = vmul.f32 %v80, %v4717
    %v4749 = vmul.f32 %v81, %v4731
    %v4750 = vmul.f32 %v82, %v4733
    %v4751 = vmul.f32 %v83, %v4735
    %v4753 = vlaneseq
    %v4754 = vshrl.u32 %v4753, 7
    %v4755 = vsub.s32 0, %v4754
    %v4756 = vrot.slane %v4674, %v4755
    %v4757 = vlaneseq
    %v4758 = vshrl.u32 %v4757, 7
    %v4759 = vsub.s32 1, %v4758
    %v4760 = vrot.slane %v4674, %v4759
    %v4761 = vcombine.low %v4756, %v4760
    %v4762 = vcombine.high %v4756, %v4760
    %v4764 = vunpack.c.l.s4 1966171168
    %v4765 = vunpack.c.0.s8 %v4764
    %v4766 = vlaneseq
    %v4767 = vshrl.u32 %v4766, 7
    %v4768 = vsub.s32 %v4765, %v4767
    %v4769 = vrot.slane %v4761, %v4768
    %v4771 = vunpack.c.l.s4 1966171168
    %v4772 = vunpack.c.0.s8 %v4771
    %v4773 = vlaneseq
    %v4774 = vshrl.u32 %v4773, 7
    %v4775 = vsub.s32 %v4772, %v4774
    %v4776 = vrot.slane %v4762, %v4775
    %v4777 = vcombine.high %v4769, %v4769
    %v4778 = vcombine.high %v4776, %v4776
    %v4780 = vunpack.c.l.s4 1966171168
    %v4781 = vunpack.c.0.s8 %v4780
    %v4782 = vlaneseq
    %v4783 = vshrl.u32 %v4782, 7
    %v4784 = vsub.s32 %v4781, %v4783
    %v4785 = vrot.slane %v4769, %v4784
    %v4787 = vunpack.c.l.s4 1966171168
    %v4788 = vunpack.c.0.s8 %v4787
    %v4789 = vlaneseq
    %v4790 = vshrl.u32 %v4789, 7
    %v4791 = vsub.s32 %v4788, %v4790
    %v4792 = vrot.slane %v4776, %v4791
    %v4794 = vunpack.c.l.s4 1966171168
    %v4795 = vunpack.c.0.s8 %v4794
    %v4796 = vlaneseq
    %v4797 = vshrl.u32 %v4796, 7
    %v4798 = vsub.s32 %v4795, %v4797
    %v4799 = vrot.slane %v4777, %v4798
    %v4801 = vunpack.c.l.s4 1966171168
    %v4802 = vunpack.c.0.s8 %v4801
    %v4803 = vlaneseq
    %v4804 = vshrl.u32 %v4803, 7
    %v4805 = vsub.s32 %v4802, %v4804
    %v4806 = vrot.slane %v4778, %v4805
    %v4807 = vcombine.high %v4785, %v4785
    %v4808 = vcombine.high %v4792, %v4792
    %v4809 = vcombine.high %v4799, %v4799
    %v4810 = vcombine.high %v4806, %v4806
    %v4819 = vadd.f32 %v4744, %v4785
    %v4820 = vadd.f32 %v4745, %v4799
    %v4821 = vadd.f32 %v4746, %v4807
    %v4822 = vadd.f32 %v4747, %v4809
    %v4823 = vadd.f32 %v4748, %v4792
    %v4824 = vadd.f32 %v4749, %v4806
    %v4825 = vadd.f32 %v4750, %v4808
    %v4826 = vadd.f32 %v4751, %v4810
    %v4827 = vmax.f32 %v4819, 0.0
    %v4828 = vmax.f32 %v4820, 0.0
    %v4829 = vmax.f32 %v4821, 0.0
    %v4830 = vmax.f32 %v4822, 0.0
    %v4831 = vmax.f32 %v4823, 0.0
    %v4832 = vmax.f32 %v4824, 0.0
    %v4833 = vmax.f32 %v4825, 0.0
    %v4834 = vmax.f32 %v4826, 0.0
    %v4836 = vlaneseq
    %v4837 = vshrl.u32 %v4836, 7
    %v4838 = vsub.s32 0, %v4837
    %v4839 = vrot.slane %v4676, %v4838
    %v4840 = vlaneseq
    %v4841 = vshrl.u32 %v4840, 7
    %v4842 = vsub.s32 1, %v4841
    %v4843 = vrot.slane %v4676, %v4842
    %v4854 = vcombine.low %v4827, %v4828
    %v4855 = vcombine.low %v4829, %v4830
    %v4856 = vcombine.low %v4831, %v4832
    %v4857 = vcombine.low %v4833, %v4834
    %v4859 = vunpack.c.l.s4 1966171168
    %v4860 = vunpack.c.0.s8 %v4859
    %v4861 = vlaneseq
    %v4862 = vshrl.u32 %v4861, 7
    %v4863 = vsub.s32 %v4860, %v4862
    %v4864 = vrot.slane %v4854, %v4863
    %v4866 = vunpack.c.l.s4 1966171168
    %v4867 = vunpack.c.0.s8 %v4866
    %v4868 = vlaneseq
    %v4869 = vshrl.u32 %v4868, 7
    %v4870 = vsub.s32 %v4867, %v4869
    %v4871 = vrot.slane %v4855, %v4870
    %v4873 = vunpack.c.l.s4 1966171168
    %v4874 = vunpack.c.0.s8 %v4873
    %v4875 = vlaneseq
    %v4876 = vshrl.u32 %v4875, 7
    %v4877 = vsub.s32 %v4874, %v4876
    %v4878 = vrot.slane %v4856, %v4877
    %v4880 = vunpack.c.l.s4 1966171168
    %v4881 = vunpack.c.0.s8 %v4880
    %v4882 = vlaneseq
    %v4883 = vshrl.u32 %v4882, 7
    %v4884 = vsub.s32 %v4881, %v4883
    %v4885 = vrot.slane %v4857, %v4884
    %v4886 = vcombine.low %v4864, %v4871
    %v4887 = vcombine.high %v4864, %v4871
    %v4888 = vcombine.low %v4878, %v4885
    %v4889 = vcombine.high %v4878, %v4885
    %v4891 = vunpack.c.l.s4 1966171168
    %v4892 = vunpack.c.0.s8 %v4891
    %v4893 = vlaneseq
    %v4894 = vshrl.u32 %v4893, 7
    %v4895 = vsub.s32 %v4892, %v4894
    %v4896 = vrot.slane %v4886, %v4895
    %v4898 = vunpack.c.l.s4 1966171168
    %v4899 = vunpack.c.0.s8 %v4898
    %v4900 = vlaneseq
    %v4901 = vshrl.u32 %v4900, 7
    %v4902 = vsub.s32 %v4899, %v4901
    %v4903 = vrot.slane %v4887, %v4902
    %v4905 = vunpack.c.l.s4 1966171168
    %v4906 = vunpack.c.0.s8 %v4905
    %v4907 = vlaneseq
    %v4908 = vshrl.u32 %v4907, 7
    %v4909 = vsub.s32 %v4906, %v4908
    %v4910 = vrot.slane %v4888, %v4909
    %v4912 = vunpack.c.l.s4 1966171168
    %v4913 = vunpack.c.0.s8 %v4912
    %v4914 = vlaneseq
    %v4915 = vshrl.u32 %v4914, 7
    %v4916 = vsub.s32 %v4913, %v4915
    %v4917 = vrot.slane %v4889, %v4916
    %v4918 = vcombine.low %v4896, %v4910
    %v4919 = vcombine.low %v4903, %v4917
    %v4922 = vmul.f32 %v4839, %v4918
    %v4923 = vmul.f32 %v4843, %v4919
    %v4924 = vadd.f32 %v4669, %v4922
    %v4925 = vadd.f32 %v4670, %v4923
    %s4926 = scalar_lea.vmem [#allocation5], 35
    %v4927 = vld [vmem:[%s4926] ss:$8 sm:$0x3]
    %s4928 = scalar_lea.vmem [#allocation7], 35
    %v4929 = vld [vmem:[%s4928] ss:$8 sm:$0x3]
    %s4930 = scalar_lea.vmem [#allocation8], 35
    %v4931 = vld [vmem:[%s4930] ss:$8 sm:$0x3]
    %v4933 = vlaneseq
    %v4934 = vshrl.u32 %v4933, 7
    %v4935 = vsub.s32 0, %v4934
    %v4936 = vrot.slane %v4927, %v4935
    %v4937 = vlaneseq
    %v4938 = vshrl.u32 %v4937, 7
    %v4939 = vsub.s32 1, %v4938
    %v4940 = vrot.slane %v4927, %v4939
    %v4941 = vcombine.low %v4936, %v4940
    %v4942 = vcombine.high %v4936, %v4940
    %v4944 = vunpack.c.l.s4 1966171168
    %v4945 = vunpack.c.0.s8 %v4944
    %v4946 = vlaneseq
    %v4947 = vshrl.u32 %v4946, 7
    %v4948 = vsub.s32 %v4945, %v4947
    %v4949 = vrot.slane %v4941, %v4948
    %v4951 = vunpack.c.l.s4 1966171168
    %v4952 = vunpack.c.0.s8 %v4951
    %v4953 = vlaneseq
    %v4954 = vshrl.u32 %v4953, 7
    %v4955 = vsub.s32 %v4952, %v4954
    %v4956 = vrot.slane %v4942, %v4955
    %v4957 = vcombine.high %v4949, %v4949
    %v4958 = vcombine.high %v4956, %v4956
    %v4960 = vunpack.c.l.s4 1966171168
    %v4961 = vunpack.c.0.s8 %v4960
    %v4962 = vlaneseq
    %v4963 = vshrl.u32 %v4962, 7
    %v4964 = vsub.s32 %v4961, %v4963
    %v4965 = vrot.slane %v4949, %v4964
    %v4967 = vunpack.c.l.s4 1966171168
    %v4968 = vunpack.c.0.s8 %v4967
    %v4969 = vlaneseq
    %v4970 = vshrl.u32 %v4969, 7
    %v4971 = vsub.s32 %v4968, %v4970
    %v4972 = vrot.slane %v4956, %v4971
    %v4974 = vunpack.c.l.s4 1966171168
    %v4975 = vunpack.c.0.s8 %v4974
    %v4976 = vlaneseq
    %v4977 = vshrl.u32 %v4976, 7
    %v4978 = vsub.s32 %v4975, %v4977
    %v4979 = vrot.slane %v4957, %v4978
    %v4981 = vunpack.c.l.s4 1966171168
    %v4982 = vunpack.c.0.s8 %v4981
    %v4983 = vlaneseq
    %v4984 = vshrl.u32 %v4983, 7
    %v4985 = vsub.s32 %v4982, %v4984
    %v4986 = vrot.slane %v4958, %v4985
    %v4987 = vcombine.high %v4965, %v4965
    %v4988 = vcombine.high %v4972, %v4972
    %v4989 = vcombine.high %v4979, %v4979
    %v4990 = vcombine.high %v4986, %v4986
    %v4999 = vmul.f32 %v76, %v4965
    %v5000 = vmul.f32 %v77, %v4979
    %v5001 = vmul.f32 %v78, %v4987
    %v5002 = vmul.f32 %v79, %v4989
    %v5003 = vmul.f32 %v80, %v4972
    %v5004 = vmul.f32 %v81, %v4986
    %v5005 = vmul.f32 %v82, %v4988
    %v5006 = vmul.f32 %v83, %v4990
    %v5008 = vlaneseq
    %v5009 = vshrl.u32 %v5008, 7
    %v5010 = vsub.s32 0, %v5009
    %v5011 = vrot.slane %v4929, %v5010
    %v5012 = vlaneseq
    %v5013 = vshrl.u32 %v5012, 7
    %v5014 = vsub.s32 1, %v5013
    %v5015 = vrot.slane %v4929, %v5014
    %v5016 = vcombine.low %v5011, %v5015
    %v5017 = vcombine.high %v5011, %v5015
    %v5019 = vunpack.c.l.s4 1966171168
    %v5020 = vunpack.c.0.s8 %v5019
    %v5021 = vlaneseq
    %v5022 = vshrl.u32 %v5021, 7
    %v5023 = vsub.s32 %v5020, %v5022
    %v5024 = vrot.slane %v5016, %v5023
    %v5026 = vunpack.c.l.s4 1966171168
    %v5027 = vunpack.c.0.s8 %v5026
    %v5028 = vlaneseq
    %v5029 = vshrl.u32 %v5028, 7
    %v5030 = vsub.s32 %v5027, %v5029
    %v5031 = vrot.slane %v5017, %v5030
    %v5032 = vcombine.high %v5024, %v5024
    %v5033 = vcombine.high %v5031, %v5031
    %v5035 = vunpack.c.l.s4 1966171168
    %v5036 = vunpack.c.0.s8 %v5035
    %v5037 = vlaneseq
    %v5038 = vshrl.u32 %v5037, 7
    %v5039 = vsub.s32 %v5036, %v5038
    %v5040 = vrot.slane %v5024, %v5039
    %v5042 = vunpack.c.l.s4 1966171168
    %v5043 = vunpack.c.0.s8 %v5042
    %v5044 = vlaneseq
    %v5045 = vshrl.u32 %v5044, 7
    %v5046 = vsub.s32 %v5043, %v5045
    %v5047 = vrot.slane %v5031, %v5046
    %v5049 = vunpack.c.l.s4 1966171168
    %v5050 = vunpack.c.0.s8 %v5049
    %v5051 = vlaneseq
    %v5052 = vshrl.u32 %v5051, 7
    %v5053 = vsub.s32 %v5050, %v5052
    %v5054 = vrot.slane %v5032, %v5053
    %v5056 = vunpack.c.l.s4 1966171168
    %v5057 = vunpack.c.0.s8 %v5056
    %v5058 = vlaneseq
    %v5059 = vshrl.u32 %v5058, 7
    %v5060 = vsub.s32 %v5057, %v5059
    %v5061 = vrot.slane %v5033, %v5060
    %v5062 = vcombine.high %v5040, %v5040
    %v5063 = vcombine.high %v5047, %v5047
    %v5064 = vcombine.high %v5054, %v5054
    %v5065 = vcombine.high %v5061, %v5061
    %v5074 = vadd.f32 %v4999, %v5040
    %v5075 = vadd.f32 %v5000, %v5054
    %v5076 = vadd.f32 %v5001, %v5062
    %v5077 = vadd.f32 %v5002, %v5064
    %v5078 = vadd.f32 %v5003, %v5047
    %v5079 = vadd.f32 %v5004, %v5061
    %v5080 = vadd.f32 %v5005, %v5063
    %v5081 = vadd.f32 %v5006, %v5065
    %v5082 = vmax.f32 %v5074, 0.0
    %v5083 = vmax.f32 %v5075, 0.0
    %v5084 = vmax.f32 %v5076, 0.0
    %v5085 = vmax.f32 %v5077, 0.0
    %v5086 = vmax.f32 %v5078, 0.0
    %v5087 = vmax.f32 %v5079, 0.0
    %v5088 = vmax.f32 %v5080, 0.0
    %v5089 = vmax.f32 %v5081, 0.0
    %v5091 = vlaneseq
    %v5092 = vshrl.u32 %v5091, 7
    %v5093 = vsub.s32 0, %v5092
    %v5094 = vrot.slane %v4931, %v5093
    %v5095 = vlaneseq
    %v5096 = vshrl.u32 %v5095, 7
    %v5097 = vsub.s32 1, %v5096
    %v5098 = vrot.slane %v4931, %v5097
    %v5109 = vcombine.low %v5082, %v5083
    %v5110 = vcombine.low %v5084, %v5085
    %v5111 = vcombine.low %v5086, %v5087
    %v5112 = vcombine.low %v5088, %v5089
    %v5114 = vunpack.c.l.s4 1966171168
    %v5115 = vunpack.c.0.s8 %v5114
    %v5116 = vlaneseq
    %v5117 = vshrl.u32 %v5116, 7
    %v5118 = vsub.s32 %v5115, %v5117
    %v5119 = vrot.slane %v5109, %v5118
    %v5121 = vunpack.c.l.s4 1966171168
    %v5122 = vunpack.c.0.s8 %v5121
    %v5123 = vlaneseq
    %v5124 = vshrl.u32 %v5123, 7
    %v5125 = vsub.s32 %v5122, %v5124
    %v5126 = vrot.slane %v5110, %v5125
    %v5128 = vunpack.c.l.s4 1966171168
    %v5129 = vunpack.c.0.s8 %v5128
    %v5130 = vlaneseq
    %v5131 = vshrl.u32 %v5130, 7
    %v5132 = vsub.s32 %v5129, %v5131
    %v5133 = vrot.slane %v5111, %v5132
    %v5135 = vunpack.c.l.s4 1966171168
    %v5136 = vunpack.c.0.s8 %v5135
    %v5137 = vlaneseq
    %v5138 = vshrl.u32 %v5137, 7
    %v5139 = vsub.s32 %v5136, %v5138
    %v5140 = vrot.slane %v5112, %v5139
    %v5141 = vcombine.low %v5119, %v5126
    %v5142 = vcombine.high %v5119, %v5126
    %v5143 = vcombine.low %v5133, %v5140
    %v5144 = vcombine.high %v5133, %v5140
    %v5146 = vunpack.c.l.s4 1966171168
    %v5147 = vunpack.c.0.s8 %v5146
    %v5148 = vlaneseq
    %v5149 = vshrl.u32 %v5148, 7
    %v5150 = vsub.s32 %v5147, %v5149
    %v5151 = vrot.slane %v5141, %v5150
    %v5153 = vunpack.c.l.s4 1966171168
    %v5154 = vunpack.c.0.s8 %v5153
    %v5155 = vlaneseq
    %v5156 = vshrl.u32 %v5155, 7
    %v5157 = vsub.s32 %v5154, %v5156
    %v5158 = vrot.slane %v5142, %v5157
    %v5160 = vunpack.c.l.s4 1966171168
    %v5161 = vunpack.c.0.s8 %v5160
    %v5162 = vlaneseq
    %v5163 = vshrl.u32 %v5162, 7
    %v5164 = vsub.s32 %v5161, %v5163
    %v5165 = vrot.slane %v5143, %v5164
    %v5167 = vunpack.c.l.s4 1966171168
    %v5168 = vunpack.c.0.s8 %v5167
    %v5169 = vlaneseq
    %v5170 = vshrl.u32 %v5169, 7
    %v5171 = vsub.s32 %v5168, %v5170
    %v5172 = vrot.slane %v5144, %v5171
    %v5173 = vcombine.low %v5151, %v5165
    %v5174 = vcombine.low %v5158, %v5172
    %v5177 = vmul.f32 %v5094, %v5173
    %v5178 = vmul.f32 %v5098, %v5174
    %v5179 = vadd.f32 %v4924, %v5177
    %v5180 = vadd.f32 %v4925, %v5178
    %v5181 = vld [vmem:[%s4] sm:$0x3]
    %v5183 = vlaneseq
    %v5184 = vshrl.u32 %v5183, 7
    %v5185 = vsub.s32 0, %v5184
    %v5186 = vrot.slane %v5181, %v5185
    %v5187 = vlaneseq
    %v5188 = vshrl.u32 %v5187, 7
    %v5189 = vsub.s32 1, %v5188
    %v5190 = vrot.slane %v5181, %v5189
    %v5193 = vadd.f32 %v5179, %v5186
    %v5194 = vadd.f32 %v5180, %v5190
    %v5197 = vcombine.low %v5193, %v5194
    %v5198 = vcombine.high %v5193, %v5194
    %v5200 = vunpack.c.l.s4 1966171168
    %v5201 = vunpack.c.0.s8 %v5200
    %v5202 = vlaneseq
    %v5203 = vshrl.u32 %v5202, 7
    %v5204 = vsub.s32 %v5201, %v5203
    %v5205 = vrot.slane %v5197, %v5204
    %v5207 = vunpack.c.l.s4 1966171168
    %v5208 = vunpack.c.0.s8 %v5207
    %v5209 = vlaneseq
    %v5210 = vshrl.u32 %v5209, 7
    %v5211 = vsub.s32 %v5208, %v5210
    %v5212 = vrot.slane %v5198, %v5211
    %v5213 = vcombine.high %v5205, %v5205
    %v5214 = vcombine.high %v5212, %v5212
    %v5216 = vunpack.c.l.s4 1966171168
    %v5217 = vunpack.c.0.s8 %v5216
    %v5218 = vlaneseq
    %v5219 = vshrl.u32 %v5218, 7
    %v5220 = vsub.s32 %v5217, %v5219
    %v5221 = vrot.slane %v5205, %v5220
    %v5223 = vunpack.c.l.s4 1966171168
    %v5224 = vunpack.c.0.s8 %v5223
    %v5225 = vlaneseq
    %v5226 = vshrl.u32 %v5225, 7
    %v5227 = vsub.s32 %v5224, %v5226
    %v5228 = vrot.slane %v5212, %v5227
    %v5230 = vunpack.c.l.s4 1966171168
    %v5231 = vunpack.c.0.s8 %v5230
    %v5232 = vlaneseq
    %v5233 = vshrl.u32 %v5232, 7
    %v5234 = vsub.s32 %v5231, %v5233
    %v5235 = vrot.slane %v5213, %v5234
    %v5237 = vunpack.c.l.s4 1966171168
    %v5238 = vunpack.c.0.s8 %v5237
    %v5239 = vlaneseq
    %v5240 = vshrl.u32 %v5239, 7
    %v5241 = vsub.s32 %v5238, %v5240
    %v5242 = vrot.slane %v5214, %v5241
    %v5243 = vcombine.high %v5221, %v5221
    %v5244 = vcombine.high %v5228, %v5228
    %v5245 = vcombine.high %v5235, %v5235
    %v5246 = vcombine.high %v5242, %v5242
    %v5255 = vlaneseq
    %vm5256 = vcmp.ge.s32.totalorder %v5255, 0
    %vm5257 = vcmp.lt.s32.totalorder %v5255, 256
    %vm5258 = vmand %vm5256, %vm5257
    %5259 = vst.msk [vmem:[#allocation10] sm:$0x3] %vm5258, %v5221
    %5260 = vst.msk [vmem:[#allocation10 + $0x2] sm:$0x3] %vm5258, %v5235
    %5261 = vst.msk [vmem:[#allocation10 + $0x4] sm:$0x3] %vm5258, %v5243
    %5262 = vst.msk [vmem:[#allocation10 + $0x6] sm:$0x3] %vm5258, %v5245
    %5263 = vst.msk [vmem:[#allocation10 + $0x8] sm:$0x3] %vm5258, %v5228
    %5264 = vst.msk [vmem:[#allocation10 + $0xa] sm:$0x3] %vm5258, %v5242
    %5265 = vst.msk [vmem:[#allocation10 + $0xc] sm:$0x3] %vm5258, %v5244
    %5266 = vst.msk [vmem:[#allocation10 + $0xe] sm:$0x3] %vm5258, %v5246
    // Predicated region
    $region38: #{tpu_custom_call.1} parent=1 // pred_check
      _
    $region39: #{tpu_custom_call.1} parent=1 // pred_check_branch
      %5268 = sbr.rel (0) target = $region41
    $region40: #{tpu_custom_call.1} parent=1 // pred_region
      %s5270 = ssub.s32 256, 32
      %5271 = vsyncadd [#allocation4], %s5270
      %s5272 = sshll.u32 [#allocation10], 4
      %s5273 = int_to_ptr.vmem [resolvable:$true] %s5272
      %5278 = dma.vmem_to_hbm [thread:$0]  %s5273, 32, %s5, [#allocation4], 32, 32, 2
    $region41: #{tpu_custom_call.1} parent=1 // pred_fallthru
      _
    // Predicated region
    $region42: #{tpu_custom_call.1} parent=1 // pred_check
      _
    $region43: #{tpu_custom_call.1} parent=1 // pred_check_branch
      %5280 = sbr.rel (0) target = $region45
    $region44: #{tpu_custom_call.1} parent=1 // pred_region
      %5281 = dma.done [#allocation4], 256
    $region45: #{tpu_custom_call.1} parent=1 // pred_fallthru
      _
    %5282 = vsyncpa [#allocation3], 1
    %5283 = vsyncpa [#allocation6], 1
    %5284 = vsyncpa [#allocation9], 1
    %5285 = vsyncpa [#allocation4], 1

</llo_original>
